<compile_context>
chip_gen: v7x
topology: tpu7x:2x2x1
jax: 0.10.0
libtpu: 0.0.40
codegen_flags: <defaults>
</compile_context>

<pallas_src>
import functools

import jax
import jax.numpy as jnp
from jax.experimental import pallas as pl
from jax.experimental.pallas import tpu as pltpu


# ----------------------------------------------------------------------------
# Whole-model fused kernel (no grid; everything resident in VMEM).
#
# Packed gate-column layout (8H columns, H per block):
#   [ i_fwd | i_bwd | f_fwd | f_bwd | o_fwd | o_bwd | g_fwd | g_bwd ]
# -> sigmoid gates are cols [0:6H], tanh gates are cols [6H:8H];
#    the "bwd" lanes are the odd H-blocks.
# Combined state layout: hc = [h_fwd | h_bwd], cc = [c_fwd | c_bwd]  (B, 2H).
#
# refs (positional):
#   xp0   (T,B,8H) f32   layer-0 gate pre-activations, already "time-fused":
#                        fwd cols hold time t, bwd cols hold time T-1-t
#   lens  (B,1)    i32
#   whh0  (2H,8H)  bf16  block-diagonal recurrent weights, layer 0
#   per layer l>=1: wih_yf (H,8H) bf16   rows fed by the fwd-direction input
#                   wih_yb (H,8H) bf16   rows fed by the bwd-direction input
#                   b      (1,8H) f32    b_ih + b_hh, packed columns
#                   whh    (2H,8H) bf16  block-diagonal recurrent weights
#   fc: w1 (2H,64) bf16, b1 (1,64) f32, w2 (64,32) bf16, b2 (1,32) f32,
#       w3 (32,C)  bf16, b3 (1,C)  f32
#   out_ref (B,C) f32
# ----------------------------------------------------------------------------
def _fused_bilstm_model_kernel(*refs, num_layers, H):
    xp0_ref, lens_ref = refs[0], refs[1]
    whh_refs = [refs[2]]
    inter = []                       # (wih_yf, wih_yb, b) for layers >= 1
    idx = 3
    for _ in range(num_layers - 1):
        inter.append(refs[idx:idx + 3])
        whh_refs.append(refs[idx + 3])
        idx += 4
    fw1, fb1, fw2, fb2, fw3, fb3 = refs[idx:idx + 6]
    o_ref = refs[idx + 6]

    f32 = jnp.float32
    bf16 = jnp.bfloat16
    T, B, _ = xp0_ref.shape
    H2, H6, H8 = 2 * H, 6 * H, 8 * H

    lens = lens_ref[...]                                        # (B,1) int32

    # ---- hoisted, recurrence-independent precomputes (off the serial chain) -
    lane2h = jax.lax.broadcasted_iota(jnp.int32, (B, H2), 1)    # lane index
    fwd_lane2h = lane2h < H                                     # (B,2H) bool

    lane8h = jax.lax.broadcasted_iota(jnp.int32, (B, H8), 1)
    bwd_lane8h = lane8h >= 7 * H                                # odd H-blocks
    for k in range(3):
        lo, hi = (2 * k + 1) * H, (2 * k + 2) * H
        bwd_lane8h = bwd_lane8h | ((lane8h >= lo) & (lane8h < hi))

    # packed-sequence validity per fused step s: fwd half compares against t=s,
    # bwd half against t=T-1-s (both directions iterate interleaved in one
    # fused step). Built ONCE and shared by every layer.
    valid = []
    for s in range(T):
        step_t = jnp.where(fwd_lane2h, s, T - 1 - s)            # (B,2H) i32
        valid.append(lens > step_t)                             # (B,2H) bool

    def run_layer(xp_steps, whh_ref, nxt):
        """One fused fwd+bwd bi-LSTM layer, fully unrolled over time.

        xp_steps[s]: (B,8H) gate pre-activations, fwd columns at time s and
        bwd columns at time T-1-s. Returns final [h_fwd|h_bwd] (B,2H) and,
        if nxt is not None, the time-fused xp list for the next layer.
        """
        whh = whh_ref[...]                                      # (2H,8H) bf16
        if nxt is not None:
            nxt_w_yf = nxt[0][...]                              # (H,8H) bf16
            nxt_w_yb = nxt[1][...]                              # (H,8H) bf16
            nxt_b = nxt[2][...]                                 # (1,8H) f32

        # NOTE: packed-sequence semantics of the *backward* direction rely on
        # hc/cc starting at exactly zero and being frozen through invalid
        # (t >= len) steps, so the effective backward start is t = len-1.
        # Do not change this initial state without revisiting the masking.
        hc = jnp.zeros((B, H2), f32)        # [h_fwd | h_bwd]
        cc = jnp.zeros((B, H2), f32)        # [c_fwd | c_bwd]
        xf = [None] * T                     # next-layer contribution from y_fwd(t)
        xb = [None] * T                     # next-layer contribution from y_bwd(t)

        for s in range(T):
            # One block-diagonal bf16 matmul drives all 8 gate blocks of both
            # directions; f32 accumulation.
            g = xp_steps[s] + jnp.dot(hc.astype(bf16), whh,
                                      preferred_element_type=f32)   # (B,8H)
            sg = jax.nn.sigmoid(g[:, 0:H6])        # [i | f | o], fwd|bwd pairs
            u = jnp.tanh(g[:, H6:H8])              # [g_fwd | g_bwd]
            i_g = sg[:, 0:H2]
            f_g = sg[:, H2:2 * H2]
            o_g = sg[:, 2 * H2:3 * H2]
            cc_new = f_g * cc + i_g * u
            hc_new = o_g * jnp.tanh(cc_new)

            v = valid[s]
            hc = jnp.where(v, hc_new, hc)          # freeze state past length
            cc = jnp.where(v, cc_new, cc)

            if nxt is not None:
                y = jnp.where(v, hc_new, 0.0)      # masked layer output
                # Feed the next layer's input projection as soon as each half
                # is available -> overlaps the latency-bound recurrence.
                xf[s] = jnp.dot(y[:, 0:H].astype(bf16), nxt_w_yf,
                                preferred_element_type=f32)
                xb[T - 1 - s] = jnp.dot(y[:, H:H2].astype(bf16), nxt_w_yb,
                                        preferred_element_type=f32)

        if nxt is None:
            return hc, None
        nxt_xp = [xf[t] + xb[t] + nxt_b for t in range(T)]       # time t order
        # time-fuse for the next layer's interleaved fwd/bwd iteration
        nxt_steps = [jnp.where(bwd_lane8h, nxt_xp[T - 1 - s], nxt_xp[s])
                     for s in range(T)]
        return hc, nxt_steps

    xp_steps = [xp0_ref[s] for s in range(T)]
    hc = None
    for li in range(num_layers):
        nxt = inter[li] if li < num_layers - 1 else None
        hc, xp_steps = run_layer(xp_steps, whh_refs[li], nxt)
        # TODO(synk): inter-layer LSTM dropout is stochastic; identity here.

    # hc == [h_fwd_last | h_bwd_last] == torch.cat((hidden[-2], hidden[-1]), 1)
    y = jnp.maximum(jnp.dot(hc.astype(bf16), fw1[...],
                            preferred_element_type=f32) + fb1[...], 0.0)
    # TODO(synk): F.dropout(p=0.2) is stochastic; identity (inference).
    y = jnp.maximum(jnp.dot(y.astype(bf16), fw2[...],
                            preferred_element_type=f32) + fb2[...], 0.0)
    y = jnp.dot(y.astype(bf16), fw3[...], preferred_element_type=f32) + fb3[...]
    o_ref[...] = jax.nn.sigmoid(y)


# ----------------------------------------------------------------------------
# Full model forward. The embedding gather + the layer-0 projection fold are
# glue outside the kernel; everything else is one pallas_call.
# ----------------------------------------------------------------------------
def lstm_model_forward(text, text_len, params):
    B, T = text.shape
    lstm = params["lstm"]
    H = lstm[0]["whh"].shape[0] // 2
    fc = params["fc"]
    C = fc["w3"].shape[1]

    # Layer-0 input projection folded into the embedding table (exact algebra:
    # gather(emb) @ W + b == gather(emb @ W + b)); the kernel never sees the
    # (T,B,E) embeddings nor runs the (T*B,E)@(E,8H) matmul.
    tbl = jnp.dot(params["embedding"].astype(jnp.bfloat16), lstm[0]["wih"],
                  preferred_element_type=jnp.float32) + lstm[0]["b"]   # (V,8H)
    xp0 = jnp.take(tbl, text, axis=0)                  # (B,T,8H)
    xp0 = jnp.transpose(xp0, (1, 0, 2))                # (T,B,8H) time-major
    # Time-fuse: fwd gate columns keep time t, bwd gate columns take time T-1-t
    # (the kernel iterates both directions interleaved in one fused step).
    col = jnp.arange(8 * H)
    bwd_cols = ((col // H) % 2 == 1).reshape(1, 1, 8 * H)
    xp0_fused = jnp.where(bwd_cols, xp0[::-1], xp0)

    lens2d = text_len.astype(jnp.int32).reshape(B, 1)

    args = [xp0_fused, lens2d, lstm[0]["whh"]]
    for lp in lstm[1:]:
        args += [lp["wih_yf"], lp["wih_yb"], lp["b"], lp["whh"]]
    args += [fc["w1"], fc["b1"], fc["w2"], fc["b2"], fc["w3"], fc["b3"]]

    kernel = functools.partial(_fused_bilstm_model_kernel,
                               num_layers=len(lstm), H=H)
    # Gridless & VMEM-resident (~0.5 MB total). On v7x a batch grid /
    # core_map would be added only if B grows beyond a single tile.
    return pl.pallas_call(
        kernel,
        out_shape=jax.ShapeDtypeStruct((B, C), jnp.float32),
        in_specs=[pl.BlockSpec(memory_space=pltpu.MemorySpace.VMEM)] * len(args),
        out_specs=pl.BlockSpec(memory_space=pltpu.MemorySpace.VMEM),
    )(*args)


# ----------------------------------------------------------------------------
# Parameters: PyTorch-layout weights (gate order i,f,g,o per direction, stored
# pre-transposed to (in, 4H)) + packer into the kernel layout described above.
# ----------------------------------------------------------------------------
def init_torch_style_params(key, vocab_size, emb_size, hidden_size, num_layers,
                            num_classes):
    H = hidden_size
    keys = iter(jax.random.split(key, 1 + 8 * num_layers + 6))
    scale = 0.1

    def mat(shape):
        return scale * jax.random.normal(next(keys), shape, dtype=jnp.float32)

    p = {"embedding": mat((vocab_size, emb_size)), "lstm": [], "fc": {}}
    for layer in range(num_layers):
        din = emb_size if layer == 0 else 2 * H
        p["lstm"].append({
            "wih_f": mat((din, 4 * H)), "wih_b": mat((din, 4 * H)),  # W_ih^T
            "whh_f": mat((H, 4 * H)),   "whh_b": mat((H, 4 * H)),    # W_hh^T
            "b_f": mat((1, 4 * H)) + mat((1, 4 * H)),   # b_ih + b_hh
            "b_b": mat((1, 4 * H)) + mat((1, 4 * H)),
        })
    p["fc"] = {"w1": mat((2 * H, 64)), "b1": mat((1, 64)),
               "w2": mat((64, 32)),    "b2": mat((1, 32)),
               "w3": mat((32, num_classes)), "b3": mat((1, num_classes))}
    return p


def _pack_gate_cols(wf, wb):
    """PyTorch gate cols [i,f,g,o] per direction -> kernel layout
    [i_f,i_b | f_f,f_b | o_f,o_b | g_f,g_b] (sigmoid gates first, tanh last)."""
    H = wf.shape[-1] // 4
    i_f, f_f, g_f, o_f = (wf[..., k * H:(k + 1) * H] for k in range(4))
    i_b, f_b, g_b, o_b = (wb[..., k * H:(k + 1) * H] for k in range(4))
    return jnp.concatenate([i_f, i_b, f_f, f_b, o_f, o_b, g_f, g_b], axis=-1)


def pack_params(tp):
    """Convert PyTorch-layout params into the kernel's packed bf16 layout."""
    H = tp["lstm"][0]["whh_f"].shape[0]
    bf16 = jnp.bfloat16
    packed = {"embedding": tp["embedding"], "lstm": [], "fc": {}}
    z = jnp.zeros((H, 4 * H), jnp.float32)
    for li, lp in enumerate(tp["lstm"]):
        wih = _pack_gate_cols(lp["wih_f"], lp["wih_b"])            # (Din, 8H)
        b = _pack_gate_cols(lp["b_f"], lp["b_b"])                  # (1, 8H)
        whh = jnp.concatenate([_pack_gate_cols(lp["whh_f"], z),    # block-diag
                               _pack_gate_cols(z, lp["whh_b"])], axis=0)
        entry = {"b": b, "whh": whh.astype(bf16)}
        if li == 0:
            entry["wih"] = wih.astype(bf16)     # folded into embedding outside
        else:
            entry["wih_yf"] = wih[:H].astype(bf16)    # rows fed by y_fwd
            entry["wih_yb"] = wih[H:].astype(bf16)    # rows fed by y_bwd
        packed["lstm"].append(entry)
    fc = tp["fc"]
    packed["fc"] = {"w1": fc["w1"].astype(bf16), "b1": fc["b1"],
                    "w2": fc["w2"].astype(bf16), "b2": fc["b2"],
                    "w3": fc["w3"].astype(bf16), "b3": fc["b3"]}
    return packed


# ----------------------------------------------------------------------------
# Pure-JAX f32 reference mirroring the PyTorch module's forward (for checking).
# ----------------------------------------------------------------------------
def lstm_reference_forward(text, text_len, tp):
    H = tp["lstm"][0]["whh_f"].shape[0]
    x = jnp.transpose(jnp.take(tp["embedding"], text, axis=0), (1, 0, 2))
    T, B, _ = x.shape
    lens = text_len.astype(jnp.int32)

    def run_direction(seq, wih, whh, b, reverse):
        h = jnp.zeros((B, H), jnp.float32)
        c = jnp.zeros((B, H), jnp.float32)
        ys = [None] * T
        order = range(T - 1, -1, -1) if reverse else range(T)
        for t in order:
            g = seq[t] @ wih + b + h @ whh                    # gates i,f,g,o
            i = jax.nn.sigmoid(g[:, 0:H])
            f = jax.nn.sigmoid(g[:, H:2 * H])
            u = jnp.tanh(g[:, 2 * H:3 * H])
            o = jax.nn.sigmoid(g[:, 3 * H:4 * H])
            c_new = f * c + i * u
            h_new = o * jnp.tanh(c_new)
            v = (lens > t)[:, None]
            h = jnp.where(v, h_new, h)
            c = jnp.where(v, c_new, c)
            ys[t] = jnp.where(v, h_new, 0.0)
        return jnp.stack(ys, axis=0), h

    inp = x
    h_f = h_b = None
    for lp in tp["lstm"]:
        y_f, h_f = run_direction(inp, lp["wih_f"], lp["whh_f"], lp["b_f"], False)
        y_b, h_b = run_direction(inp, lp["wih_b"], lp["whh_b"], lp["b_b"], True)
        inp = jnp.concatenate([y_f, y_b], axis=-1)

    fc = tp["fc"]
    y = jnp.concatenate([h_f, h_b], axis=-1)
    y = jax.nn.relu(y @ fc["w1"] + fc["b1"])
    y = jax.nn.relu(y @ fc["w2"] + fc["b2"])
    return jax.nn.sigmoid(y @ fc["w3"] + fc["b3"])


if __name__ == "__main__":
    vocab_size = 50
    emb_size = 32
    hidden_size = 32
    num_layers = 2
    num_classes = 3
    B, T = 8, 10

    key = jax.random.PRNGKey(0)
    k_param, k_text = jax.random.split(key)

    torch_params = init_torch_style_params(k_param, vocab_size, emb_size,
                                           hidden_size, num_layers, num_classes)
    params = pack_params(torch_params)

    text = jax.random.randint(k_text, (B, T), 0, vocab_size, dtype=jnp.int32)
    # lengths sorted descending (>=1), as pack_padded_sequence expects.
    text_len = jnp.array([10, 9, 8, 7, 6, 5, 3, 2], dtype=jnp.int32)

    out = jax.jit(lstm_model_forward)(text, text_len, params)
    out = jax.block_until_ready(out)
    assert out.shape == (B, num_classes)
    assert bool(jnp.all(jnp.isfinite(out)))

    ref = lstm_reference_forward(text, text_len, torch_params)
    assert bool(jnp.allclose(out, ref, atol=2e-2)), float(
        jnp.max(jnp.abs(out - ref)))

    print("KERNEL_OK")
</pallas_src>

<mosaic_0001>
module attributes {stable_mosaic.version = 11 : i64} {
  func.func @_fused_bilstm_model_kernel(%arg0: memref<10x8x256xf32, #tpu.memory_space<vmem>>, %arg1: memref<8x1xi32, #tpu.memory_space<vmem>>, %arg2: memref<64x256xbf16, #tpu.memory_space<vmem>>, %arg3: memref<32x256xbf16, #tpu.memory_space<vmem>>, %arg4: memref<32x256xbf16, #tpu.memory_space<vmem>>, %arg5: memref<1x256xf32, #tpu.memory_space<vmem>>, %arg6: memref<64x256xbf16, #tpu.memory_space<vmem>>, %arg7: memref<64x64xbf16, #tpu.memory_space<vmem>>, %arg8: memref<1x64xf32, #tpu.memory_space<vmem>>, %arg9: memref<64x32xbf16, #tpu.memory_space<vmem>>, %arg10: memref<1x32xf32, #tpu.memory_space<vmem>>, %arg11: memref<32x3xbf16, #tpu.memory_space<vmem>>, %arg12: memref<1x3xf32, #tpu.memory_space<vmem>>, %arg13: memref<8x3xf32, #tpu.memory_space<vmem>>) attributes {dimension_semantics = [], scalar_prefetch = 0 : i64, scratch_operands = 0 : i64, tpu.core_type = #tpu.core_type<tc>} {
    %c0 = arith.constant 0 : index
    %c0_0 = arith.constant 0 : index
    %0 = vector.load %arg1[%c0, %c0_0] : memref<8x1xi32, #tpu.memory_space<vmem>>, vector<8x1xi32>
    %1 = tpu.iota {dimensions = array<i32: 1>} : vector<8x64xi32>
    %c32_i32 = arith.constant 32 : i32
    %2 = vector.broadcast %c32_i32 : i32 to vector<8x64xi32>
    %3 = arith.cmpi slt, %1, %2 : vector<8x64xi32>
    %4 = tpu.iota {dimensions = array<i32: 1>} : vector<8x256xi32>
    %c224_i32 = arith.constant 224 : i32
    %5 = vector.broadcast %c224_i32 : i32 to vector<8x256xi32>
    %6 = arith.cmpi sge, %4, %5 : vector<8x256xi32>
    %c32_i32_1 = arith.constant 32 : i32
    %7 = vector.broadcast %c32_i32_1 : i32 to vector<8x256xi32>
    %8 = arith.cmpi sge, %4, %7 : vector<8x256xi32>
    %c64_i32 = arith.constant 64 : i32
    %9 = vector.broadcast %c64_i32 : i32 to vector<8x256xi32>
    %10 = arith.cmpi slt, %4, %9 : vector<8x256xi32>
    %11 = arith.andi %8, %10 : vector<8x256xi1>
    %12 = arith.ori %6, %11 : vector<8x256xi1>
    %c96_i32 = arith.constant 96 : i32
    %13 = vector.broadcast %c96_i32 : i32 to vector<8x256xi32>
    %14 = arith.cmpi sge, %4, %13 : vector<8x256xi32>
    %c128_i32 = arith.constant 128 : i32
    %15 = vector.broadcast %c128_i32 : i32 to vector<8x256xi32>
    %16 = arith.cmpi slt, %4, %15 : vector<8x256xi32>
    %17 = arith.andi %14, %16 : vector<8x256xi1>
    %18 = arith.ori %12, %17 : vector<8x256xi1>
    %c160_i32 = arith.constant 160 : i32
    %19 = vector.broadcast %c160_i32 : i32 to vector<8x256xi32>
    %20 = arith.cmpi sge, %4, %19 : vector<8x256xi32>
    %c192_i32 = arith.constant 192 : i32
    %21 = vector.broadcast %c192_i32 : i32 to vector<8x256xi32>
    %22 = arith.cmpi slt, %4, %21 : vector<8x256xi32>
    %23 = arith.andi %20, %22 : vector<8x256xi1>
    %24 = arith.ori %18, %23 : vector<8x256xi1>
    %c0_i32 = arith.constant 0 : i32
    %c9_i32 = arith.constant 9 : i32
    %25 = vector.broadcast %c0_i32 : i32 to vector<8x64xi32>
    %26 = vector.broadcast %c9_i32 : i32 to vector<8x64xi32>
    %27 = arith.select %3, %25, %26 : vector<8x64xi1>, vector<8x64xi32>
    %28 = vector.broadcast %0 : vector<8x1xi32> to vector<8x64xi32>
    %29 = arith.cmpi sgt, %28, %27 : vector<8x64xi32>
    %c1_i32 = arith.constant 1 : i32
    %c8_i32 = arith.constant 8 : i32
    %30 = vector.broadcast %c1_i32 : i32 to vector<8x64xi32>
    %31 = vector.broadcast %c8_i32 : i32 to vector<8x64xi32>
    %32 = arith.select %3, %30, %31 : vector<8x64xi1>, vector<8x64xi32>
    %33 = vector.broadcast %0 : vector<8x1xi32> to vector<8x64xi32>
    %34 = arith.cmpi sgt, %33, %32 : vector<8x64xi32>
    %c2_i32 = arith.constant 2 : i32
    %c7_i32 = arith.constant 7 : i32
    %35 = vector.broadcast %c2_i32 : i32 to vector<8x64xi32>
    %36 = vector.broadcast %c7_i32 : i32 to vector<8x64xi32>
    %37 = arith.select %3, %35, %36 : vector<8x64xi1>, vector<8x64xi32>
    %38 = vector.broadcast %0 : vector<8x1xi32> to vector<8x64xi32>
    %39 = arith.cmpi sgt, %38, %37 : vector<8x64xi32>
    %c3_i32 = arith.constant 3 : i32
    %c6_i32 = arith.constant 6 : i32
    %40 = vector.broadcast %c3_i32 : i32 to vector<8x64xi32>
    %41 = vector.broadcast %c6_i32 : i32 to vector<8x64xi32>
    %42 = arith.select %3, %40, %41 : vector<8x64xi1>, vector<8x64xi32>
    %43 = vector.broadcast %0 : vector<8x1xi32> to vector<8x64xi32>
    %44 = arith.cmpi sgt, %43, %42 : vector<8x64xi32>
    %c4_i32 = arith.constant 4 : i32
    %c5_i32 = arith.constant 5 : i32
    %45 = vector.broadcast %c4_i32 : i32 to vector<8x64xi32>
    %46 = vector.broadcast %c5_i32 : i32 to vector<8x64xi32>
    %47 = arith.select %3, %45, %46 : vector<8x64xi1>, vector<8x64xi32>
    %48 = vector.broadcast %0 : vector<8x1xi32> to vector<8x64xi32>
    %49 = arith.cmpi sgt, %48, %47 : vector<8x64xi32>
    %c5_i32_2 = arith.constant 5 : i32
    %c4_i32_3 = arith.constant 4 : i32
    %50 = vector.broadcast %c5_i32_2 : i32 to vector<8x64xi32>
    %51 = vector.broadcast %c4_i32_3 : i32 to vector<8x64xi32>
    %52 = arith.select %3, %50, %51 : vector<8x64xi1>, vector<8x64xi32>
    %53 = vector.broadcast %0 : vector<8x1xi32> to vector<8x64xi32>
    %54 = arith.cmpi sgt, %53, %52 : vector<8x64xi32>
    %c6_i32_4 = arith.constant 6 : i32
    %c3_i32_5 = arith.constant 3 : i32
    %55 = vector.broadcast %c6_i32_4 : i32 to vector<8x64xi32>
    %56 = vector.broadcast %c3_i32_5 : i32 to vector<8x64xi32>
    %57 = arith.select %3, %55, %56 : vector<8x64xi1>, vector<8x64xi32>
    %58 = vector.broadcast %0 : vector<8x1xi32> to vector<8x64xi32>
    %59 = arith.cmpi sgt, %58, %57 : vector<8x64xi32>
    %c7_i32_6 = arith.constant 7 : i32
    %c2_i32_7 = arith.constant 2 : i32
    %60 = vector.broadcast %c7_i32_6 : i32 to vector<8x64xi32>
    %61 = vector.broadcast %c2_i32_7 : i32 to vector<8x64xi32>
    %62 = arith.select %3, %60, %61 : vector<8x64xi1>, vector<8x64xi32>
    %63 = vector.broadcast %0 : vector<8x1xi32> to vector<8x64xi32>
    %64 = arith.cmpi sgt, %63, %62 : vector<8x64xi32>
    %c8_i32_8 = arith.constant 8 : i32
    %c1_i32_9 = arith.constant 1 : i32
    %65 = vector.broadcast %c8_i32_8 : i32 to vector<8x64xi32>
    %66 = vector.broadcast %c1_i32_9 : i32 to vector<8x64xi32>
    %67 = arith.select %3, %65, %66 : vector<8x64xi1>, vector<8x64xi32>
    %68 = vector.broadcast %0 : vector<8x1xi32> to vector<8x64xi32>
    %69 = arith.cmpi sgt, %68, %67 : vector<8x64xi32>
    %c9_i32_10 = arith.constant 9 : i32
    %c0_i32_11 = arith.constant 0 : i32
    %70 = vector.broadcast %c9_i32_10 : i32 to vector<8x64xi32>
    %71 = vector.broadcast %c0_i32_11 : i32 to vector<8x64xi32>
    %72 = arith.select %3, %70, %71 : vector<8x64xi1>, vector<8x64xi32>
    %73 = vector.broadcast %0 : vector<8x1xi32> to vector<8x64xi32>
    %74 = arith.cmpi sgt, %73, %72 : vector<8x64xi32>
    %c0_12 = arith.constant 0 : index
    %c0_13 = arith.constant 0 : index
    %c0_14 = arith.constant 0 : index
    %75 = vector.load %arg0[%c0_12, %c0_13, %c0_14] : memref<10x8x256xf32, #tpu.memory_space<vmem>>, vector<1x8x256xf32>
    %76 = vector.shape_cast %75 : vector<1x8x256xf32> to vector<8x256xf32>
    %c1 = arith.constant 1 : index
    %c0_15 = arith.constant 0 : index
    %c0_16 = arith.constant 0 : index
    %77 = vector.load %arg0[%c1, %c0_15, %c0_16] : memref<10x8x256xf32, #tpu.memory_space<vmem>>, vector<1x8x256xf32>
    %78 = vector.shape_cast %77 : vector<1x8x256xf32> to vector<8x256xf32>
    %c2 = arith.constant 2 : index
    %c0_17 = arith.constant 0 : index
    %c0_18 = arith.constant 0 : index
    %79 = vector.load %arg0[%c2, %c0_17, %c0_18] : memref<10x8x256xf32, #tpu.memory_space<vmem>>, vector<1x8x256xf32>
    %80 = vector.shape_cast %79 : vector<1x8x256xf32> to vector<8x256xf32>
    %c3 = arith.constant 3 : index
    %c0_19 = arith.constant 0 : index
    %c0_20 = arith.constant 0 : index
    %81 = vector.load %arg0[%c3, %c0_19, %c0_20] : memref<10x8x256xf32, #tpu.memory_space<vmem>>, vector<1x8x256xf32>
    %82 = vector.shape_cast %81 : vector<1x8x256xf32> to vector<8x256xf32>
    %c4 = arith.constant 4 : index
    %c0_21 = arith.constant 0 : index
    %c0_22 = arith.constant 0 : index
    %83 = vector.load %arg0[%c4, %c0_21, %c0_22] : memref<10x8x256xf32, #tpu.memory_space<vmem>>, vector<1x8x256xf32>
    %84 = vector.shape_cast %83 : vector<1x8x256xf32> to vector<8x256xf32>
    %c5 = arith.constant 5 : index
    %c0_23 = arith.constant 0 : index
    %c0_24 = arith.constant 0 : index
    %85 = vector.load %arg0[%c5, %c0_23, %c0_24] : memref<10x8x256xf32, #tpu.memory_space<vmem>>, vector<1x8x256xf32>
    %86 = vector.shape_cast %85 : vector<1x8x256xf32> to vector<8x256xf32>
    %c6 = arith.constant 6 : index
    %c0_25 = arith.constant 0 : index
    %c0_26 = arith.constant 0 : index
    %87 = vector.load %arg0[%c6, %c0_25, %c0_26] : memref<10x8x256xf32, #tpu.memory_space<vmem>>, vector<1x8x256xf32>
    %88 = vector.shape_cast %87 : vector<1x8x256xf32> to vector<8x256xf32>
    %c7 = arith.constant 7 : index
    %c0_27 = arith.constant 0 : index
    %c0_28 = arith.constant 0 : index
    %89 = vector.load %arg0[%c7, %c0_27, %c0_28] : memref<10x8x256xf32, #tpu.memory_space<vmem>>, vector<1x8x256xf32>
    %90 = vector.shape_cast %89 : vector<1x8x256xf32> to vector<8x256xf32>
    %c8 = arith.constant 8 : index
    %c0_29 = arith.constant 0 : index
    %c0_30 = arith.constant 0 : index
    %91 = vector.load %arg0[%c8, %c0_29, %c0_30] : memref<10x8x256xf32, #tpu.memory_space<vmem>>, vector<1x8x256xf32>
    %92 = vector.shape_cast %91 : vector<1x8x256xf32> to vector<8x256xf32>
    %c9 = arith.constant 9 : index
    %c0_31 = arith.constant 0 : index
    %c0_32 = arith.constant 0 : index
    %93 = vector.load %arg0[%c9, %c0_31, %c0_32] : memref<10x8x256xf32, #tpu.memory_space<vmem>>, vector<1x8x256xf32>
    %94 = vector.shape_cast %93 : vector<1x8x256xf32> to vector<8x256xf32>
    %c0_33 = arith.constant 0 : index
    %c0_34 = arith.constant 0 : index
    %95 = vector.load %arg2[%c0_33, %c0_34] : memref<64x256xbf16, #tpu.memory_space<vmem>>, vector<64x256xbf16>
    %c0_35 = arith.constant 0 : index
    %c0_36 = arith.constant 0 : index
    %96 = vector.load %arg3[%c0_35, %c0_36] : memref<32x256xbf16, #tpu.memory_space<vmem>>, vector<32x256xbf16>
    %c0_37 = arith.constant 0 : index
    %c0_38 = arith.constant 0 : index
    %97 = vector.load %arg4[%c0_37, %c0_38] : memref<32x256xbf16, #tpu.memory_space<vmem>>, vector<32x256xbf16>
    %c0_39 = arith.constant 0 : index
    %c0_40 = arith.constant 0 : index
    %98 = vector.load %arg5[%c0_39, %c0_40] : memref<1x256xf32, #tpu.memory_space<vmem>>, vector<1x256xf32>
    %cst = arith.constant 0.000000e+00 : f32
    %99 = vector.broadcast %cst : f32 to vector<8x64xf32>
    %cst_41 = arith.constant 0.000000e+00 : f32
    %100 = vector.broadcast %cst_41 : f32 to vector<8x64xf32>
    %101 = arith.truncf %99 : vector<8x64xf32> to vector<8x64xbf16>
    %cst_42 = arith.constant dense<0.000000e+00> : vector<8x256xf32>
    %102 = tpu.matmul %101, %95, %cst_42 {dimension_numbers = #tpu.dot_dimension_numbers<[1], [0], [0], [1], [0, 0, 1, 1], [], []>} : vector<8x64xbf16>, vector<64x256xbf16>, vector<8x256xf32> -> vector<8x256xf32>
    %103 = arith.addf %76, %102 : vector<8x256xf32>
    %104 = vector.extract_strided_slice %103 {offsets = [0, 0], sizes = [8, 192], strides = [1, 1]} : vector<8x256xf32> to vector<8x192xf32>
    %105 = arith.negf %104 : vector<8x192xf32>
    %106 = math.exp %105 : vector<8x192xf32>
    %cst_43 = arith.constant 1.000000e+00 : f32
    %107 = vector.broadcast %cst_43 : f32 to vector<8x192xf32>
    %108 = arith.addf %107, %106 : vector<8x192xf32>
    %109 = arith.divf %107, %108 : vector<8x192xf32>
    %110 = vector.extract_strided_slice %103 {offsets = [0, 192], sizes = [8, 64], strides = [1, 1]} : vector<8x256xf32> to vector<8x64xf32>
    %111 = math.tanh %110 : vector<8x64xf32>
    %112 = vector.extract_strided_slice %109 {offsets = [0, 0], sizes = [8, 64], strides = [1, 1]} : vector<8x192xf32> to vector<8x64xf32>
    %113 = vector.extract_strided_slice %109 {offsets = [0, 64], sizes = [8, 64], strides = [1, 1]} : vector<8x192xf32> to vector<8x64xf32>
    %114 = vector.extract_strided_slice %109 {offsets = [0, 128], sizes = [8, 64], strides = [1, 1]} : vector<8x192xf32> to vector<8x64xf32>
    %115 = arith.mulf %113, %100 : vector<8x64xf32>
    %116 = arith.mulf %112, %111 : vector<8x64xf32>
    %117 = arith.addf %115, %116 : vector<8x64xf32>
    %118 = math.tanh %117 : vector<8x64xf32>
    %119 = arith.mulf %114, %118 : vector<8x64xf32>
    %120 = arith.select %29, %119, %99 : vector<8x64xi1>, vector<8x64xf32>
    %121 = arith.select %29, %117, %100 : vector<8x64xi1>, vector<8x64xf32>
    %cst_44 = arith.constant 0.000000e+00 : f32
    %122 = vector.broadcast %cst_44 : f32 to vector<8x64xf32>
    %123 = arith.select %29, %119, %122 : vector<8x64xi1>, vector<8x64xf32>
    %124 = vector.extract_strided_slice %123 {offsets = [0, 0], sizes = [8, 32], strides = [1, 1]} : vector<8x64xf32> to vector<8x32xf32>
    %125 = arith.truncf %124 : vector<8x32xf32> to vector<8x32xbf16>
    %cst_45 = arith.constant dense<0.000000e+00> : vector<8x256xf32>
    %126 = tpu.matmul %125, %96, %cst_45 {dimension_numbers = #tpu.dot_dimension_numbers<[1], [0], [0], [1], [0, 0, 1, 1], [], []>} : vector<8x32xbf16>, vector<32x256xbf16>, vector<8x256xf32> -> vector<8x256xf32>
    %127 = vector.extract_strided_slice %123 {offsets = [0, 32], sizes = [8, 32], strides = [1, 1]} : vector<8x64xf32> to vector<8x32xf32>
    %128 = arith.truncf %127 : vector<8x32xf32> to vector<8x32xbf16>
    %cst_46 = arith.constant dense<0.000000e+00> : vector<8x256xf32>
    %129 = tpu.matmul %128, %97, %cst_46 {dimension_numbers = #tpu.dot_dimension_numbers<[1], [0], [0], [1], [0, 0, 1, 1], [], []>} : vector<8x32xbf16>, vector<32x256xbf16>, vector<8x256xf32> -> vector<8x256xf32>
    %130 = arith.truncf %120 : vector<8x64xf32> to vector<8x64xbf16>
    %cst_47 = arith.constant dense<0.000000e+00> : vector<8x256xf32>
    %131 = tpu.matmul %130, %95, %cst_47 {dimension_numbers = #tpu.dot_dimension_numbers<[1], [0], [0], [1], [0, 0, 1, 1], [], []>} : vector<8x64xbf16>, vector<64x256xbf16>, vector<8x256xf32> -> vector<8x256xf32>
    %132 = arith.addf %78, %131 : vector<8x256xf32>
    %133 = vector.extract_strided_slice %132 {offsets = [0, 0], sizes = [8, 192], strides = [1, 1]} : vector<8x256xf32> to vector<8x192xf32>
    %134 = arith.negf %133 : vector<8x192xf32>
    %135 = math.exp %134 : vector<8x192xf32>
    %cst_48 = arith.constant 1.000000e+00 : f32
    %136 = vector.broadcast %cst_48 : f32 to vector<8x192xf32>
    %137 = arith.addf %136, %135 : vector<8x192xf32>
    %138 = arith.divf %136, %137 : vector<8x192xf32>
    %139 = vector.extract_strided_slice %132 {offsets = [0, 192], sizes = [8, 64], strides = [1, 1]} : vector<8x256xf32> to vector<8x64xf32>
    %140 = math.tanh %139 : vector<8x64xf32>
    %141 = vector.extract_strided_slice %138 {offsets = [0, 0], sizes = [8, 64], strides = [1, 1]} : vector<8x192xf32> to vector<8x64xf32>
    %142 = vector.extract_strided_slice %138 {offsets = [0, 64], sizes = [8, 64], strides = [1, 1]} : vector<8x192xf32> to vector<8x64xf32>
    %143 = vector.extract_strided_slice %138 {offsets = [0, 128], sizes = [8, 64], strides = [1, 1]} : vector<8x192xf32> to vector<8x64xf32>
    %144 = arith.mulf %142, %121 : vector<8x64xf32>
    %145 = arith.mulf %141, %140 : vector<8x64xf32>
    %146 = arith.addf %144, %145 : vector<8x64xf32>
    %147 = math.tanh %146 : vector<8x64xf32>
    %148 = arith.mulf %143, %147 : vector<8x64xf32>
    %149 = arith.select %34, %148, %120 : vector<8x64xi1>, vector<8x64xf32>
    %150 = arith.select %34, %146, %121 : vector<8x64xi1>, vector<8x64xf32>
    %cst_49 = arith.constant 0.000000e+00 : f32
    %151 = vector.broadcast %cst_49 : f32 to vector<8x64xf32>
    %152 = arith.select %34, %148, %151 : vector<8x64xi1>, vector<8x64xf32>
    %153 = vector.extract_strided_slice %152 {offsets = [0, 0], sizes = [8, 32], strides = [1, 1]} : vector<8x64xf32> to vector<8x32xf32>
    %154 = arith.truncf %153 : vector<8x32xf32> to vector<8x32xbf16>
    %cst_50 = arith.constant dense<0.000000e+00> : vector<8x256xf32>
    %155 = tpu.matmul %154, %96, %cst_50 {dimension_numbers = #tpu.dot_dimension_numbers<[1], [0], [0], [1], [0, 0, 1, 1], [], []>} : vector<8x32xbf16>, vector<32x256xbf16>, vector<8x256xf32> -> vector<8x256xf32>
    %156 = vector.extract_strided_slice %152 {offsets = [0, 32], sizes = [8, 32], strides = [1, 1]} : vector<8x64xf32> to vector<8x32xf32>
    %157 = arith.truncf %156 : vector<8x32xf32> to vector<8x32xbf16>
    %cst_51 = arith.constant dense<0.000000e+00> : vector<8x256xf32>
    %158 = tpu.matmul %157, %97, %cst_51 {dimension_numbers = #tpu.dot_dimension_numbers<[1], [0], [0], [1], [0, 0, 1, 1], [], []>} : vector<8x32xbf16>, vector<32x256xbf16>, vector<8x256xf32> -> vector<8x256xf32>
    %159 = arith.truncf %149 : vector<8x64xf32> to vector<8x64xbf16>
    %cst_52 = arith.constant dense<0.000000e+00> : vector<8x256xf32>
    %160 = tpu.matmul %159, %95, %cst_52 {dimension_numbers = #tpu.dot_dimension_numbers<[1], [0], [0], [1], [0, 0, 1, 1], [], []>} : vector<8x64xbf16>, vector<64x256xbf16>, vector<8x256xf32> -> vector<8x256xf32>
    %161 = arith.addf %80, %160 : vector<8x256xf32>
    %162 = vector.extract_strided_slice %161 {offsets = [0, 0], sizes = [8, 192], strides = [1, 1]} : vector<8x256xf32> to vector<8x192xf32>
    %163 = arith.negf %162 : vector<8x192xf32>
    %164 = math.exp %163 : vector<8x192xf32>
    %cst_53 = arith.constant 1.000000e+00 : f32
    %165 = vector.broadcast %cst_53 : f32 to vector<8x192xf32>
    %166 = arith.addf %165, %164 : vector<8x192xf32>
    %167 = arith.divf %165, %166 : vector<8x192xf32>
    %168 = vector.extract_strided_slice %161 {offsets = [0, 192], sizes = [8, 64], strides = [1, 1]} : vector<8x256xf32> to vector<8x64xf32>
    %169 = math.tanh %168 : vector<8x64xf32>
    %170 = vector.extract_strided_slice %167 {offsets = [0, 0], sizes = [8, 64], strides = [1, 1]} : vector<8x192xf32> to vector<8x64xf32>
    %171 = vector.extract_strided_slice %167 {offsets = [0, 64], sizes = [8, 64], strides = [1, 1]} : vector<8x192xf32> to vector<8x64xf32>
    %172 = vector.extract_strided_slice %167 {offsets = [0, 128], sizes = [8, 64], strides = [1, 1]} : vector<8x192xf32> to vector<8x64xf32>
    %173 = arith.mulf %171, %150 : vector<8x64xf32>
    %174 = arith.mulf %170, %169 : vector<8x64xf32>
    %175 = arith.addf %173, %174 : vector<8x64xf32>
    %176 = math.tanh %175 : vector<8x64xf32>
    %177 = arith.mulf %172, %176 : vector<8x64xf32>
    %178 = arith.select %39, %177, %149 : vector<8x64xi1>, vector<8x64xf32>
    %179 = arith.select %39, %175, %150 : vector<8x64xi1>, vector<8x64xf32>
    %cst_54 = arith.constant 0.000000e+00 : f32
    %180 = vector.broadcast %cst_54 : f32 to vector<8x64xf32>
    %181 = arith.select %39, %177, %180 : vector<8x64xi1>, vector<8x64xf32>
    %182 = vector.extract_strided_slice %181 {offsets = [0, 0], sizes = [8, 32], strides = [1, 1]} : vector<8x64xf32> to vector<8x32xf32>
    %183 = arith.truncf %182 : vector<8x32xf32> to vector<8x32xbf16>
    %cst_55 = arith.constant dense<0.000000e+00> : vector<8x256xf32>
    %184 = tpu.matmul %183, %96, %cst_55 {dimension_numbers = #tpu.dot_dimension_numbers<[1], [0], [0], [1], [0, 0, 1, 1], [], []>} : vector<8x32xbf16>, vector<32x256xbf16>, vector<8x256xf32> -> vector<8x256xf32>
    %185 = vector.extract_strided_slice %181 {offsets = [0, 32], sizes = [8, 32], strides = [1, 1]} : vector<8x64xf32> to vector<8x32xf32>
    %186 = arith.truncf %185 : vector<8x32xf32> to vector<8x32xbf16>
    %cst_56 = arith.constant dense<0.000000e+00> : vector<8x256xf32>
    %187 = tpu.matmul %186, %97, %cst_56 {dimension_numbers = #tpu.dot_dimension_numbers<[1], [0], [0], [1], [0, 0, 1, 1], [], []>} : vector<8x32xbf16>, vector<32x256xbf16>, vector<8x256xf32> -> vector<8x256xf32>
    %188 = arith.truncf %178 : vector<8x64xf32> to vector<8x64xbf16>
    %cst_57 = arith.constant dense<0.000000e+00> : vector<8x256xf32>
    %189 = tpu.matmul %188, %95, %cst_57 {dimension_numbers = #tpu.dot_dimension_numbers<[1], [0], [0], [1], [0, 0, 1, 1], [], []>} : vector<8x64xbf16>, vector<64x256xbf16>, vector<8x256xf32> -> vector<8x256xf32>
    %190 = arith.addf %82, %189 : vector<8x256xf32>
    %191 = vector.extract_strided_slice %190 {offsets = [0, 0], sizes = [8, 192], strides = [1, 1]} : vector<8x256xf32> to vector<8x192xf32>
    %192 = arith.negf %191 : vector<8x192xf32>
    %193 = math.exp %192 : vector<8x192xf32>
    %cst_58 = arith.constant 1.000000e+00 : f32
    %194 = vector.broadcast %cst_58 : f32 to vector<8x192xf32>
    %195 = arith.addf %194, %193 : vector<8x192xf32>
    %196 = arith.divf %194, %195 : vector<8x192xf32>
    %197 = vector.extract_strided_slice %190 {offsets = [0, 192], sizes = [8, 64], strides = [1, 1]} : vector<8x256xf32> to vector<8x64xf32>
    %198 = math.tanh %197 : vector<8x64xf32>
    %199 = vector.extract_strided_slice %196 {offsets = [0, 0], sizes = [8, 64], strides = [1, 1]} : vector<8x192xf32> to vector<8x64xf32>
    %200 = vector.extract_strided_slice %196 {offsets = [0, 64], sizes = [8, 64], strides = [1, 1]} : vector<8x192xf32> to vector<8x64xf32>
    %201 = vector.extract_strided_slice %196 {offsets = [0, 128], sizes = [8, 64], strides = [1, 1]} : vector<8x192xf32> to vector<8x64xf32>
    %202 = arith.mulf %200, %179 : vector<8x64xf32>
    %203 = arith.mulf %199, %198 : vector<8x64xf32>
    %204 = arith.addf %202, %203 : vector<8x64xf32>
    %205 = math.tanh %204 : vector<8x64xf32>
    %206 = arith.mulf %201, %205 : vector<8x64xf32>
    %207 = arith.select %44, %206, %178 : vector<8x64xi1>, vector<8x64xf32>
    %208 = arith.select %44, %204, %179 : vector<8x64xi1>, vector<8x64xf32>
    %cst_59 = arith.constant 0.000000e+00 : f32
    %209 = vector.broadcast %cst_59 : f32 to vector<8x64xf32>
    %210 = arith.select %44, %206, %209 : vector<8x64xi1>, vector<8x64xf32>
    %211 = vector.extract_strided_slice %210 {offsets = [0, 0], sizes = [8, 32], strides = [1, 1]} : vector<8x64xf32> to vector<8x32xf32>
    %212 = arith.truncf %211 : vector<8x32xf32> to vector<8x32xbf16>
    %cst_60 = arith.constant dense<0.000000e+00> : vector<8x256xf32>
    %213 = tpu.matmul %212, %96, %cst_60 {dimension_numbers = #tpu.dot_dimension_numbers<[1], [0], [0], [1], [0, 0, 1, 1], [], []>} : vector<8x32xbf16>, vector<32x256xbf16>, vector<8x256xf32> -> vector<8x256xf32>
    %214 = vector.extract_strided_slice %210 {offsets = [0, 32], sizes = [8, 32], strides = [1, 1]} : vector<8x64xf32> to vector<8x32xf32>
    %215 = arith.truncf %214 : vector<8x32xf32> to vector<8x32xbf16>
    %cst_61 = arith.constant dense<0.000000e+00> : vector<8x256xf32>
    %216 = tpu.matmul %215, %97, %cst_61 {dimension_numbers = #tpu.dot_dimension_numbers<[1], [0], [0], [1], [0, 0, 1, 1], [], []>} : vector<8x32xbf16>, vector<32x256xbf16>, vector<8x256xf32> -> vector<8x256xf32>
    %217 = arith.truncf %207 : vector<8x64xf32> to vector<8x64xbf16>
    %cst_62 = arith.constant dense<0.000000e+00> : vector<8x256xf32>
    %218 = tpu.matmul %217, %95, %cst_62 {dimension_numbers = #tpu.dot_dimension_numbers<[1], [0], [0], [1], [0, 0, 1, 1], [], []>} : vector<8x64xbf16>, vector<64x256xbf16>, vector<8x256xf32> -> vector<8x256xf32>
    %219 = arith.addf %84, %218 : vector<8x256xf32>
    %220 = vector.extract_strided_slice %219 {offsets = [0, 0], sizes = [8, 192], strides = [1, 1]} : vector<8x256xf32> to vector<8x192xf32>
    %221 = arith.negf %220 : vector<8x192xf32>
    %222 = math.exp %221 : vector<8x192xf32>
    %cst_63 = arith.constant 1.000000e+00 : f32
    %223 = vector.broadcast %cst_63 : f32 to vector<8x192xf32>
    %224 = arith.addf %223, %222 : vector<8x192xf32>
    %225 = arith.divf %223, %224 : vector<8x192xf32>
    %226 = vector.extract_strided_slice %219 {offsets = [0, 192], sizes = [8, 64], strides = [1, 1]} : vector<8x256xf32> to vector<8x64xf32>
    %227 = math.tanh %226 : vector<8x64xf32>
    %228 = vector.extract_strided_slice %225 {offsets = [0, 0], sizes = [8, 64], strides = [1, 1]} : vector<8x192xf32> to vector<8x64xf32>
    %229 = vector.extract_strided_slice %225 {offsets = [0, 64], sizes = [8, 64], strides = [1, 1]} : vector<8x192xf32> to vector<8x64xf32>
    %230 = vector.extract_strided_slice %225 {offsets = [0, 128], sizes = [8, 64], strides = [1, 1]} : vector<8x192xf32> to vector<8x64xf32>
    %231 = arith.mulf %229, %208 : vector<8x64xf32>
    %232 = arith.mulf %228, %227 : vector<8x64xf32>
    %233 = arith.addf %231, %232 : vector<8x64xf32>
    %234 = math.tanh %233 : vector<8x64xf32>
    %235 = arith.mulf %230, %234 : vector<8x64xf32>
    %236 = arith.select %49, %235, %207 : vector<8x64xi1>, vector<8x64xf32>
    %237 = arith.select %49, %233, %208 : vector<8x64xi1>, vector<8x64xf32>
    %cst_64 = arith.constant 0.000000e+00 : f32
    %238 = vector.broadcast %cst_64 : f32 to vector<8x64xf32>
    %239 = arith.select %49, %235, %238 : vector<8x64xi1>, vector<8x64xf32>
    %240 = vector.extract_strided_slice %239 {offsets = [0, 0], sizes = [8, 32], strides = [1, 1]} : vector<8x64xf32> to vector<8x32xf32>
    %241 = arith.truncf %240 : vector<8x32xf32> to vector<8x32xbf16>
    %cst_65 = arith.constant dense<0.000000e+00> : vector<8x256xf32>
    %242 = tpu.matmul %241, %96, %cst_65 {dimension_numbers = #tpu.dot_dimension_numbers<[1], [0], [0], [1], [0, 0, 1, 1], [], []>} : vector<8x32xbf16>, vector<32x256xbf16>, vector<8x256xf32> -> vector<8x256xf32>
    %243 = vector.extract_strided_slice %239 {offsets = [0, 32], sizes = [8, 32], strides = [1, 1]} : vector<8x64xf32> to vector<8x32xf32>
    %244 = arith.truncf %243 : vector<8x32xf32> to vector<8x32xbf16>
    %cst_66 = arith.constant dense<0.000000e+00> : vector<8x256xf32>
    %245 = tpu.matmul %244, %97, %cst_66 {dimension_numbers = #tpu.dot_dimension_numbers<[1], [0], [0], [1], [0, 0, 1, 1], [], []>} : vector<8x32xbf16>, vector<32x256xbf16>, vector<8x256xf32> -> vector<8x256xf32>
    %246 = arith.truncf %236 : vector<8x64xf32> to vector<8x64xbf16>
    %cst_67 = arith.constant dense<0.000000e+00> : vector<8x256xf32>
    %247 = tpu.matmul %246, %95, %cst_67 {dimension_numbers = #tpu.dot_dimension_numbers<[1], [0], [0], [1], [0, 0, 1, 1], [], []>} : vector<8x64xbf16>, vector<64x256xbf16>, vector<8x256xf32> -> vector<8x256xf32>
    %248 = arith.addf %86, %247 : vector<8x256xf32>
    %249 = vector.extract_strided_slice %248 {offsets = [0, 0], sizes = [8, 192], strides = [1, 1]} : vector<8x256xf32> to vector<8x192xf32>
    %250 = arith.negf %249 : vector<8x192xf32>
    %251 = math.exp %250 : vector<8x192xf32>
    %cst_68 = arith.constant 1.000000e+00 : f32
    %252 = vector.broadcast %cst_68 : f32 to vector<8x192xf32>
    %253 = arith.addf %252, %251 : vector<8x192xf32>
    %254 = arith.divf %252, %253 : vector<8x192xf32>
    %255 = vector.extract_strided_slice %248 {offsets = [0, 192], sizes = [8, 64], strides = [1, 1]} : vector<8x256xf32> to vector<8x64xf32>
    %256 = math.tanh %255 : vector<8x64xf32>
    %257 = vector.extract_strided_slice %254 {offsets = [0, 0], sizes = [8, 64], strides = [1, 1]} : vector<8x192xf32> to vector<8x64xf32>
    %258 = vector.extract_strided_slice %254 {offsets = [0, 64], sizes = [8, 64], strides = [1, 1]} : vector<8x192xf32> to vector<8x64xf32>
    %259 = vector.extract_strided_slice %254 {offsets = [0, 128], sizes = [8, 64], strides = [1, 1]} : vector<8x192xf32> to vector<8x64xf32>
    %260 = arith.mulf %258, %237 : vector<8x64xf32>
    %261 = arith.mulf %257, %256 : vector<8x64xf32>
    %262 = arith.addf %260, %261 : vector<8x64xf32>
    %263 = math.tanh %262 : vector<8x64xf32>
    %264 = arith.mulf %259, %263 : vector<8x64xf32>
    %265 = arith.select %54, %264, %236 : vector<8x64xi1>, vector<8x64xf32>
    %266 = arith.select %54, %262, %237 : vector<8x64xi1>, vector<8x64xf32>
    %cst_69 = arith.constant 0.000000e+00 : f32
    %267 = vector.broadcast %cst_69 : f32 to vector<8x64xf32>
    %268 = arith.select %54, %264, %267 : vector<8x64xi1>, vector<8x64xf32>
    %269 = vector.extract_strided_slice %268 {offsets = [0, 0], sizes = [8, 32], strides = [1, 1]} : vector<8x64xf32> to vector<8x32xf32>
    %270 = arith.truncf %269 : vector<8x32xf32> to vector<8x32xbf16>
    %cst_70 = arith.constant dense<0.000000e+00> : vector<8x256xf32>
    %271 = tpu.matmul %270, %96, %cst_70 {dimension_numbers = #tpu.dot_dimension_numbers<[1], [0], [0], [1], [0, 0, 1, 1], [], []>} : vector<8x32xbf16>, vector<32x256xbf16>, vector<8x256xf32> -> vector<8x256xf32>
    %272 = vector.extract_strided_slice %268 {offsets = [0, 32], sizes = [8, 32], strides = [1, 1]} : vector<8x64xf32> to vector<8x32xf32>
    %273 = arith.truncf %272 : vector<8x32xf32> to vector<8x32xbf16>
    %cst_71 = arith.constant dense<0.000000e+00> : vector<8x256xf32>
    %274 = tpu.matmul %273, %97, %cst_71 {dimension_numbers = #tpu.dot_dimension_numbers<[1], [0], [0], [1], [0, 0, 1, 1], [], []>} : vector<8x32xbf16>, vector<32x256xbf16>, vector<8x256xf32> -> vector<8x256xf32>
    %275 = arith.truncf %265 : vector<8x64xf32> to vector<8x64xbf16>
    %cst_72 = arith.constant dense<0.000000e+00> : vector<8x256xf32>
    %276 = tpu.matmul %275, %95, %cst_72 {dimension_numbers = #tpu.dot_dimension_numbers<[1], [0], [0], [1], [0, 0, 1, 1], [], []>} : vector<8x64xbf16>, vector<64x256xbf16>, vector<8x256xf32> -> vector<8x256xf32>
    %277 = arith.addf %88, %276 : vector<8x256xf32>
    %278 = vector.extract_strided_slice %277 {offsets = [0, 0], sizes = [8, 192], strides = [1, 1]} : vector<8x256xf32> to vector<8x192xf32>
    %279 = arith.negf %278 : vector<8x192xf32>
    %280 = math.exp %279 : vector<8x192xf32>
    %cst_73 = arith.constant 1.000000e+00 : f32
    %281 = vector.broadcast %cst_73 : f32 to vector<8x192xf32>
    %282 = arith.addf %281, %280 : vector<8x192xf32>
    %283 = arith.divf %281, %282 : vector<8x192xf32>
    %284 = vector.extract_strided_slice %277 {offsets = [0, 192], sizes = [8, 64], strides = [1, 1]} : vector<8x256xf32> to vector<8x64xf32>
    %285 = math.tanh %284 : vector<8x64xf32>
    %286 = vector.extract_strided_slice %283 {offsets = [0, 0], sizes = [8, 64], strides = [1, 1]} : vector<8x192xf32> to vector<8x64xf32>
    %287 = vector.extract_strided_slice %283 {offsets = [0, 64], sizes = [8, 64], strides = [1, 1]} : vector<8x192xf32> to vector<8x64xf32>
    %288 = vector.extract_strided_slice %283 {offsets = [0, 128], sizes = [8, 64], strides = [1, 1]} : vector<8x192xf32> to vector<8x64xf32>
    %289 = arith.mulf %287, %266 : vector<8x64xf32>
    %290 = arith.mulf %286, %285 : vector<8x64xf32>
    %291 = arith.addf %289, %290 : vector<8x64xf32>
    %292 = math.tanh %291 : vector<8x64xf32>
    %293 = arith.mulf %288, %292 : vector<8x64xf32>
    %294 = arith.select %59, %293, %265 : vector<8x64xi1>, vector<8x64xf32>
    %295 = arith.select %59, %291, %266 : vector<8x64xi1>, vector<8x64xf32>
    %cst_74 = arith.constant 0.000000e+00 : f32
    %296 = vector.broadcast %cst_74 : f32 to vector<8x64xf32>
    %297 = arith.select %59, %293, %296 : vector<8x64xi1>, vector<8x64xf32>
    %298 = vector.extract_strided_slice %297 {offsets = [0, 0], sizes = [8, 32], strides = [1, 1]} : vector<8x64xf32> to vector<8x32xf32>
    %299 = arith.truncf %298 : vector<8x32xf32> to vector<8x32xbf16>
    %cst_75 = arith.constant dense<0.000000e+00> : vector<8x256xf32>
    %300 = tpu.matmul %299, %96, %cst_75 {dimension_numbers = #tpu.dot_dimension_numbers<[1], [0], [0], [1], [0, 0, 1, 1], [], []>} : vector<8x32xbf16>, vector<32x256xbf16>, vector<8x256xf32> -> vector<8x256xf32>
    %301 = vector.extract_strided_slice %297 {offsets = [0, 32], sizes = [8, 32], strides = [1, 1]} : vector<8x64xf32> to vector<8x32xf32>
    %302 = arith.truncf %301 : vector<8x32xf32> to vector<8x32xbf16>
    %cst_76 = arith.constant dense<0.000000e+00> : vector<8x256xf32>
    %303 = tpu.matmul %302, %97, %cst_76 {dimension_numbers = #tpu.dot_dimension_numbers<[1], [0], [0], [1], [0, 0, 1, 1], [], []>} : vector<8x32xbf16>, vector<32x256xbf16>, vector<8x256xf32> -> vector<8x256xf32>
    %304 = arith.truncf %294 : vector<8x64xf32> to vector<8x64xbf16>
    %cst_77 = arith.constant dense<0.000000e+00> : vector<8x256xf32>
    %305 = tpu.matmul %304, %95, %cst_77 {dimension_numbers = #tpu.dot_dimension_numbers<[1], [0], [0], [1], [0, 0, 1, 1], [], []>} : vector<8x64xbf16>, vector<64x256xbf16>, vector<8x256xf32> -> vector<8x256xf32>
    %306 = arith.addf %90, %305 : vector<8x256xf32>
    %307 = vector.extract_strided_slice %306 {offsets = [0, 0], sizes = [8, 192], strides = [1, 1]} : vector<8x256xf32> to vector<8x192xf32>
    %308 = arith.negf %307 : vector<8x192xf32>
    %309 = math.exp %308 : vector<8x192xf32>
    %cst_78 = arith.constant 1.000000e+00 : f32
    %310 = vector.broadcast %cst_78 : f32 to vector<8x192xf32>
    %311 = arith.addf %310, %309 : vector<8x192xf32>
    %312 = arith.divf %310, %311 : vector<8x192xf32>
    %313 = vector.extract_strided_slice %306 {offsets = [0, 192], sizes = [8, 64], strides = [1, 1]} : vector<8x256xf32> to vector<8x64xf32>
    %314 = math.tanh %313 : vector<8x64xf32>
    %315 = vector.extract_strided_slice %312 {offsets = [0, 0], sizes = [8, 64], strides = [1, 1]} : vector<8x192xf32> to vector<8x64xf32>
    %316 = vector.extract_strided_slice %312 {offsets = [0, 64], sizes = [8, 64], strides = [1, 1]} : vector<8x192xf32> to vector<8x64xf32>
    %317 = vector.extract_strided_slice %312 {offsets = [0, 128], sizes = [8, 64], strides = [1, 1]} : vector<8x192xf32> to vector<8x64xf32>
    %318 = arith.mulf %316, %295 : vector<8x64xf32>
    %319 = arith.mulf %315, %314 : vector<8x64xf32>
    %320 = arith.addf %318, %319 : vector<8x64xf32>
    %321 = math.tanh %320 : vector<8x64xf32>
    %322 = arith.mulf %317, %321 : vector<8x64xf32>
    %323 = arith.select %64, %322, %294 : vector<8x64xi1>, vector<8x64xf32>
    %324 = arith.select %64, %320, %295 : vector<8x64xi1>, vector<8x64xf32>
    %cst_79 = arith.constant 0.000000e+00 : f32
    %325 = vector.broadcast %cst_79 : f32 to vector<8x64xf32>
    %326 = arith.select %64, %322, %325 : vector<8x64xi1>, vector<8x64xf32>
    %327 = vector.extract_strided_slice %326 {offsets = [0, 0], sizes = [8, 32], strides = [1, 1]} : vector<8x64xf32> to vector<8x32xf32>
    %328 = arith.truncf %327 : vector<8x32xf32> to vector<8x32xbf16>
    %cst_80 = arith.constant dense<0.000000e+00> : vector<8x256xf32>
    %329 = tpu.matmul %328, %96, %cst_80 {dimension_numbers = #tpu.dot_dimension_numbers<[1], [0], [0], [1], [0, 0, 1, 1], [], []>} : vector<8x32xbf16>, vector<32x256xbf16>, vector<8x256xf32> -> vector<8x256xf32>
    %330 = vector.extract_strided_slice %326 {offsets = [0, 32], sizes = [8, 32], strides = [1, 1]} : vector<8x64xf32> to vector<8x32xf32>
    %331 = arith.truncf %330 : vector<8x32xf32> to vector<8x32xbf16>
    %cst_81 = arith.constant dense<0.000000e+00> : vector<8x256xf32>
    %332 = tpu.matmul %331, %97, %cst_81 {dimension_numbers = #tpu.dot_dimension_numbers<[1], [0], [0], [1], [0, 0, 1, 1], [], []>} : vector<8x32xbf16>, vector<32x256xbf16>, vector<8x256xf32> -> vector<8x256xf32>
    %333 = arith.truncf %323 : vector<8x64xf32> to vector<8x64xbf16>
    %cst_82 = arith.constant dense<0.000000e+00> : vector<8x256xf32>
    %334 = tpu.matmul %333, %95, %cst_82 {dimension_numbers = #tpu.dot_dimension_numbers<[1], [0], [0], [1], [0, 0, 1, 1], [], []>} : vector<8x64xbf16>, vector<64x256xbf16>, vector<8x256xf32> -> vector<8x256xf32>
    %335 = arith.addf %92, %334 : vector<8x256xf32>
    %336 = vector.extract_strided_slice %335 {offsets = [0, 0], sizes = [8, 192], strides = [1, 1]} : vector<8x256xf32> to vector<8x192xf32>
    %337 = arith.negf %336 : vector<8x192xf32>
    %338 = math.exp %337 : vector<8x192xf32>
    %cst_83 = arith.constant 1.000000e+00 : f32
    %339 = vector.broadcast %cst_83 : f32 to vector<8x192xf32>
    %340 = arith.addf %339, %338 : vector<8x192xf32>
    %341 = arith.divf %339, %340 : vector<8x192xf32>
    %342 = vector.extract_strided_slice %335 {offsets = [0, 192], sizes = [8, 64], strides = [1, 1]} : vector<8x256xf32> to vector<8x64xf32>
    %343 = math.tanh %342 : vector<8x64xf32>
    %344 = vector.extract_strided_slice %341 {offsets = [0, 0], sizes = [8, 64], strides = [1, 1]} : vector<8x192xf32> to vector<8x64xf32>
    %345 = vector.extract_strided_slice %341 {offsets = [0, 64], sizes = [8, 64], strides = [1, 1]} : vector<8x192xf32> to vector<8x64xf32>
    %346 = vector.extract_strided_slice %341 {offsets = [0, 128], sizes = [8, 64], strides = [1, 1]} : vector<8x192xf32> to vector<8x64xf32>
    %347 = arith.mulf %345, %324 : vector<8x64xf32>
    %348 = arith.mulf %344, %343 : vector<8x64xf32>
    %349 = arith.addf %347, %348 : vector<8x64xf32>
    %350 = math.tanh %349 : vector<8x64xf32>
    %351 = arith.mulf %346, %350 : vector<8x64xf32>
    %352 = arith.select %69, %351, %323 : vector<8x64xi1>, vector<8x64xf32>
    %353 = arith.select %69, %349, %324 : vector<8x64xi1>, vector<8x64xf32>
    %cst_84 = arith.constant 0.000000e+00 : f32
    %354 = vector.broadcast %cst_84 : f32 to vector<8x64xf32>
    %355 = arith.select %69, %351, %354 : vector<8x64xi1>, vector<8x64xf32>
    %356 = vector.extract_strided_slice %355 {offsets = [0, 0], sizes = [8, 32], strides = [1, 1]} : vector<8x64xf32> to vector<8x32xf32>
    %357 = arith.truncf %356 : vector<8x32xf32> to vector<8x32xbf16>
    %cst_85 = arith.constant dense<0.000000e+00> : vector<8x256xf32>
    %358 = tpu.matmul %357, %96, %cst_85 {dimension_numbers = #tpu.dot_dimension_numbers<[1], [0], [0], [1], [0, 0, 1, 1], [], []>} : vector<8x32xbf16>, vector<32x256xbf16>, vector<8x256xf32> -> vector<8x256xf32>
    %359 = vector.extract_strided_slice %355 {offsets = [0, 32], sizes = [8, 32], strides = [1, 1]} : vector<8x64xf32> to vector<8x32xf32>
    %360 = arith.truncf %359 : vector<8x32xf32> to vector<8x32xbf16>
    %cst_86 = arith.constant dense<0.000000e+00> : vector<8x256xf32>
    %361 = tpu.matmul %360, %97, %cst_86 {dimension_numbers = #tpu.dot_dimension_numbers<[1], [0], [0], [1], [0, 0, 1, 1], [], []>} : vector<8x32xbf16>, vector<32x256xbf16>, vector<8x256xf32> -> vector<8x256xf32>
    %362 = arith.truncf %352 : vector<8x64xf32> to vector<8x64xbf16>
    %cst_87 = arith.constant dense<0.000000e+00> : vector<8x256xf32>
    %363 = tpu.matmul %362, %95, %cst_87 {dimension_numbers = #tpu.dot_dimension_numbers<[1], [0], [0], [1], [0, 0, 1, 1], [], []>} : vector<8x64xbf16>, vector<64x256xbf16>, vector<8x256xf32> -> vector<8x256xf32>
    %364 = arith.addf %94, %363 : vector<8x256xf32>
    %365 = vector.extract_strided_slice %364 {offsets = [0, 0], sizes = [8, 192], strides = [1, 1]} : vector<8x256xf32> to vector<8x192xf32>
    %366 = arith.negf %365 : vector<8x192xf32>
    %367 = math.exp %366 : vector<8x192xf32>
    %cst_88 = arith.constant 1.000000e+00 : f32
    %368 = vector.broadcast %cst_88 : f32 to vector<8x192xf32>
    %369 = arith.addf %368, %367 : vector<8x192xf32>
    %370 = arith.divf %368, %369 : vector<8x192xf32>
    %371 = vector.extract_strided_slice %364 {offsets = [0, 192], sizes = [8, 64], strides = [1, 1]} : vector<8x256xf32> to vector<8x64xf32>
    %372 = math.tanh %371 : vector<8x64xf32>
    %373 = vector.extract_strided_slice %370 {offsets = [0, 0], sizes = [8, 64], strides = [1, 1]} : vector<8x192xf32> to vector<8x64xf32>
    %374 = vector.extract_strided_slice %370 {offsets = [0, 64], sizes = [8, 64], strides = [1, 1]} : vector<8x192xf32> to vector<8x64xf32>
    %375 = vector.extract_strided_slice %370 {offsets = [0, 128], sizes = [8, 64], strides = [1, 1]} : vector<8x192xf32> to vector<8x64xf32>
    %376 = arith.mulf %374, %353 : vector<8x64xf32>
    %377 = arith.mulf %373, %372 : vector<8x64xf32>
    %378 = arith.addf %376, %377 : vector<8x64xf32>
    %379 = math.tanh %378 : vector<8x64xf32>
    %380 = arith.mulf %375, %379 : vector<8x64xf32>
    %cst_89 = arith.constant 0.000000e+00 : f32
    %381 = vector.broadcast %cst_89 : f32 to vector<8x64xf32>
    %382 = arith.select %74, %380, %381 : vector<8x64xi1>, vector<8x64xf32>
    %383 = vector.extract_strided_slice %382 {offsets = [0, 0], sizes = [8, 32], strides = [1, 1]} : vector<8x64xf32> to vector<8x32xf32>
    %384 = arith.truncf %383 : vector<8x32xf32> to vector<8x32xbf16>
    %cst_90 = arith.constant dense<0.000000e+00> : vector<8x256xf32>
    %385 = tpu.matmul %384, %96, %cst_90 {dimension_numbers = #tpu.dot_dimension_numbers<[1], [0], [0], [1], [0, 0, 1, 1], [], []>} : vector<8x32xbf16>, vector<32x256xbf16>, vector<8x256xf32> -> vector<8x256xf32>
    %386 = vector.extract_strided_slice %382 {offsets = [0, 32], sizes = [8, 32], strides = [1, 1]} : vector<8x64xf32> to vector<8x32xf32>
    %387 = arith.truncf %386 : vector<8x32xf32> to vector<8x32xbf16>
    %cst_91 = arith.constant dense<0.000000e+00> : vector<8x256xf32>
    %388 = tpu.matmul %387, %97, %cst_91 {dimension_numbers = #tpu.dot_dimension_numbers<[1], [0], [0], [1], [0, 0, 1, 1], [], []>} : vector<8x32xbf16>, vector<32x256xbf16>, vector<8x256xf32> -> vector<8x256xf32>
    %389 = arith.addf %126, %388 : vector<8x256xf32>
    %390 = vector.broadcast %98 : vector<1x256xf32> to vector<8x256xf32>
    %391 = arith.addf %389, %390 : vector<8x256xf32>
    %392 = arith.addf %155, %361 : vector<8x256xf32>
    %393 = vector.broadcast %98 : vector<1x256xf32> to vector<8x256xf32>
    %394 = arith.addf %392, %393 : vector<8x256xf32>
    %395 = arith.addf %184, %332 : vector<8x256xf32>
    %396 = vector.broadcast %98 : vector<1x256xf32> to vector<8x256xf32>
    %397 = arith.addf %395, %396 : vector<8x256xf32>
    %398 = arith.addf %213, %303 : vector<8x256xf32>
    %399 = vector.broadcast %98 : vector<1x256xf32> to vector<8x256xf32>
    %400 = arith.addf %398, %399 : vector<8x256xf32>
    %401 = arith.addf %242, %274 : vector<8x256xf32>
    %402 = vector.broadcast %98 : vector<1x256xf32> to vector<8x256xf32>
    %403 = arith.addf %401, %402 : vector<8x256xf32>
    %404 = arith.addf %271, %245 : vector<8x256xf32>
    %405 = vector.broadcast %98 : vector<1x256xf32> to vector<8x256xf32>
    %406 = arith.addf %404, %405 : vector<8x256xf32>
    %407 = arith.addf %300, %216 : vector<8x256xf32>
    %408 = vector.broadcast %98 : vector<1x256xf32> to vector<8x256xf32>
    %409 = arith.addf %407, %408 : vector<8x256xf32>
    %410 = arith.addf %329, %187 : vector<8x256xf32>
    %411 = vector.broadcast %98 : vector<1x256xf32> to vector<8x256xf32>
    %412 = arith.addf %410, %411 : vector<8x256xf32>
    %413 = arith.addf %358, %158 : vector<8x256xf32>
    %414 = vector.broadcast %98 : vector<1x256xf32> to vector<8x256xf32>
    %415 = arith.addf %413, %414 : vector<8x256xf32>
    %416 = arith.addf %385, %129 : vector<8x256xf32>
    %417 = vector.broadcast %98 : vector<1x256xf32> to vector<8x256xf32>
    %418 = arith.addf %416, %417 : vector<8x256xf32>
    %419 = arith.select %24, %418, %391 : vector<8x256xi1>, vector<8x256xf32>
    %420 = arith.select %24, %415, %394 : vector<8x256xi1>, vector<8x256xf32>
    %421 = arith.select %24, %412, %397 : vector<8x256xi1>, vector<8x256xf32>
    %422 = arith.select %24, %409, %400 : vector<8x256xi1>, vector<8x256xf32>
    %423 = arith.select %24, %406, %403 : vector<8x256xi1>, vector<8x256xf32>
    %424 = arith.select %24, %403, %406 : vector<8x256xi1>, vector<8x256xf32>
    %425 = arith.select %24, %400, %409 : vector<8x256xi1>, vector<8x256xf32>
    %426 = arith.select %24, %397, %412 : vector<8x256xi1>, vector<8x256xf32>
    %427 = arith.select %24, %394, %415 : vector<8x256xi1>, vector<8x256xf32>
    %428 = arith.select %24, %391, %418 : vector<8x256xi1>, vector<8x256xf32>
    %c0_92 = arith.constant 0 : index
    %c0_93 = arith.constant 0 : index
    %429 = vector.load %arg6[%c0_92, %c0_93] : memref<64x256xbf16, #tpu.memory_space<vmem>>, vector<64x256xbf16>
    %cst_94 = arith.constant 0.000000e+00 : f32
    %430 = vector.broadcast %cst_94 : f32 to vector<8x64xf32>
    %cst_95 = arith.constant 0.000000e+00 : f32
    %431 = vector.broadcast %cst_95 : f32 to vector<8x64xf32>
    %432 = arith.truncf %430 : vector<8x64xf32> to vector<8x64xbf16>
    %cst_96 = arith.constant dense<0.000000e+00> : vector<8x256xf32>
    %433 = tpu.matmul %432, %429, %cst_96 {dimension_numbers = #tpu.dot_dimension_numbers<[1], [0], [0], [1], [0, 0, 1, 1], [], []>} : vector<8x64xbf16>, vector<64x256xbf16>, vector<8x256xf32> -> vector<8x256xf32>
    %434 = arith.addf %419, %433 : vector<8x256xf32>
    %435 = vector.extract_strided_slice %434 {offsets = [0, 0], sizes = [8, 192], strides = [1, 1]} : vector<8x256xf32> to vector<8x192xf32>
    %436 = arith.negf %435 : vector<8x192xf32>
    %437 = math.exp %436 : vector<8x192xf32>
    %cst_97 = arith.constant 1.000000e+00 : f32
    %438 = vector.broadcast %cst_97 : f32 to vector<8x192xf32>
    %439 = arith.addf %438, %437 : vector<8x192xf32>
    %440 = arith.divf %438, %439 : vector<8x192xf32>
    %441 = vector.extract_strided_slice %434 {offsets = [0, 192], sizes = [8, 64], strides = [1, 1]} : vector<8x256xf32> to vector<8x64xf32>
    %442 = math.tanh %441 : vector<8x64xf32>
    %443 = vector.extract_strided_slice %440 {offsets = [0, 0], sizes = [8, 64], strides = [1, 1]} : vector<8x192xf32> to vector<8x64xf32>
    %444 = vector.extract_strided_slice %440 {offsets = [0, 64], sizes = [8, 64], strides = [1, 1]} : vector<8x192xf32> to vector<8x64xf32>
    %445 = vector.extract_strided_slice %440 {offsets = [0, 128], sizes = [8, 64], strides = [1, 1]} : vector<8x192xf32> to vector<8x64xf32>
    %446 = arith.mulf %444, %431 : vector<8x64xf32>
    %447 = arith.mulf %443, %442 : vector<8x64xf32>
    %448 = arith.addf %446, %447 : vector<8x64xf32>
    %449 = math.tanh %448 : vector<8x64xf32>
    %450 = arith.mulf %445, %449 : vector<8x64xf32>
    %451 = arith.select %29, %450, %430 : vector<8x64xi1>, vector<8x64xf32>
    %452 = arith.select %29, %448, %431 : vector<8x64xi1>, vector<8x64xf32>
    %453 = arith.truncf %451 : vector<8x64xf32> to vector<8x64xbf16>
    %cst_98 = arith.constant dense<0.000000e+00> : vector<8x256xf32>
    %454 = tpu.matmul %453, %429, %cst_98 {dimension_numbers = #tpu.dot_dimension_numbers<[1], [0], [0], [1], [0, 0, 1, 1], [], []>} : vector<8x64xbf16>, vector<64x256xbf16>, vector<8x256xf32> -> vector<8x256xf32>
    %455 = arith.addf %420, %454 : vector<8x256xf32>
    %456 = vector.extract_strided_slice %455 {offsets = [0, 0], sizes = [8, 192], strides = [1, 1]} : vector<8x256xf32> to vector<8x192xf32>
    %457 = arith.negf %456 : vector<8x192xf32>
    %458 = math.exp %457 : vector<8x192xf32>
    %cst_99 = arith.constant 1.000000e+00 : f32
    %459 = vector.broadcast %cst_99 : f32 to vector<8x192xf32>
    %460 = arith.addf %459, %458 : vector<8x192xf32>
    %461 = arith.divf %459, %460 : vector<8x192xf32>
    %462 = vector.extract_strided_slice %455 {offsets = [0, 192], sizes = [8, 64], strides = [1, 1]} : vector<8x256xf32> to vector<8x64xf32>
    %463 = math.tanh %462 : vector<8x64xf32>
    %464 = vector.extract_strided_slice %461 {offsets = [0, 0], sizes = [8, 64], strides = [1, 1]} : vector<8x192xf32> to vector<8x64xf32>
    %465 = vector.extract_strided_slice %461 {offsets = [0, 64], sizes = [8, 64], strides = [1, 1]} : vector<8x192xf32> to vector<8x64xf32>
    %466 = vector.extract_strided_slice %461 {offsets = [0, 128], sizes = [8, 64], strides = [1, 1]} : vector<8x192xf32> to vector<8x64xf32>
    %467 = arith.mulf %465, %452 : vector<8x64xf32>
    %468 = arith.mulf %464, %463 : vector<8x64xf32>
    %469 = arith.addf %467, %468 : vector<8x64xf32>
    %470 = math.tanh %469 : vector<8x64xf32>
    %471 = arith.mulf %466, %470 : vector<8x64xf32>
    %472 = arith.select %34, %471, %451 : vector<8x64xi1>, vector<8x64xf32>
    %473 = arith.select %34, %469, %452 : vector<8x64xi1>, vector<8x64xf32>
    %474 = arith.truncf %472 : vector<8x64xf32> to vector<8x64xbf16>
    %cst_100 = arith.constant dense<0.000000e+00> : vector<8x256xf32>
    %475 = tpu.matmul %474, %429, %cst_100 {dimension_numbers = #tpu.dot_dimension_numbers<[1], [0], [0], [1], [0, 0, 1, 1], [], []>} : vector<8x64xbf16>, vector<64x256xbf16>, vector<8x256xf32> -> vector<8x256xf32>
    %476 = arith.addf %421, %475 : vector<8x256xf32>
    %477 = vector.extract_strided_slice %476 {offsets = [0, 0], sizes = [8, 192], strides = [1, 1]} : vector<8x256xf32> to vector<8x192xf32>
    %478 = arith.negf %477 : vector<8x192xf32>
    %479 = math.exp %478 : vector<8x192xf32>
    %cst_101 = arith.constant 1.000000e+00 : f32
    %480 = vector.broadcast %cst_101 : f32 to vector<8x192xf32>
    %481 = arith.addf %480, %479 : vector<8x192xf32>
    %482 = arith.divf %480, %481 : vector<8x192xf32>
    %483 = vector.extract_strided_slice %476 {offsets = [0, 192], sizes = [8, 64], strides = [1, 1]} : vector<8x256xf32> to vector<8x64xf32>
    %484 = math.tanh %483 : vector<8x64xf32>
    %485 = vector.extract_strided_slice %482 {offsets = [0, 0], sizes = [8, 64], strides = [1, 1]} : vector<8x192xf32> to vector<8x64xf32>
    %486 = vector.extract_strided_slice %482 {offsets = [0, 64], sizes = [8, 64], strides = [1, 1]} : vector<8x192xf32> to vector<8x64xf32>
    %487 = vector.extract_strided_slice %482 {offsets = [0, 128], sizes = [8, 64], strides = [1, 1]} : vector<8x192xf32> to vector<8x64xf32>
    %488 = arith.mulf %486, %473 : vector<8x64xf32>
    %489 = arith.mulf %485, %484 : vector<8x64xf32>
    %490 = arith.addf %488, %489 : vector<8x64xf32>
    %491 = math.tanh %490 : vector<8x64xf32>
    %492 = arith.mulf %487, %491 : vector<8x64xf32>
    %493 = arith.select %39, %492, %472 : vector<8x64xi1>, vector<8x64xf32>
    %494 = arith.select %39, %490, %473 : vector<8x64xi1>, vector<8x64xf32>
    %495 = arith.truncf %493 : vector<8x64xf32> to vector<8x64xbf16>
    %cst_102 = arith.constant dense<0.000000e+00> : vector<8x256xf32>
    %496 = tpu.matmul %495, %429, %cst_102 {dimension_numbers = #tpu.dot_dimension_numbers<[1], [0], [0], [1], [0, 0, 1, 1], [], []>} : vector<8x64xbf16>, vector<64x256xbf16>, vector<8x256xf32> -> vector<8x256xf32>
    %497 = arith.addf %422, %496 : vector<8x256xf32>
    %498 = vector.extract_strided_slice %497 {offsets = [0, 0], sizes = [8, 192], strides = [1, 1]} : vector<8x256xf32> to vector<8x192xf32>
    %499 = arith.negf %498 : vector<8x192xf32>
    %500 = math.exp %499 : vector<8x192xf32>
    %cst_103 = arith.constant 1.000000e+00 : f32
    %501 = vector.broadcast %cst_103 : f32 to vector<8x192xf32>
    %502 = arith.addf %501, %500 : vector<8x192xf32>
    %503 = arith.divf %501, %502 : vector<8x192xf32>
    %504 = vector.extract_strided_slice %497 {offsets = [0, 192], sizes = [8, 64], strides = [1, 1]} : vector<8x256xf32> to vector<8x64xf32>
    %505 = math.tanh %504 : vector<8x64xf32>
    %506 = vector.extract_strided_slice %503 {offsets = [0, 0], sizes = [8, 64], strides = [1, 1]} : vector<8x192xf32> to vector<8x64xf32>
    %507 = vector.extract_strided_slice %503 {offsets = [0, 64], sizes = [8, 64], strides = [1, 1]} : vector<8x192xf32> to vector<8x64xf32>
    %508 = vector.extract_strided_slice %503 {offsets = [0, 128], sizes = [8, 64], strides = [1, 1]} : vector<8x192xf32> to vector<8x64xf32>
    %509 = arith.mulf %507, %494 : vector<8x64xf32>
    %510 = arith.mulf %506, %505 : vector<8x64xf32>
    %511 = arith.addf %509, %510 : vector<8x64xf32>
    %512 = math.tanh %511 : vector<8x64xf32>
    %513 = arith.mulf %508, %512 : vector<8x64xf32>
    %514 = arith.select %44, %513, %493 : vector<8x64xi1>, vector<8x64xf32>
    %515 = arith.select %44, %511, %494 : vector<8x64xi1>, vector<8x64xf32>
    %516 = arith.truncf %514 : vector<8x64xf32> to vector<8x64xbf16>
    %cst_104 = arith.constant dense<0.000000e+00> : vector<8x256xf32>
    %517 = tpu.matmul %516, %429, %cst_104 {dimension_numbers = #tpu.dot_dimension_numbers<[1], [0], [0], [1], [0, 0, 1, 1], [], []>} : vector<8x64xbf16>, vector<64x256xbf16>, vector<8x256xf32> -> vector<8x256xf32>
    %518 = arith.addf %423, %517 : vector<8x256xf32>
    %519 = vector.extract_strided_slice %518 {offsets = [0, 0], sizes = [8, 192], strides = [1, 1]} : vector<8x256xf32> to vector<8x192xf32>
    %520 = arith.negf %519 : vector<8x192xf32>
    %521 = math.exp %520 : vector<8x192xf32>
    %cst_105 = arith.constant 1.000000e+00 : f32
    %522 = vector.broadcast %cst_105 : f32 to vector<8x192xf32>
    %523 = arith.addf %522, %521 : vector<8x192xf32>
    %524 = arith.divf %522, %523 : vector<8x192xf32>
    %525 = vector.extract_strided_slice %518 {offsets = [0, 192], sizes = [8, 64], strides = [1, 1]} : vector<8x256xf32> to vector<8x64xf32>
    %526 = math.tanh %525 : vector<8x64xf32>
    %527 = vector.extract_strided_slice %524 {offsets = [0, 0], sizes = [8, 64], strides = [1, 1]} : vector<8x192xf32> to vector<8x64xf32>
    %528 = vector.extract_strided_slice %524 {offsets = [0, 64], sizes = [8, 64], strides = [1, 1]} : vector<8x192xf32> to vector<8x64xf32>
    %529 = vector.extract_strided_slice %524 {offsets = [0, 128], sizes = [8, 64], strides = [1, 1]} : vector<8x192xf32> to vector<8x64xf32>
    %530 = arith.mulf %528, %515 : vector<8x64xf32>
    %531 = arith.mulf %527, %526 : vector<8x64xf32>
    %532 = arith.addf %530, %531 : vector<8x64xf32>
    %533 = math.tanh %532 : vector<8x64xf32>
    %534 = arith.mulf %529, %533 : vector<8x64xf32>
    %535 = arith.select %49, %534, %514 : vector<8x64xi1>, vector<8x64xf32>
    %536 = arith.select %49, %532, %515 : vector<8x64xi1>, vector<8x64xf32>
    %537 = arith.truncf %535 : vector<8x64xf32> to vector<8x64xbf16>
    %cst_106 = arith.constant dense<0.000000e+00> : vector<8x256xf32>
    %538 = tpu.matmul %537, %429, %cst_106 {dimension_numbers = #tpu.dot_dimension_numbers<[1], [0], [0], [1], [0, 0, 1, 1], [], []>} : vector<8x64xbf16>, vector<64x256xbf16>, vector<8x256xf32> -> vector<8x256xf32>
    %539 = arith.addf %424, %538 : vector<8x256xf32>
    %540 = vector.extract_strided_slice %539 {offsets = [0, 0], sizes = [8, 192], strides = [1, 1]} : vector<8x256xf32> to vector<8x192xf32>
    %541 = arith.negf %540 : vector<8x192xf32>
    %542 = math.exp %541 : vector<8x192xf32>
    %cst_107 = arith.constant 1.000000e+00 : f32
    %543 = vector.broadcast %cst_107 : f32 to vector<8x192xf32>
    %544 = arith.addf %543, %542 : vector<8x192xf32>
    %545 = arith.divf %543, %544 : vector<8x192xf32>
    %546 = vector.extract_strided_slice %539 {offsets = [0, 192], sizes = [8, 64], strides = [1, 1]} : vector<8x256xf32> to vector<8x64xf32>
    %547 = math.tanh %546 : vector<8x64xf32>
    %548 = vector.extract_strided_slice %545 {offsets = [0, 0], sizes = [8, 64], strides = [1, 1]} : vector<8x192xf32> to vector<8x64xf32>
    %549 = vector.extract_strided_slice %545 {offsets = [0, 64], sizes = [8, 64], strides = [1, 1]} : vector<8x192xf32> to vector<8x64xf32>
    %550 = vector.extract_strided_slice %545 {offsets = [0, 128], sizes = [8, 64], strides = [1, 1]} : vector<8x192xf32> to vector<8x64xf32>
    %551 = arith.mulf %549, %536 : vector<8x64xf32>
    %552 = arith.mulf %548, %547 : vector<8x64xf32>
    %553 = arith.addf %551, %552 : vector<8x64xf32>
    %554 = math.tanh %553 : vector<8x64xf32>
    %555 = arith.mulf %550, %554 : vector<8x64xf32>
    %556 = arith.select %54, %555, %535 : vector<8x64xi1>, vector<8x64xf32>
    %557 = arith.select %54, %553, %536 : vector<8x64xi1>, vector<8x64xf32>
    %558 = arith.truncf %556 : vector<8x64xf32> to vector<8x64xbf16>
    %cst_108 = arith.constant dense<0.000000e+00> : vector<8x256xf32>
    %559 = tpu.matmul %558, %429, %cst_108 {dimension_numbers = #tpu.dot_dimension_numbers<[1], [0], [0], [1], [0, 0, 1, 1], [], []>} : vector<8x64xbf16>, vector<64x256xbf16>, vector<8x256xf32> -> vector<8x256xf32>
    %560 = arith.addf %425, %559 : vector<8x256xf32>
    %561 = vector.extract_strided_slice %560 {offsets = [0, 0], sizes = [8, 192], strides = [1, 1]} : vector<8x256xf32> to vector<8x192xf32>
    %562 = arith.negf %561 : vector<8x192xf32>
    %563 = math.exp %562 : vector<8x192xf32>
    %cst_109 = arith.constant 1.000000e+00 : f32
    %564 = vector.broadcast %cst_109 : f32 to vector<8x192xf32>
    %565 = arith.addf %564, %563 : vector<8x192xf32>
    %566 = arith.divf %564, %565 : vector<8x192xf32>
    %567 = vector.extract_strided_slice %560 {offsets = [0, 192], sizes = [8, 64], strides = [1, 1]} : vector<8x256xf32> to vector<8x64xf32>
    %568 = math.tanh %567 : vector<8x64xf32>
    %569 = vector.extract_strided_slice %566 {offsets = [0, 0], sizes = [8, 64], strides = [1, 1]} : vector<8x192xf32> to vector<8x64xf32>
    %570 = vector.extract_strided_slice %566 {offsets = [0, 64], sizes = [8, 64], strides = [1, 1]} : vector<8x192xf32> to vector<8x64xf32>
    %571 = vector.extract_strided_slice %566 {offsets = [0, 128], sizes = [8, 64], strides = [1, 1]} : vector<8x192xf32> to vector<8x64xf32>
    %572 = arith.mulf %570, %557 : vector<8x64xf32>
    %573 = arith.mulf %569, %568 : vector<8x64xf32>
    %574 = arith.addf %572, %573 : vector<8x64xf32>
    %575 = math.tanh %574 : vector<8x64xf32>
    %576 = arith.mulf %571, %575 : vector<8x64xf32>
    %577 = arith.select %59, %576, %556 : vector<8x64xi1>, vector<8x64xf32>
    %578 = arith.select %59, %574, %557 : vector<8x64xi1>, vector<8x64xf32>
    %579 = arith.truncf %577 : vector<8x64xf32> to vector<8x64xbf16>
    %cst_110 = arith.constant dense<0.000000e+00> : vector<8x256xf32>
    %580 = tpu.matmul %579, %429, %cst_110 {dimension_numbers = #tpu.dot_dimension_numbers<[1], [0], [0], [1], [0, 0, 1, 1], [], []>} : vector<8x64xbf16>, vector<64x256xbf16>, vector<8x256xf32> -> vector<8x256xf32>
    %581 = arith.addf %426, %580 : vector<8x256xf32>
    %582 = vector.extract_strided_slice %581 {offsets = [0, 0], sizes = [8, 192], strides = [1, 1]} : vector<8x256xf32> to vector<8x192xf32>
    %583 = arith.negf %582 : vector<8x192xf32>
    %584 = math.exp %583 : vector<8x192xf32>
    %cst_111 = arith.constant 1.000000e+00 : f32
    %585 = vector.broadcast %cst_111 : f32 to vector<8x192xf32>
    %586 = arith.addf %585, %584 : vector<8x192xf32>
    %587 = arith.divf %585, %586 : vector<8x192xf32>
    %588 = vector.extract_strided_slice %581 {offsets = [0, 192], sizes = [8, 64], strides = [1, 1]} : vector<8x256xf32> to vector<8x64xf32>
    %589 = math.tanh %588 : vector<8x64xf32>
    %590 = vector.extract_strided_slice %587 {offsets = [0, 0], sizes = [8, 64], strides = [1, 1]} : vector<8x192xf32> to vector<8x64xf32>
    %591 = vector.extract_strided_slice %587 {offsets = [0, 64], sizes = [8, 64], strides = [1, 1]} : vector<8x192xf32> to vector<8x64xf32>
    %592 = vector.extract_strided_slice %587 {offsets = [0, 128], sizes = [8, 64], strides = [1, 1]} : vector<8x192xf32> to vector<8x64xf32>
    %593 = arith.mulf %591, %578 : vector<8x64xf32>
    %594 = arith.mulf %590, %589 : vector<8x64xf32>
    %595 = arith.addf %593, %594 : vector<8x64xf32>
    %596 = math.tanh %595 : vector<8x64xf32>
    %597 = arith.mulf %592, %596 : vector<8x64xf32>
    %598 = arith.select %64, %597, %577 : vector<8x64xi1>, vector<8x64xf32>
    %599 = arith.select %64, %595, %578 : vector<8x64xi1>, vector<8x64xf32>
    %600 = arith.truncf %598 : vector<8x64xf32> to vector<8x64xbf16>
    %cst_112 = arith.constant dense<0.000000e+00> : vector<8x256xf32>
    %601 = tpu.matmul %600, %429, %cst_112 {dimension_numbers = #tpu.dot_dimension_numbers<[1], [0], [0], [1], [0, 0, 1, 1], [], []>} : vector<8x64xbf16>, vector<64x256xbf16>, vector<8x256xf32> -> vector<8x256xf32>
    %602 = arith.addf %427, %601 : vector<8x256xf32>
    %603 = vector.extract_strided_slice %602 {offsets = [0, 0], sizes = [8, 192], strides = [1, 1]} : vector<8x256xf32> to vector<8x192xf32>
    %604 = arith.negf %603 : vector<8x192xf32>
    %605 = math.exp %604 : vector<8x192xf32>
    %cst_113 = arith.constant 1.000000e+00 : f32
    %606 = vector.broadcast %cst_113 : f32 to vector<8x192xf32>
    %607 = arith.addf %606, %605 : vector<8x192xf32>
    %608 = arith.divf %606, %607 : vector<8x192xf32>
    %609 = vector.extract_strided_slice %602 {offsets = [0, 192], sizes = [8, 64], strides = [1, 1]} : vector<8x256xf32> to vector<8x64xf32>
    %610 = math.tanh %609 : vector<8x64xf32>
    %611 = vector.extract_strided_slice %608 {offsets = [0, 0], sizes = [8, 64], strides = [1, 1]} : vector<8x192xf32> to vector<8x64xf32>
    %612 = vector.extract_strided_slice %608 {offsets = [0, 64], sizes = [8, 64], strides = [1, 1]} : vector<8x192xf32> to vector<8x64xf32>
    %613 = vector.extract_strided_slice %608 {offsets = [0, 128], sizes = [8, 64], strides = [1, 1]} : vector<8x192xf32> to vector<8x64xf32>
    %614 = arith.mulf %612, %599 : vector<8x64xf32>
    %615 = arith.mulf %611, %610 : vector<8x64xf32>
    %616 = arith.addf %614, %615 : vector<8x64xf32>
    %617 = math.tanh %616 : vector<8x64xf32>
    %618 = arith.mulf %613, %617 : vector<8x64xf32>
    %619 = arith.select %69, %618, %598 : vector<8x64xi1>, vector<8x64xf32>
    %620 = arith.select %69, %616, %599 : vector<8x64xi1>, vector<8x64xf32>
    %621 = arith.truncf %619 : vector<8x64xf32> to vector<8x64xbf16>
    %cst_114 = arith.constant dense<0.000000e+00> : vector<8x256xf32>
    %622 = tpu.matmul %621, %429, %cst_114 {dimension_numbers = #tpu.dot_dimension_numbers<[1], [0], [0], [1], [0, 0, 1, 1], [], []>} : vector<8x64xbf16>, vector<64x256xbf16>, vector<8x256xf32> -> vector<8x256xf32>
    %623 = arith.addf %428, %622 : vector<8x256xf32>
    %624 = vector.extract_strided_slice %623 {offsets = [0, 0], sizes = [8, 192], strides = [1, 1]} : vector<8x256xf32> to vector<8x192xf32>
    %625 = arith.negf %624 : vector<8x192xf32>
    %626 = math.exp %625 : vector<8x192xf32>
    %cst_115 = arith.constant 1.000000e+00 : f32
    %627 = vector.broadcast %cst_115 : f32 to vector<8x192xf32>
    %628 = arith.addf %627, %626 : vector<8x192xf32>
    %629 = arith.divf %627, %628 : vector<8x192xf32>
    %630 = vector.extract_strided_slice %623 {offsets = [0, 192], sizes = [8, 64], strides = [1, 1]} : vector<8x256xf32> to vector<8x64xf32>
    %631 = math.tanh %630 : vector<8x64xf32>
    %632 = vector.extract_strided_slice %629 {offsets = [0, 0], sizes = [8, 64], strides = [1, 1]} : vector<8x192xf32> to vector<8x64xf32>
    %633 = vector.extract_strided_slice %629 {offsets = [0, 64], sizes = [8, 64], strides = [1, 1]} : vector<8x192xf32> to vector<8x64xf32>
    %634 = vector.extract_strided_slice %629 {offsets = [0, 128], sizes = [8, 64], strides = [1, 1]} : vector<8x192xf32> to vector<8x64xf32>
    %635 = arith.mulf %633, %620 : vector<8x64xf32>
    %636 = arith.mulf %632, %631 : vector<8x64xf32>
    %637 = arith.addf %635, %636 : vector<8x64xf32>
    %638 = math.tanh %637 : vector<8x64xf32>
    %639 = arith.mulf %634, %638 : vector<8x64xf32>
    %640 = arith.select %74, %639, %619 : vector<8x64xi1>, vector<8x64xf32>
    %641 = arith.truncf %640 : vector<8x64xf32> to vector<8x64xbf16>
    %c0_116 = arith.constant 0 : index
    %c0_117 = arith.constant 0 : index
    %642 = vector.load %arg7[%c0_116, %c0_117] : memref<64x64xbf16, #tpu.memory_space<vmem>>, vector<64x64xbf16>
    %cst_118 = arith.constant dense<0.000000e+00> : vector<8x64xf32>
    %643 = tpu.matmul %641, %642, %cst_118 {dimension_numbers = #tpu.dot_dimension_numbers<[1], [0], [0], [1], [0, 0, 1, 1], [], []>} : vector<8x64xbf16>, vector<64x64xbf16>, vector<8x64xf32> -> vector<8x64xf32>
    %c0_119 = arith.constant 0 : index
    %c0_120 = arith.constant 0 : index
    %644 = vector.load %arg8[%c0_119, %c0_120] : memref<1x64xf32, #tpu.memory_space<vmem>>, vector<1x64xf32>
    %645 = vector.broadcast %644 : vector<1x64xf32> to vector<8x64xf32>
    %646 = arith.addf %643, %645 : vector<8x64xf32>
    %cst_121 = arith.constant 0.000000e+00 : f32
    %647 = vector.broadcast %cst_121 : f32 to vector<8x64xf32>
    %648 = arith.maximumf %646, %647 : vector<8x64xf32>
    %649 = arith.truncf %648 : vector<8x64xf32> to vector<8x64xbf16>
    %c0_122 = arith.constant 0 : index
    %c0_123 = arith.constant 0 : index
    %650 = vector.load %arg9[%c0_122, %c0_123] : memref<64x32xbf16, #tpu.memory_space<vmem>>, vector<64x32xbf16>
    %cst_124 = arith.constant dense<0.000000e+00> : vector<8x32xf32>
    %651 = tpu.matmul %649, %650, %cst_124 {dimension_numbers = #tpu.dot_dimension_numbers<[1], [0], [0], [1], [0, 0, 1, 1], [], []>} : vector<8x64xbf16>, vector<64x32xbf16>, vector<8x32xf32> -> vector<8x32xf32>
    %c0_125 = arith.constant 0 : index
    %c0_126 = arith.constant 0 : index
    %652 = vector.load %arg10[%c0_125, %c0_126] : memref<1x32xf32, #tpu.memory_space<vmem>>, vector<1x32xf32>
    %653 = vector.broadcast %652 : vector<1x32xf32> to vector<8x32xf32>
    %654 = arith.addf %651, %653 : vector<8x32xf32>
    %cst_127 = arith.constant 0.000000e+00 : f32
    %655 = vector.broadcast %cst_127 : f32 to vector<8x32xf32>
    %656 = arith.maximumf %654, %655 : vector<8x32xf32>
    %657 = arith.truncf %656 : vector<8x32xf32> to vector<8x32xbf16>
    %c0_128 = arith.constant 0 : index
    %c0_129 = arith.constant 0 : index
    %658 = vector.load %arg11[%c0_128, %c0_129] : memref<32x3xbf16, #tpu.memory_space<vmem>>, vector<32x3xbf16>
    %cst_130 = arith.constant dense<0.000000e+00> : vector<8x3xf32>
    %659 = tpu.matmul %657, %658, %cst_130 {dimension_numbers = #tpu.dot_dimension_numbers<[1], [0], [0], [1], [0, 0, 1, 1], [], []>} : vector<8x32xbf16>, vector<32x3xbf16>, vector<8x3xf32> -> vector<8x3xf32>
    %c0_131 = arith.constant 0 : index
    %c0_132 = arith.constant 0 : index
    %660 = vector.load %arg12[%c0_131, %c0_132] : memref<1x3xf32, #tpu.memory_space<vmem>>, vector<1x3xf32>
    %661 = vector.broadcast %660 : vector<1x3xf32> to vector<8x3xf32>
    %662 = arith.addf %659, %661 : vector<8x3xf32>
    %663 = arith.negf %662 : vector<8x3xf32>
    %664 = math.exp %663 : vector<8x3xf32>
    %cst_133 = arith.constant 1.000000e+00 : f32
    %665 = vector.broadcast %cst_133 : f32 to vector<8x3xf32>
    %666 = arith.addf %665, %664 : vector<8x3xf32>
    %667 = arith.divf %665, %666 : vector<8x3xf32>
    %c0_134 = arith.constant 0 : index
    %c0_135 = arith.constant 0 : index
    %668 = vector.load %arg13[%c0_134, %c0_135] : memref<8x3xf32, #tpu.memory_space<vmem>>, vector<8x3xf32>
    tpu.vector_store %arg13[%c0_134, %c0_135], %667 {strides = array<i32>} : memref<8x3xf32, #tpu.memory_space<vmem>>, vector<8x3xf32>,
    return
  }
}

</mosaic_0001>

<llo_original>
// kernel: lstm_model_forward.1
$region0: #{lstm_model_forward.1}
  #allocation0 [shape = 'u32[]', space=smem, size = 0x4, offset = 0x4, fixed_abs, tag = 'smem constant byte address 0x4 - core index']
  #allocation1 [shape = 'u32[144,128]{1,0:T(1,128)}', space=vmem, size = 0x12000, scoped, tag = 'internal scratch']
  %s0 = inlined_call_operand.vmem [shape: f32[10,8,256], index: 0, kind: input, shape index: {}]
  %s1 = inlined_call_operand.vmem [shape: s32[8,1], index: 1, kind: input, shape index: {}]
  %s2 = inlined_call_operand.vmem [shape: bf16[64,256], index: 2, kind: input, shape index: {}]
  %s3 = inlined_call_operand.vmem [shape: bf16[32,256], index: 3, kind: input, shape index: {}]
  %s4 = inlined_call_operand.vmem [shape: bf16[32,256], index: 4, kind: input, shape index: {}]
  %s5 = inlined_call_operand.vmem [shape: f32[1,256], index: 5, kind: input, shape index: {}]
  %s6 = inlined_call_operand.vmem [shape: bf16[64,256], index: 6, kind: input, shape index: {}]
  %s7 = inlined_call_operand.vmem [shape: bf16[64,64], index: 7, kind: input, shape index: {}]
  %s8 = inlined_call_operand.vmem [shape: f32[1,64], index: 8, kind: input, shape index: {}]
  %s9 = inlined_call_operand.vmem [shape: bf16[64,32], index: 9, kind: input, shape index: {}]
  %s10 = inlined_call_operand.vmem [shape: f32[1,32], index: 10, kind: input, shape index: {}]
  %s11 = inlined_call_operand.vmem [shape: bf16[32,3], index: 11, kind: input, shape index: {}]
  %s12 = inlined_call_operand.vmem [shape: f32[1,3], index: 12, kind: input, shape index: {}]
  %s13 = inlined_call_operand.vmem [shape: f32[8,3], index: 13, kind: output, shape index: {}]
  %s14 = sld [smem:[#allocation0]]
  $region62: #{lstm_model_forward.1} parent=0
    _
  %s16 = ssub.s32 1, %s14
  %s17 = scalar_select 0, %s16, %s14
  // Predicated region
  $region2: #{lstm_model_forward.1} parent=0 // pred_check
    _
  $region3: #{lstm_model_forward.1} parent=0 // pred_check_branch
    %19 = sbr.rel (0) target = $region5
  $region4: #{lstm_model_forward.1} parent=0 // pred_region
    _
  $region5: #{lstm_model_forward.1} parent=0 // pred_fallthru
    _
  // Predicated region
  $region6: #{lstm_model_forward.1} parent=0 // pred_check
    _
  $region7: #{lstm_model_forward.1} parent=0 // pred_check_branch
    %21 = sbr.rel (0) target = $region9
  $region8: #{lstm_model_forward.1} parent=0 // pred_region
    _
  $region9: #{lstm_model_forward.1} parent=0 // pred_fallthru
    _
  // Predicated region
  $region10: #{lstm_model_forward.1} parent=0 // pred_check
    _
  $region11: #{lstm_model_forward.1} parent=0 // pred_check_branch
    %23 = sbr.rel (0) target = $region13
  $region12: #{lstm_model_forward.1} parent=0 // pred_region
    _
  $region13: #{lstm_model_forward.1} parent=0 // pred_fallthru
    _
  // Predicated region
  $region14: #{lstm_model_forward.1} parent=0 // pred_check
    _
  $region15: #{lstm_model_forward.1} parent=0 // pred_check_branch
    %25 = sbr.rel (0) target = $region17
  $region16: #{lstm_model_forward.1} parent=0 // pred_region
    _
  $region17: #{lstm_model_forward.1} parent=0 // pred_fallthru
    _
  // Predicated region
  $region18: #{lstm_model_forward.1} parent=0 // pred_check
    _
  $region19: #{lstm_model_forward.1} parent=0 // pred_check_branch
    %27 = sbr.rel (0) target = $region21
  $region20: #{lstm_model_forward.1} parent=0 // pred_region
    _
  $region21: #{lstm_model_forward.1} parent=0 // pred_fallthru
    _
  // Predicated region
  $region22: #{lstm_model_forward.1} parent=0 // pred_check
    _
  $region23: #{lstm_model_forward.1} parent=0 // pred_check_branch
    %29 = sbr.rel (0) target = $region25
  $region24: #{lstm_model_forward.1} parent=0 // pred_region
    _
  $region25: #{lstm_model_forward.1} parent=0 // pred_fallthru
    _
  // Predicated region
  $region26: #{lstm_model_forward.1} parent=0 // pred_check
    _
  $region27: #{lstm_model_forward.1} parent=0 // pred_check_branch
    %31 = sbr.rel (0) target = $region29
  $region28: #{lstm_model_forward.1} parent=0 // pred_region
    _
  $region29: #{lstm_model_forward.1} parent=0 // pred_fallthru
    _
  // Predicated region
  $region30: #{lstm_model_forward.1} parent=0 // pred_check
    _
  $region31: #{lstm_model_forward.1} parent=0 // pred_check_branch
    %33 = sbr.rel (0) target = $region33
  $region32: #{lstm_model_forward.1} parent=0 // pred_region
    _
  $region33: #{lstm_model_forward.1} parent=0 // pred_fallthru
    _
  // Predicated region
  $region34: #{lstm_model_forward.1} parent=0 // pred_check
    _
  $region35: #{lstm_model_forward.1} parent=0 // pred_check_branch
    %35 = sbr.rel (0) target = $region37
  $region36: #{lstm_model_forward.1} parent=0 // pred_region
    _
  $region37: #{lstm_model_forward.1} parent=0 // pred_fallthru
    _
  // Predicated region
  $region38: #{lstm_model_forward.1} parent=0 // pred_check
    _
  $region39: #{lstm_model_forward.1} parent=0 // pred_check_branch
    %37 = sbr.rel (0) target = $region41
  $region40: #{lstm_model_forward.1} parent=0 // pred_region
    _
  $region41: #{lstm_model_forward.1} parent=0 // pred_fallthru
    _
  // Predicated region
  $region42: #{lstm_model_forward.1} parent=0 // pred_check
    _
  $region43: #{lstm_model_forward.1} parent=0 // pred_check_branch
    %39 = sbr.rel (0) target = $region45
  $region44: #{lstm_model_forward.1} parent=0 // pred_region
    _
  $region45: #{lstm_model_forward.1} parent=0 // pred_fallthru
    _
  // Predicated region
  $region46: #{lstm_model_forward.1} parent=0 // pred_check
    _
  $region47: #{lstm_model_forward.1} parent=0 // pred_check_branch
    %41 = sbr.rel (0) target = $region49
  $region48: #{lstm_model_forward.1} parent=0 // pred_region
    _
  $region49: #{lstm_model_forward.1} parent=0 // pred_fallthru
    _
  // Predicated region
  $region50: #{lstm_model_forward.1} parent=0 // pred_check
    _
  $region51: #{lstm_model_forward.1} parent=0 // pred_check_branch
    %43 = sbr.rel (0) target = $region53
  $region52: #{lstm_model_forward.1} parent=0 // pred_region
    _
  $region53: #{lstm_model_forward.1} parent=0 // pred_fallthru
    _
  %v45 = vld [vmem:[%s1] sm:$0xff]
  %v46 = vlaneseq
  %v47 = vand.u32 %v46, 127
  %vm48 = vcmp.lt.s32.totalorder %v47, 32
  %v49 = vadd.s32 %v47, 128
  %vm50 = vcmp.ge.s32.totalorder %v47, 224
  %vm51 = vcmp.ge.s32.totalorder %v49, 224
  %vm52 = vcmp.ge.s32.totalorder %v47, 32
  %vm53 = vcmp.ge.s32.totalorder %v49, 32
  %vm54 = vcmp.lt.s32.totalorder %v47, 64
  %vm55 = vcmp.lt.s32.totalorder %v49, 64
  %vm56 = vmand %vm52, %vm54
  %vm57 = vmand %vm53, %vm55
  %vm58 = vmor %vm50, %vm56
  %vm59 = vmor %vm51, %vm57
  %vm60 = vcmp.ge.s32.totalorder %v47, 96
  %vm61 = vcmp.ge.s32.totalorder %v49, 96
  %vm62 = vcmp.lt.s32.totalorder %v47, 128
  %vm63 = vcmp.lt.s32.totalorder %v49, 128
  %vm64 = vmand %vm60, %vm62
  %vm65 = vmand %vm61, %vm63
  %vm66 = vmor %vm58, %vm64
  %vm67 = vmor %vm59, %vm65
  %vm68 = vcmp.ge.s32.totalorder %v47, 160
  %vm69 = vcmp.ge.s32.totalorder %v49, 160
  %vm70 = vcmp.lt.s32.totalorder %v47, 192
  %vm71 = vcmp.lt.s32.totalorder %v49, 192
  %vm72 = vmand %vm68, %vm70
  %vm73 = vmand %vm69, %vm71
  %vm74 = vmor %vm66, %vm72
  %vm75 = vmor %vm67, %vm73
  %v76 = vsel %vm48, 0, 9
  %77 = vset.pattern.permute.xlu0 0
  %78 = vperm.xlu0 %77, %v45
  %v79 = vpop.permute.xlu0 %78
  %vm80 = vcmp.gt.s32.totalorder %v79, %v76
  %v81 = vsel %vm48, 1, 8
  %vm82 = vcmp.gt.s32.totalorder %v79, %v81
  %v83 = vsel %vm48, 2, 7
  %vm84 = vcmp.gt.s32.totalorder %v79, %v83
  %v85 = vsel %vm48, 3, 6
  %vm86 = vcmp.gt.s32.totalorder %v79, %v85
  %v87 = vsel %vm48, 4, 5
  %vm88 = vcmp.gt.s32.totalorder %v79, %v87
  %v89 = vsel %vm48, 5, 4
  %vm90 = vcmp.gt.s32.totalorder %v79, %v89
  %v91 = vsel %vm48, 6, 3
  %vm92 = vcmp.gt.s32.totalorder %v79, %v91
  %v93 = vsel %vm48, 7, 2
  %vm94 = vcmp.gt.s32.totalorder %v79, %v93
  %v95 = vsel %vm48, 8, 1
  %vm96 = vcmp.gt.s32.totalorder %v79, %v95
  %v97 = vsel %vm48, 9, 0
  %vm98 = vcmp.gt.s32.totalorder %v79, %v97
  %v99 = vld [vmem:[%s0] sm:$0xff]
  %v100 = vld [vmem:[%s0 + $0x8] sm:$0xff]
  %s101 = scalar_lea.vmem %s0, 16
  %v102 = vld [vmem:[%s101] sm:$0xff]
  %v103 = vld [vmem:[%s101 + $0x8] sm:$0xff]
  %s104 = scalar_lea.vmem %s0, 32
  %v105 = vld [vmem:[%s104] sm:$0xff]
  %v106 = vld [vmem:[%s104 + $0x8] sm:$0xff]
  %s107 = scalar_lea.vmem %s0, 48
  %v108 = vld [vmem:[%s107] sm:$0xff]
  %v109 = vld [vmem:[%s107 + $0x8] sm:$0xff]
  %s110 = scalar_lea.vmem %s0, 64
  %v111 = vld [vmem:[%s110] sm:$0xff]
  %v112 = vld [vmem:[%s110 + $0x8] sm:$0xff]
  %s113 = scalar_lea.vmem %s0, 80
  %v114 = vld [vmem:[%s113] sm:$0xff]
  %v115 = vld [vmem:[%s113 + $0x8] sm:$0xff]
  %s116 = scalar_lea.vmem %s0, 96
  %v117 = vld [vmem:[%s116] sm:$0xff]
  %v118 = vld [vmem:[%s116 + $0x8] sm:$0xff]
  %s119 = scalar_lea.vmem %s0, 112
  %v120 = vld [vmem:[%s119] sm:$0xff]
  %v121 = vld [vmem:[%s119 + $0x8] sm:$0xff]
  %s122 = scalar_lea.vmem %s0, 128
  %v123 = vld [vmem:[%s122] sm:$0xff]
  %v124 = vld [vmem:[%s122 + $0x8] sm:$0xff]
  %s125 = scalar_lea.vmem %s0, 144
  %v126 = vld [vmem:[%s125] sm:$0xff]
  %v127 = vld [vmem:[%s125 + $0x8] sm:$0xff]
  %v128 = vld [vmem:[%s2] sm:$0xff]
  %v129 = vld [vmem:[%s2 + $0x8] sm:$0xff]
  %v130 = vld [vmem:[%s2 + $0x10] sm:$0xff]
  %v131 = vld [vmem:[%s2 + $0x18] sm:$0xff]
  %v132 = vld [vmem:[%s2 + $0x20] sm:$0xff]
  %v133 = vld [vmem:[%s2 + $0x28] sm:$0xff]
  %v134 = vld [vmem:[%s2 + $0x30] sm:$0xff]
  %v135 = vld [vmem:[%s2 + $0x38] sm:$0xff]
  %v136 = vld [vmem:[%s3] sm:$0xff]
  %v137 = vld [vmem:[%s3 + $0x8] sm:$0xff]
  %v138 = vld [vmem:[%s3 + $0x10] sm:$0xff]
  %v139 = vld [vmem:[%s3 + $0x18] sm:$0xff]
  %v140 = vld [vmem:[%s4] sm:$0xff]
  %v141 = vld [vmem:[%s4 + $0x8] sm:$0xff]
  %v142 = vld [vmem:[%s4 + $0x10] sm:$0xff]
  %v143 = vld [vmem:[%s4 + $0x18] sm:$0xff]
  %v144 = vld [vmem:[%s5] sm:$0x3]
  %v153 = vunpack.c.l.b16 %v128
  %v154 = vunpack.c.h.b16 %v128
  %v155 = vunpack.c.l.b16 %v129
  %v156 = vunpack.c.h.b16 %v129
  %v157 = vunpack.c.l.b16 %v130
  %v158 = vunpack.c.h.b16 %v130
  %v159 = vunpack.c.l.b16 %v131
  %v160 = vunpack.c.h.b16 %v131
  %v161 = vunpack.c.l.b16 %v132
  %v162 = vunpack.c.h.b16 %v132
  %v163 = vunpack.c.l.b16 %v133
  %v164 = vunpack.c.h.b16 %v133
  %v165 = vunpack.c.l.b16 %v134
  %v166 = vunpack.c.h.b16 %v134
  %v167 = vunpack.c.l.b16 %v135
  %v168 = vunpack.c.h.b16 %v135
  %v169 = vpack.c.b16 %v155, %v153
  %v170 = vpack.c.b16 %v156, %v154
  %v171 = vpack.c.b16 %v159, %v157
  %v172 = vpack.c.b16 %v160, %v158
  %v173 = vpack.c.b16 %v163, %v161
  %v174 = vpack.c.b16 %v164, %v162
  %v175 = vpack.c.b16 %v167, %v165
  %v176 = vpack.c.b16 %v168, %v166
  %vm185 = vcmask 523264
  %v187 = vsel %vm185, 0, 0
  %189 = vmatprep.subr.bf16.mxu0 %v170
  %190 = vmatpush1.bf16.msra.mxu0 %v169
  %191 = vmatprep.subr.bf16.mxu0 %v172
  %192 = vmatpush1.bf16.msra.mxu0 %v171
  %193 = vmatprep.subr.bf16.mxu0 %v174
  %194 = vmatpush1.bf16.msra.mxu0 %v173
  %195 = vmatprep.subr.bf16.mxu0 %v176
  %196 = vmatpush1.bf16.msra.mxu0 %v175
  %197 = vmatprep.subr.bf16.mxu0 0
  %198 = vmatpush1.bf16.msra.mxu0 0
  %199 = vmatprep.subr.bf16.mxu0 0
  %200 = vmatpush1.bf16.msra.mxu0 0
  %201 = vmatprep.subr.bf16.mxu0 0
  %202 = vmatpush1.bf16.msra.mxu0 0
  %203 = vmatprep.subr.bf16.mxu0 0
  %204 = vmatpush1.bf16.msra.mxu0 0
  %205 = vmatprep.subr.bf16.mxu0 0
  %206 = vmatpush1.bf16.msra.mxu0 0
  %207 = vmatprep.subr.bf16.mxu0 0
  %208 = vmatpush1.bf16.msra.mxu0 0
  %209 = vmatprep.subr.bf16.mxu0 0
  %210 = vmatpush1.bf16.msra.mxu0 0
  %211 = vmatprep.subr.bf16.mxu0 0
  %212 = vmatpush1.bf16.msra.mxu0 0
  %213 = vmatprep.subr.bf16.mxu0 0
  %214 = vmatpush1.bf16.msra.mxu0 0
  %215 = vmatprep.subr.bf16.mxu0 0
  %216 = vmatpush1.bf16.msra.mxu0 0
  %217 = vmatprep.subr.bf16.mxu0 0
  %218 = vmatpush1.bf16.msra.mxu0 0
  %219 = vmatprep.subr.bf16.mxu0 0
  %220 = vmatpush1.bf16.msra.mxu0 0
  %221 = vmatprep.mubr.bf16.mxu0 0
  %222 = vmatmul.mubr.bf16.gmra.mrb[0].mxu0 %v187
  %v223 = vpop.f32.mrb[0].mxu0
  %v224 = vadd.f32 0.0, %v223
  %v225 = vpop.f32.mrb[0].mxu0
  %v226 = vadd.f32 0.0, %v225
  %v227 = vpop.f32.mrb[0].mxu0
  %v228 = vpop.f32.mrb[0].mxu0
  %229 = vdwg.mxu0
  %v230 = vadd.f32 %v99, %v224
  %v231 = vadd.f32 %v100, %v226
  %v232 = vxor.u32 %v230, 2147483648
  %v233 = vxor.u32 %v231, 2147483648
  %v234 = vmul.f32 %v232, 1.442695
  %v235 = vpow.pop %v234
  %v236 = vmul.f32 %v233, 1.442695
  %v237 = vpow.pop %v236
  %v238 = vadd.f32 %v235, 1.0
  %v239 = vadd.f32 %v237, 1.0
  %v240 = vrcp.pop %v238
  %v241 = vmul.f32 1.0, %v240
  %v242 = vrcp.pop %v239
  %v243 = vmul.f32 1.0, %v242
  %v244 = vtanh.pop %v231
  %v245 = vmul.f32 %v241, 0.0
  %247 = vrot.lane.b32.xlu0 %v244, 64
  %v248 = vpop.permute.xlu0 %247
  %v250 = vmul.f32 %v241, %v248
  %252 = vrot.lane.b32.xlu0 %v250, 64
  %v253 = vpop.permute.xlu0 %252
  %v255 = vadd.f32 %v245, %v253
  %v256 = vtanh.pop %v255
  %258 = vrot.lane.b32.xlu0 %v256, 64
  %v259 = vpop.permute.xlu0 %258
  %v261 = vmul.f32 %v243, %v259
  %v262 = vsel %vm80, %v261, 0.0
  %264 = vrot.lane.b32.xlu0 %v255, 64
  %v265 = vpop.permute.xlu0 %264
  %v267 = vsel %vm80, %v265, 0.0
  %v268 = vpack.c.bf16 %v262, %v262
  %270 = vrot.lane.b32.xlu0 %v268, 96
  %v271 = vpop.permute.xlu0 %270
  %v276 = vunpack.c.l.b16 %v140
  %v277 = vunpack.c.h.b16 %v140
  %v278 = vunpack.c.l.b16 %v141
  %v279 = vunpack.c.h.b16 %v141
  %v280 = vunpack.c.l.b16 %v142
  %v281 = vunpack.c.h.b16 %v142
  %v282 = vunpack.c.l.b16 %v143
  %v283 = vunpack.c.h.b16 %v143
  %v284 = vpack.c.b16 %v278, %v276
  %v285 = vpack.c.b16 %v279, %v277
  %v286 = vpack.c.b16 %v282, %v280
  %v287 = vpack.c.b16 %v283, %v281
  %vm292 = vcmask 261120
  %v294 = vsel %vm292, %v271, 0
  %296 = vmatprep.subr.bf16.mxu0 %v285
  %297 = vmatpush1.bf16.msra.mxu0 %v284
  %298 = vmatprep.subr.bf16.mxu0 %v287
  %299 = vmatpush1.bf16.msra.mxu0 %v286
  %300 = vmatprep.subr.bf16.mxu0 0
  %301 = vmatpush1.bf16.msra.mxu0 0
  %302 = vmatprep.subr.bf16.mxu0 0
  %303 = vmatpush1.bf16.msra.mxu0 0
  %304 = vmatprep.subr.bf16.mxu0 0
  %305 = vmatpush1.bf16.msra.mxu0 0
  %306 = vmatprep.subr.bf16.mxu0 0
  %307 = vmatpush1.bf16.msra.mxu0 0
  %308 = vmatprep.subr.bf16.mxu0 0
  %309 = vmatpush1.bf16.msra.mxu0 0
  %310 = vmatprep.subr.bf16.mxu0 0
  %311 = vmatpush1.bf16.msra.mxu0 0
  %312 = vmatprep.subr.bf16.mxu0 0
  %313 = vmatpush1.bf16.msra.mxu0 0
  %314 = vmatprep.subr.bf16.mxu0 0
  %315 = vmatpush1.bf16.msra.mxu0 0
  %316 = vmatprep.subr.bf16.mxu0 0
  %317 = vmatpush1.bf16.msra.mxu0 0
  %318 = vmatprep.subr.bf16.mxu0 0
  %319 = vmatpush1.bf16.msra.mxu0 0
  %320 = vmatprep.subr.bf16.mxu0 0
  %321 = vmatpush1.bf16.msra.mxu0 0
  %322 = vmatprep.subr.bf16.mxu0 0
  %323 = vmatpush1.bf16.msra.mxu0 0
  %324 = vmatprep.subr.bf16.mxu0 0
  %325 = vmatpush1.bf16.msra.mxu0 0
  %326 = vmatprep.subr.bf16.mxu0 0
  %327 = vmatpush1.bf16.msra.mxu0 0
  %328 = vmatprep.mubr.bf16.mxu0 0
  %329 = vmatmul.mubr.bf16.gmra.mrb[0].mxu0 %v294
  %v330 = vpop.f32.mrb[0].mxu0
  %v331 = vadd.f32 0.0, %v330
  %v332 = vpop.f32.mrb[0].mxu0
  %v333 = vadd.f32 0.0, %v332
  %v334 = vpop.f32.mrb[0].mxu0
  %v335 = vpop.f32.mrb[0].mxu0
  %336 = vdwg.mxu0
  %v338 = vsel %vm185, %v268, 0
  %340 = vmatprep.subr.bf16.mxu0 %v170
  %341 = vmatpush1.bf16.msra.mxu0 %v169
  %342 = vmatprep.subr.bf16.mxu0 %v172
  %343 = vmatpush1.bf16.msra.mxu0 %v171
  %344 = vmatprep.subr.bf16.mxu0 %v174
  %345 = vmatpush1.bf16.msra.mxu0 %v173
  %346 = vmatprep.subr.bf16.mxu0 %v176
  %347 = vmatpush1.bf16.msra.mxu0 %v175
  %348 = vmatprep.subr.bf16.mxu0 0
  %349 = vmatpush1.bf16.msra.mxu0 0
  %350 = vmatprep.subr.bf16.mxu0 0
  %351 = vmatpush1.bf16.msra.mxu0 0
  %352 = vmatprep.subr.bf16.mxu0 0
  %353 = vmatpush1.bf16.msra.mxu0 0
  %354 = vmatprep.subr.bf16.mxu0 0
  %355 = vmatpush1.bf16.msra.mxu0 0
  %356 = vmatprep.subr.bf16.mxu0 0
  %357 = vmatpush1.bf16.msra.mxu0 0
  %358 = vmatprep.subr.bf16.mxu0 0
  %359 = vmatpush1.bf16.msra.mxu0 0
  %360 = vmatprep.subr.bf16.mxu0 0
  %361 = vmatpush1.bf16.msra.mxu0 0
  %362 = vmatprep.subr.bf16.mxu0 0
  %363 = vmatpush1.bf16.msra.mxu0 0
  %364 = vmatprep.subr.bf16.mxu0 0
  %365 = vmatpush1.bf16.msra.mxu0 0
  %366 = vmatprep.subr.bf16.mxu0 0
  %367 = vmatpush1.bf16.msra.mxu0 0
  %368 = vmatprep.subr.bf16.mxu0 0
  %369 = vmatpush1.bf16.msra.mxu0 0
  %370 = vmatprep.subr.bf16.mxu0 0
  %371 = vmatpush1.bf16.msra.mxu0 0
  %372 = vmatprep.mubr.bf16.mxu0 0
  %373 = vmatmul.mubr.bf16.gmra.mrb[0].mxu0 %v338
  %v374 = vpop.f32.mrb[0].mxu0
  %v375 = vadd.f32 0.0, %v374
  %v376 = vpop.f32.mrb[0].mxu0
  %v377 = vadd.f32 0.0, %v376
  %v378 = vpop.f32.mrb[0].mxu0
  %v379 = vpop.f32.mrb[0].mxu0
  %380 = vdwg.mxu0
  %v381 = vadd.f32 %v102, %v375
  %v382 = vadd.f32 %v103, %v377
  %v383 = vxor.u32 %v381, 2147483648
  %v384 = vxor.u32 %v382, 2147483648
  %v385 = vmul.f32 %v383, 1.442695
  %v386 = vpow.pop %v385
  %v387 = vmul.f32 %v384, 1.442695
  %v388 = vpow.pop %v387
  %v389 = vadd.f32 %v386, 1.0
  %v390 = vadd.f32 %v388, 1.0
  %v391 = vrcp.pop %v389
  %v392 = vmul.f32 1.0, %v391
  %v393 = vrcp.pop %v390
  %v394 = vmul.f32 1.0, %v393
  %v395 = vtanh.pop %v382
  %397 = vrot.lane.b32.xlu0 %v267, 64
  %v398 = vpop.permute.xlu0 %397
  %v400 = vmul.f32 %v392, %v398
  %402 = vrot.lane.b32.xlu0 %v395, 64
  %v403 = vpop.permute.xlu0 %402
  %v405 = vmul.f32 %v392, %v403
  %407 = vrot.lane.b32.xlu0 %v405, 64
  %v408 = vpop.permute.xlu0 %407
  %v410 = vadd.f32 %v400, %v408
  %v411 = vtanh.pop %v410
  %413 = vrot.lane.b32.xlu0 %v411, 64
  %v414 = vpop.permute.xlu0 %413
  %v416 = vmul.f32 %v394, %v414
  %v417 = vsel %vm82, %v416, %v262
  %419 = vrot.lane.b32.xlu0 %v410, 64
  %v420 = vpop.permute.xlu0 %419
  %v422 = vsel %vm82, %v420, %v267
  %v423 = vsel %vm82, %v416, 0.0
  %v424 = vpack.c.bf16 %v423, %v423
  %426 = vrot.lane.b32.xlu0 %v424, 96
  %v427 = vpop.permute.xlu0 %426
  %v429 = vsel %vm292, %v427, 0
  %431 = vmatprep.subr.bf16.mxu0 %v285
  %432 = vmatpush1.bf16.msra.mxu0 %v284
  %433 = vmatprep.subr.bf16.mxu0 %v287
  %434 = vmatpush1.bf16.msra.mxu0 %v286
  %435 = vmatprep.subr.bf16.mxu0 0
  %436 = vmatpush1.bf16.msra.mxu0 0
  %437 = vmatprep.subr.bf16.mxu0 0
  %438 = vmatpush1.bf16.msra.mxu0 0
  %439 = vmatprep.subr.bf16.mxu0 0
  %440 = vmatpush1.bf16.msra.mxu0 0
  %441 = vmatprep.subr.bf16.mxu0 0
  %442 = vmatpush1.bf16.msra.mxu0 0
  %443 = vmatprep.subr.bf16.mxu0 0
  %444 = vmatpush1.bf16.msra.mxu0 0
  %445 = vmatprep.subr.bf16.mxu0 0
  %446 = vmatpush1.bf16.msra.mxu0 0
  %447 = vmatprep.subr.bf16.mxu0 0
  %448 = vmatpush1.bf16.msra.mxu0 0
  %449 = vmatprep.subr.bf16.mxu0 0
  %450 = vmatpush1.bf16.msra.mxu0 0
  %451 = vmatprep.subr.bf16.mxu0 0
  %452 = vmatpush1.bf16.msra.mxu0 0
  %453 = vmatprep.subr.bf16.mxu0 0
  %454 = vmatpush1.bf16.msra.mxu0 0
  %455 = vmatprep.subr.bf16.mxu0 0
  %456 = vmatpush1.bf16.msra.mxu0 0
  %457 = vmatprep.subr.bf16.mxu0 0
  %458 = vmatpush1.bf16.msra.mxu0 0
  %459 = vmatprep.subr.bf16.mxu0 0
  %460 = vmatpush1.bf16.msra.mxu0 0
  %461 = vmatprep.subr.bf16.mxu0 0
  %462 = vmatpush1.bf16.msra.mxu0 0
  %463 = vmatprep.mubr.bf16.mxu0 0
  %464 = vmatmul.mubr.bf16.gmra.mrb[0].mxu0 %v429
  %v465 = vpop.f32.mrb[0].mxu0
  %v466 = vadd.f32 0.0, %v465
  %v467 = vpop.f32.mrb[0].mxu0
  %v468 = vadd.f32 0.0, %v467
  %v469 = vpop.f32.mrb[0].mxu0
  %v470 = vpop.f32.mrb[0].mxu0
  %471 = vdwg.mxu0
  %v472 = vpack.c.bf16 %v417, %v417
  %v474 = vsel %vm185, %v472, 0
  %476 = vmatprep.subr.bf16.mxu0 %v170
  %477 = vmatpush1.bf16.msra.mxu0 %v169
  %478 = vmatprep.subr.bf16.mxu0 %v172
  %479 = vmatpush1.bf16.msra.mxu0 %v171
  %480 = vmatprep.subr.bf16.mxu0 %v174
  %481 = vmatpush1.bf16.msra.mxu0 %v173
  %482 = vmatprep.subr.bf16.mxu0 %v176
  %483 = vmatpush1.bf16.msra.mxu0 %v175
  %484 = vmatprep.subr.bf16.mxu0 0
  %485 = vmatpush1.bf16.msra.mxu0 0
  %486 = vmatprep.subr.bf16.mxu0 0
  %487 = vmatpush1.bf16.msra.mxu0 0
  %488 = vmatprep.subr.bf16.mxu0 0
  %489 = vmatpush1.bf16.msra.mxu0 0
  %490 = vmatprep.subr.bf16.mxu0 0
  %491 = vmatpush1.bf16.msra.mxu0 0
  %492 = vmatprep.subr.bf16.mxu0 0
  %493 = vmatpush1.bf16.msra.mxu0 0
  %494 = vmatprep.subr.bf16.mxu0 0
  %495 = vmatpush1.bf16.msra.mxu0 0
  %496 = vmatprep.subr.bf16.mxu0 0
  %497 = vmatpush1.bf16.msra.mxu0 0
  %498 = vmatprep.subr.bf16.mxu0 0
  %499 = vmatpush1.bf16.msra.mxu0 0
  %500 = vmatprep.subr.bf16.mxu0 0
  %501 = vmatpush1.bf16.msra.mxu0 0
  %502 = vmatprep.subr.bf16.mxu0 0
  %503 = vmatpush1.bf16.msra.mxu0 0
  %504 = vmatprep.subr.bf16.mxu0 0
  %505 = vmatpush1.bf16.msra.mxu0 0
  %506 = vmatprep.subr.bf16.mxu0 0
  %507 = vmatpush1.bf16.msra.mxu0 0
  %508 = vmatprep.mubr.bf16.mxu0 0
  %509 = vmatmul.mubr.bf16.gmra.mrb[0].mxu0 %v474
  %v510 = vpop.f32.mrb[0].mxu0
  %v511 = vadd.f32 0.0, %v510
  %v512 = vpop.f32.mrb[0].mxu0
  %v513 = vadd.f32 0.0, %v512
  %v514 = vpop.f32.mrb[0].mxu0
  %v515 = vpop.f32.mrb[0].mxu0
  %516 = vdwg.mxu0
  %v517 = vadd.f32 %v105, %v511
  %v518 = vadd.f32 %v106, %v513
  %v519 = vxor.u32 %v517, 2147483648
  %v520 = vxor.u32 %v518, 2147483648
  %v521 = vmul.f32 %v519, 1.442695
  %v522 = vpow.pop %v521
  %v523 = vmul.f32 %v520, 1.442695
  %v524 = vpow.pop %v523
  %v525 = vadd.f32 %v522, 1.0
  %v526 = vadd.f32 %v524, 1.0
  %v527 = vrcp.pop %v525
  %v528 = vmul.f32 1.0, %v527
  %v529 = vrcp.pop %v526
  %v530 = vmul.f32 1.0, %v529
  %v531 = vtanh.pop %v518
  %533 = vrot.lane.b32.xlu0 %v422, 64
  %v534 = vpop.permute.xlu0 %533
  %v536 = vmul.f32 %v528, %v534
  %538 = vrot.lane.b32.xlu0 %v531, 64
  %v539 = vpop.permute.xlu0 %538
  %v541 = vmul.f32 %v528, %v539
  %543 = vrot.lane.b32.xlu0 %v541, 64
  %v544 = vpop.permute.xlu0 %543
  %v546 = vadd.f32 %v536, %v544
  %v547 = vtanh.pop %v546
  %549 = vrot.lane.b32.xlu0 %v547, 64
  %v550 = vpop.permute.xlu0 %549
  %v552 = vmul.f32 %v530, %v550
  %v553 = vsel %vm84, %v552, %v417
  %555 = vrot.lane.b32.xlu0 %v546, 64
  %v556 = vpop.permute.xlu0 %555
  %v558 = vsel %vm84, %v556, %v422
  %v559 = vsel %vm84, %v552, 0.0
  %v560 = vpack.c.bf16 %v559, %v559
  %562 = vrot.lane.b32.xlu0 %v560, 96
  %v563 = vpop.permute.xlu0 %562
  %v565 = vsel %vm292, %v563, 0
  %567 = vmatprep.subr.bf16.mxu0 %v285
  %568 = vmatpush1.bf16.msra.mxu0 %v284
  %569 = vmatprep.subr.bf16.mxu0 %v287
  %570 = vmatpush1.bf16.msra.mxu0 %v286
  %571 = vmatprep.subr.bf16.mxu0 0
  %572 = vmatpush1.bf16.msra.mxu0 0
  %573 = vmatprep.subr.bf16.mxu0 0
  %574 = vmatpush1.bf16.msra.mxu0 0
  %575 = vmatprep.subr.bf16.mxu0 0
  %576 = vmatpush1.bf16.msra.mxu0 0
  %577 = vmatprep.subr.bf16.mxu0 0
  %578 = vmatpush1.bf16.msra.mxu0 0
  %579 = vmatprep.subr.bf16.mxu0 0
  %580 = vmatpush1.bf16.msra.mxu0 0
  %581 = vmatprep.subr.bf16.mxu0 0
  %582 = vmatpush1.bf16.msra.mxu0 0
  %583 = vmatprep.subr.bf16.mxu0 0
  %584 = vmatpush1.bf16.msra.mxu0 0
  %585 = vmatprep.subr.bf16.mxu0 0
  %586 = vmatpush1.bf16.msra.mxu0 0
  %587 = vmatprep.subr.bf16.mxu0 0
  %588 = vmatpush1.bf16.msra.mxu0 0
  %589 = vmatprep.subr.bf16.mxu0 0
  %590 = vmatpush1.bf16.msra.mxu0 0
  %591 = vmatprep.subr.bf16.mxu0 0
  %592 = vmatpush1.bf16.msra.mxu0 0
  %593 = vmatprep.subr.bf16.mxu0 0
  %594 = vmatpush1.bf16.msra.mxu0 0
  %595 = vmatprep.subr.bf16.mxu0 0
  %596 = vmatpush1.bf16.msra.mxu0 0
  %597 = vmatprep.subr.bf16.mxu0 0
  %598 = vmatpush1.bf16.msra.mxu0 0
  %599 = vmatprep.mubr.bf16.mxu0 0
  %600 = vmatmul.mubr.bf16.gmra.mrb[0].mxu0 %v565
  %v601 = vpop.f32.mrb[0].mxu0
  %v602 = vadd.f32 0.0, %v601
  %v603 = vpop.f32.mrb[0].mxu0
  %v604 = vadd.f32 0.0, %v603
  %v605 = vpop.f32.mrb[0].mxu0
  %v606 = vpop.f32.mrb[0].mxu0
  %607 = vdwg.mxu0
  %v608 = vpack.c.bf16 %v553, %v553
  %v610 = vsel %vm185, %v608, 0
  %612 = vmatprep.subr.bf16.mxu0 %v170
  %613 = vmatpush1.bf16.msra.mxu0 %v169
  %614 = vmatprep.subr.bf16.mxu0 %v172
  %615 = vmatpush1.bf16.msra.mxu0 %v171
  %616 = vmatprep.subr.bf16.mxu0 %v174
  %617 = vmatpush1.bf16.msra.mxu0 %v173
  %618 = vmatprep.subr.bf16.mxu0 %v176
  %619 = vmatpush1.bf16.msra.mxu0 %v175
  %620 = vmatprep.subr.bf16.mxu0 0
  %621 = vmatpush1.bf16.msra.mxu0 0
  %622 = vmatprep.subr.bf16.mxu0 0
  %623 = vmatpush1.bf16.msra.mxu0 0
  %624 = vmatprep.subr.bf16.mxu0 0
  %625 = vmatpush1.bf16.msra.mxu0 0
  %626 = vmatprep.subr.bf16.mxu0 0
  %627 = vmatpush1.bf16.msra.mxu0 0
  %628 = vmatprep.subr.bf16.mxu0 0
  %629 = vmatpush1.bf16.msra.mxu0 0
  %630 = vmatprep.subr.bf16.mxu0 0
  %631 = vmatpush1.bf16.msra.mxu0 0
  %632 = vmatprep.subr.bf16.mxu0 0
  %633 = vmatpush1.bf16.msra.mxu0 0
  %634 = vmatprep.subr.bf16.mxu0 0
  %635 = vmatpush1.bf16.msra.mxu0 0
  %636 = vmatprep.subr.bf16.mxu0 0
  %637 = vmatpush1.bf16.msra.mxu0 0
  %638 = vmatprep.subr.bf16.mxu0 0
  %639 = vmatpush1.bf16.msra.mxu0 0
  %640 = vmatprep.subr.bf16.mxu0 0
  %641 = vmatpush1.bf16.msra.mxu0 0
  %642 = vmatprep.subr.bf16.mxu0 0
  %643 = vmatpush1.bf16.msra.mxu0 0
  %644 = vmatprep.mubr.bf16.mxu0 0
  %645 = vmatmul.mubr.bf16.gmra.mrb[0].mxu0 %v610
  %v646 = vpop.f32.mrb[0].mxu0
  %v647 = vadd.f32 0.0, %v646
  %v648 = vpop.f32.mrb[0].mxu0
  %v649 = vadd.f32 0.0, %v648
  %v650 = vpop.f32.mrb[0].mxu0
  %v651 = vpop.f32.mrb[0].mxu0
  %652 = vdwg.mxu0
  %v653 = vadd.f32 %v108, %v647
  %v654 = vadd.f32 %v109, %v649
  %v655 = vxor.u32 %v653, 2147483648
  %v656 = vxor.u32 %v654, 2147483648
  %v657 = vmul.f32 %v655, 1.442695
  %v658 = vpow.pop %v657
  %v659 = vmul.f32 %v656, 1.442695
  %v660 = vpow.pop %v659
  %v661 = vadd.f32 %v658, 1.0
  %v662 = vadd.f32 %v660, 1.0
  %v663 = vrcp.pop %v661
  %v664 = vmul.f32 1.0, %v663
  %v665 = vrcp.pop %v662
  %v666 = vmul.f32 1.0, %v665
  %v667 = vtanh.pop %v654
  %669 = vrot.lane.b32.xlu0 %v558, 64
  %v670 = vpop.permute.xlu0 %669
  %v672 = vmul.f32 %v664, %v670
  %674 = vrot.lane.b32.xlu0 %v667, 64
  %v675 = vpop.permute.xlu0 %674
  %v677 = vmul.f32 %v664, %v675
  %679 = vrot.lane.b32.xlu0 %v677, 64
  %v680 = vpop.permute.xlu0 %679
  %v682 = vadd.f32 %v672, %v680
  %v683 = vtanh.pop %v682
  %685 = vrot.lane.b32.xlu0 %v683, 64
  %v686 = vpop.permute.xlu0 %685
  %v688 = vmul.f32 %v666, %v686
  %v689 = vsel %vm86, %v688, %v553
  %691 = vrot.lane.b32.xlu0 %v682, 64
  %v692 = vpop.permute.xlu0 %691
  %v694 = vsel %vm86, %v692, %v558
  %v695 = vsel %vm86, %v688, 0.0
  %v696 = vpack.c.bf16 %v695, %v695
  %698 = vrot.lane.b32.xlu0 %v696, 96
  %v699 = vpop.permute.xlu0 %698
  %v701 = vsel %vm292, %v699, 0
  %703 = vmatprep.subr.bf16.mxu0 %v285
  %704 = vmatpush1.bf16.msra.mxu0 %v284
  %705 = vmatprep.subr.bf16.mxu0 %v287
  %706 = vmatpush1.bf16.msra.mxu0 %v286
  %707 = vmatprep.subr.bf16.mxu0 0
  %708 = vmatpush1.bf16.msra.mxu0 0
  %709 = vmatprep.subr.bf16.mxu0 0
  %710 = vmatpush1.bf16.msra.mxu0 0
  %711 = vmatprep.subr.bf16.mxu0 0
  %712 = vmatpush1.bf16.msra.mxu0 0
  %713 = vmatprep.subr.bf16.mxu0 0
  %714 = vmatpush1.bf16.msra.mxu0 0
  %715 = vmatprep.subr.bf16.mxu0 0
  %716 = vmatpush1.bf16.msra.mxu0 0
  %717 = vmatprep.subr.bf16.mxu0 0
  %718 = vmatpush1.bf16.msra.mxu0 0
  %719 = vmatprep.subr.bf16.mxu0 0
  %720 = vmatpush1.bf16.msra.mxu0 0
  %721 = vmatprep.subr.bf16.mxu0 0
  %722 = vmatpush1.bf16.msra.mxu0 0
  %723 = vmatprep.subr.bf16.mxu0 0
  %724 = vmatpush1.bf16.msra.mxu0 0
  %725 = vmatprep.subr.bf16.mxu0 0
  %726 = vmatpush1.bf16.msra.mxu0 0
  %727 = vmatprep.subr.bf16.mxu0 0
  %728 = vmatpush1.bf16.msra.mxu0 0
  %729 = vmatprep.subr.bf16.mxu0 0
  %730 = vmatpush1.bf16.msra.mxu0 0
  %731 = vmatprep.subr.bf16.mxu0 0
  %732 = vmatpush1.bf16.msra.mxu0 0
  %733 = vmatprep.subr.bf16.mxu0 0
  %734 = vmatpush1.bf16.msra.mxu0 0
  %735 = vmatprep.mubr.bf16.mxu0 0
  %736 = vmatmul.mubr.bf16.gmra.mrb[0].mxu0 %v701
  %v737 = vpop.f32.mrb[0].mxu0
  %v738 = vadd.f32 0.0, %v737
  %v739 = vpop.f32.mrb[0].mxu0
  %v740 = vadd.f32 0.0, %v739
  %v741 = vpop.f32.mrb[0].mxu0
  %v742 = vpop.f32.mrb[0].mxu0
  %743 = vdwg.mxu0
  %v744 = vpack.c.bf16 %v689, %v689
  %v746 = vsel %vm185, %v744, 0
  %748 = vmatprep.subr.bf16.mxu0 %v170
  %749 = vmatpush1.bf16.msra.mxu0 %v169
  %750 = vmatprep.subr.bf16.mxu0 %v172
  %751 = vmatpush1.bf16.msra.mxu0 %v171
  %752 = vmatprep.subr.bf16.mxu0 %v174
  %753 = vmatpush1.bf16.msra.mxu0 %v173
  %754 = vmatprep.subr.bf16.mxu0 %v176
  %755 = vmatpush1.bf16.msra.mxu0 %v175
  %756 = vmatprep.subr.bf16.mxu0 0
  %757 = vmatpush1.bf16.msra.mxu0 0
  %758 = vmatprep.subr.bf16.mxu0 0
  %759 = vmatpush1.bf16.msra.mxu0 0
  %760 = vmatprep.subr.bf16.mxu0 0
  %761 = vmatpush1.bf16.msra.mxu0 0
  %762 = vmatprep.subr.bf16.mxu0 0
  %763 = vmatpush1.bf16.msra.mxu0 0
  %764 = vmatprep.subr.bf16.mxu0 0
  %765 = vmatpush1.bf16.msra.mxu0 0
  %766 = vmatprep.subr.bf16.mxu0 0
  %767 = vmatpush1.bf16.msra.mxu0 0
  %768 = vmatprep.subr.bf16.mxu0 0
  %769 = vmatpush1.bf16.msra.mxu0 0
  %770 = vmatprep.subr.bf16.mxu0 0
  %771 = vmatpush1.bf16.msra.mxu0 0
  %772 = vmatprep.subr.bf16.mxu0 0
  %773 = vmatpush1.bf16.msra.mxu0 0
  %774 = vmatprep.subr.bf16.mxu0 0
  %775 = vmatpush1.bf16.msra.mxu0 0
  %776 = vmatprep.subr.bf16.mxu0 0
  %777 = vmatpush1.bf16.msra.mxu0 0
  %778 = vmatprep.subr.bf16.mxu0 0
  %779 = vmatpush1.bf16.msra.mxu0 0
  %780 = vmatprep.mubr.bf16.mxu0 0
  %781 = vmatmul.mubr.bf16.gmra.mrb[0].mxu0 %v746
  %v782 = vpop.f32.mrb[0].mxu0
  %v783 = vadd.f32 0.0, %v782
  %v784 = vpop.f32.mrb[0].mxu0
  %v785 = vadd.f32 0.0, %v784
  %v786 = vpop.f32.mrb[0].mxu0
  %v787 = vpop.f32.mrb[0].mxu0
  %788 = vdwg.mxu0
  %v789 = vadd.f32 %v111, %v783
  %v790 = vadd.f32 %v112, %v785
  %v791 = vxor.u32 %v789, 2147483648
  %v792 = vxor.u32 %v790, 2147483648
  %v793 = vmul.f32 %v791, 1.442695
  %v794 = vpow.pop %v793
  %v795 = vmul.f32 %v792, 1.442695
  %v796 = vpow.pop %v795
  %v797 = vadd.f32 %v794, 1.0
  %v798 = vadd.f32 %v796, 1.0
  %v799 = vrcp.pop %v797
  %v800 = vmul.f32 1.0, %v799
  %v801 = vrcp.pop %v798
  %v802 = vmul.f32 1.0, %v801
  %v803 = vtanh.pop %v790
  %805 = vrot.lane.b32.xlu0 %v694, 64
  %v806 = vpop.permute.xlu0 %805
  %v808 = vmul.f32 %v800, %v806
  %810 = vrot.lane.b32.xlu0 %v803, 64
  %v811 = vpop.permute.xlu0 %810
  %v813 = vmul.f32 %v800, %v811
  %815 = vrot.lane.b32.xlu0 %v813, 64
  %v816 = vpop.permute.xlu0 %815
  %v818 = vadd.f32 %v808, %v816
  %v819 = vtanh.pop %v818
  %821 = vrot.lane.b32.xlu0 %v819, 64
  %v822 = vpop.permute.xlu0 %821
  %v824 = vmul.f32 %v802, %v822
  %v825 = vsel %vm88, %v824, %v689
  %827 = vrot.lane.b32.xlu0 %v818, 64
  %v828 = vpop.permute.xlu0 %827
  %v830 = vsel %vm88, %v828, %v694
  %v831 = vsel %vm88, %v824, 0.0
  %v832 = vpack.c.bf16 %v831, %v831
  %834 = vrot.lane.b32.xlu0 %v832, 96
  %v835 = vpop.permute.xlu0 %834
  %v837 = vsel %vm292, %v835, 0
  %839 = vmatprep.subr.bf16.mxu0 %v285
  %840 = vmatpush1.bf16.msra.mxu0 %v284
  %841 = vmatprep.subr.bf16.mxu0 %v287
  %842 = vmatpush1.bf16.msra.mxu0 %v286
  %843 = vmatprep.subr.bf16.mxu0 0
  %844 = vmatpush1.bf16.msra.mxu0 0
  %845 = vmatprep.subr.bf16.mxu0 0
  %846 = vmatpush1.bf16.msra.mxu0 0
  %847 = vmatprep.subr.bf16.mxu0 0
  %848 = vmatpush1.bf16.msra.mxu0 0
  %849 = vmatprep.subr.bf16.mxu0 0
  %850 = vmatpush1.bf16.msra.mxu0 0
  %851 = vmatprep.subr.bf16.mxu0 0
  %852 = vmatpush1.bf16.msra.mxu0 0
  %853 = vmatprep.subr.bf16.mxu0 0
  %854 = vmatpush1.bf16.msra.mxu0 0
  %855 = vmatprep.subr.bf16.mxu0 0
  %856 = vmatpush1.bf16.msra.mxu0 0
  %857 = vmatprep.subr.bf16.mxu0 0
  %858 = vmatpush1.bf16.msra.mxu0 0
  %859 = vmatprep.subr.bf16.mxu0 0
  %860 = vmatpush1.bf16.msra.mxu0 0
  %861 = vmatprep.subr.bf16.mxu0 0
  %862 = vmatpush1.bf16.msra.mxu0 0
  %863 = vmatprep.subr.bf16.mxu0 0
  %864 = vmatpush1.bf16.msra.mxu0 0
  %865 = vmatprep.subr.bf16.mxu0 0
  %866 = vmatpush1.bf16.msra.mxu0 0
  %867 = vmatprep.subr.bf16.mxu0 0
  %868 = vmatpush1.bf16.msra.mxu0 0
  %869 = vmatprep.subr.bf16.mxu0 0
  %870 = vmatpush1.bf16.msra.mxu0 0
  %871 = vmatprep.mubr.bf16.mxu0 0
  %872 = vmatmul.mubr.bf16.gmra.mrb[0].mxu0 %v837
  %v873 = vpop.f32.mrb[0].mxu0
  %v874 = vadd.f32 0.0, %v873
  %v875 = vpop.f32.mrb[0].mxu0
  %v876 = vadd.f32 0.0, %v875
  %v877 = vpop.f32.mrb[0].mxu0
  %v878 = vpop.f32.mrb[0].mxu0
  %879 = vdwg.mxu0
  %v880 = vpack.c.bf16 %v825, %v825
  %v882 = vsel %vm185, %v880, 0
  %884 = vmatprep.subr.bf16.mxu0 %v170
  %885 = vmatpush1.bf16.msra.mxu0 %v169
  %886 = vmatprep.subr.bf16.mxu0 %v172
  %887 = vmatpush1.bf16.msra.mxu0 %v171
  %888 = vmatprep.subr.bf16.mxu0 %v174
  %889 = vmatpush1.bf16.msra.mxu0 %v173
  %890 = vmatprep.subr.bf16.mxu0 %v176
  %891 = vmatpush1.bf16.msra.mxu0 %v175
  %892 = vmatprep.subr.bf16.mxu0 0
  %893 = vmatpush1.bf16.msra.mxu0 0
  %894 = vmatprep.subr.bf16.mxu0 0
  %895 = vmatpush1.bf16.msra.mxu0 0
  %896 = vmatprep.subr.bf16.mxu0 0
  %897 = vmatpush1.bf16.msra.mxu0 0
  %898 = vmatprep.subr.bf16.mxu0 0
  %899 = vmatpush1.bf16.msra.mxu0 0
  %900 = vmatprep.subr.bf16.mxu0 0
  %901 = vmatpush1.bf16.msra.mxu0 0
  %902 = vmatprep.subr.bf16.mxu0 0
  %903 = vmatpush1.bf16.msra.mxu0 0
  %904 = vmatprep.subr.bf16.mxu0 0
  %905 = vmatpush1.bf16.msra.mxu0 0
  %906 = vmatprep.subr.bf16.mxu0 0
  %907 = vmatpush1.bf16.msra.mxu0 0
  %908 = vmatprep.subr.bf16.mxu0 0
  %909 = vmatpush1.bf16.msra.mxu0 0
  %910 = vmatprep.subr.bf16.mxu0 0
  %911 = vmatpush1.bf16.msra.mxu0 0
  %912 = vmatprep.subr.bf16.mxu0 0
  %913 = vmatpush1.bf16.msra.mxu0 0
  %914 = vmatprep.subr.bf16.mxu0 0
  %915 = vmatpush1.bf16.msra.mxu0 0
  %916 = vmatprep.mubr.bf16.mxu0 0
  %917 = vmatmul.mubr.bf16.gmra.mrb[0].mxu0 %v882
  %v918 = vpop.f32.mrb[0].mxu0
  %v919 = vadd.f32 0.0, %v918
  %v920 = vpop.f32.mrb[0].mxu0
  %v921 = vadd.f32 0.0, %v920
  %v922 = vpop.f32.mrb[0].mxu0
  %v923 = vpop.f32.mrb[0].mxu0
  %924 = vdwg.mxu0
  %v925 = vadd.f32 %v114, %v919
  %v926 = vadd.f32 %v115, %v921
  %v927 = vxor.u32 %v925, 2147483648
  %v928 = vxor.u32 %v926, 2147483648
  %v929 = vmul.f32 %v927, 1.442695
  %v930 = vpow.pop %v929
  %v931 = vmul.f32 %v928, 1.442695
  %v932 = vpow.pop %v931
  %v933 = vadd.f32 %v930, 1.0
  %v934 = vadd.f32 %v932, 1.0
  %v935 = vrcp.pop %v933
  %v936 = vmul.f32 1.0, %v935
  %v937 = vrcp.pop %v934
  %v938 = vmul.f32 1.0, %v937
  %v939 = vtanh.pop %v926
  %941 = vrot.lane.b32.xlu0 %v830, 64
  %v942 = vpop.permute.xlu0 %941
  %v944 = vmul.f32 %v936, %v942
  %946 = vrot.lane.b32.xlu0 %v939, 64
  %v947 = vpop.permute.xlu0 %946
  %v949 = vmul.f32 %v936, %v947
  %951 = vrot.lane.b32.xlu0 %v949, 64
  %v952 = vpop.permute.xlu0 %951
  %v954 = vadd.f32 %v944, %v952
  %v955 = vtanh.pop %v954
  %957 = vrot.lane.b32.xlu0 %v955, 64
  %v958 = vpop.permute.xlu0 %957
  %v960 = vmul.f32 %v938, %v958
  %v961 = vsel %vm90, %v960, %v825
  %963 = vrot.lane.b32.xlu0 %v954, 64
  %v964 = vpop.permute.xlu0 %963
  %v966 = vsel %vm90, %v964, %v830
  %v967 = vsel %vm90, %v960, 0.0
  %v968 = vpack.c.bf16 %v967, %v967
  %970 = vrot.lane.b32.xlu0 %v968, 96
  %v971 = vpop.permute.xlu0 %970
  %v973 = vsel %vm292, %v971, 0
  %975 = vmatprep.subr.bf16.mxu0 %v285
  %976 = vmatpush1.bf16.msra.mxu0 %v284
  %977 = vmatprep.subr.bf16.mxu0 %v287
  %978 = vmatpush1.bf16.msra.mxu0 %v286
  %979 = vmatprep.subr.bf16.mxu0 0
  %980 = vmatpush1.bf16.msra.mxu0 0
  %981 = vmatprep.subr.bf16.mxu0 0
  %982 = vmatpush1.bf16.msra.mxu0 0
  %983 = vmatprep.subr.bf16.mxu0 0
  %984 = vmatpush1.bf16.msra.mxu0 0
  %985 = vmatprep.subr.bf16.mxu0 0
  %986 = vmatpush1.bf16.msra.mxu0 0
  %987 = vmatprep.subr.bf16.mxu0 0
  %988 = vmatpush1.bf16.msra.mxu0 0
  %989 = vmatprep.subr.bf16.mxu0 0
  %990 = vmatpush1.bf16.msra.mxu0 0
  %991 = vmatprep.subr.bf16.mxu0 0
  %992 = vmatpush1.bf16.msra.mxu0 0
  %993 = vmatprep.subr.bf16.mxu0 0
  %994 = vmatpush1.bf16.msra.mxu0 0
  %995 = vmatprep.subr.bf16.mxu0 0
  %996 = vmatpush1.bf16.msra.mxu0 0
  %997 = vmatprep.subr.bf16.mxu0 0
  %998 = vmatpush1.bf16.msra.mxu0 0
  %999 = vmatprep.subr.bf16.mxu0 0
  %1000 = vmatpush1.bf16.msra.mxu0 0
  %1001 = vmatprep.subr.bf16.mxu0 0
  %1002 = vmatpush1.bf16.msra.mxu0 0
  %1003 = vmatprep.subr.bf16.mxu0 0
  %1004 = vmatpush1.bf16.msra.mxu0 0
  %1005 = vmatprep.subr.bf16.mxu0 0
  %1006 = vmatpush1.bf16.msra.mxu0 0
  %1007 = vmatprep.mubr.bf16.mxu0 0
  %1008 = vmatmul.mubr.bf16.gmra.mrb[0].mxu0 %v973
  %v1009 = vpop.f32.mrb[0].mxu0
  %v1010 = vadd.f32 0.0, %v1009
  %v1011 = vpop.f32.mrb[0].mxu0
  %v1012 = vadd.f32 0.0, %v1011
  %v1013 = vpop.f32.mrb[0].mxu0
  %v1014 = vpop.f32.mrb[0].mxu0
  %1015 = vdwg.mxu0
  %v1016 = vpack.c.bf16 %v961, %v961
  %v1018 = vsel %vm185, %v1016, 0
  %1020 = vmatprep.subr.bf16.mxu0 %v170
  %1021 = vmatpush1.bf16.msra.mxu0 %v169
  %1022 = vmatprep.subr.bf16.mxu0 %v172
  %1023 = vmatpush1.bf16.msra.mxu0 %v171
  %1024 = vmatprep.subr.bf16.mxu0 %v174
  %1025 = vmatpush1.bf16.msra.mxu0 %v173
  %1026 = vmatprep.subr.bf16.mxu0 %v176
  %1027 = vmatpush1.bf16.msra.mxu0 %v175
  %1028 = vmatprep.subr.bf16.mxu0 0
  %1029 = vmatpush1.bf16.msra.mxu0 0
  %1030 = vmatprep.subr.bf16.mxu0 0
  %1031 = vmatpush1.bf16.msra.mxu0 0
  %1032 = vmatprep.subr.bf16.mxu0 0
  %1033 = vmatpush1.bf16.msra.mxu0 0
  %1034 = vmatprep.subr.bf16.mxu0 0
  %1035 = vmatpush1.bf16.msra.mxu0 0
  %1036 = vmatprep.subr.bf16.mxu0 0
  %1037 = vmatpush1.bf16.msra.mxu0 0
  %1038 = vmatprep.subr.bf16.mxu0 0
  %1039 = vmatpush1.bf16.msra.mxu0 0
  %1040 = vmatprep.subr.bf16.mxu0 0
  %1041 = vmatpush1.bf16.msra.mxu0 0
  %1042 = vmatprep.subr.bf16.mxu0 0
  %1043 = vmatpush1.bf16.msra.mxu0 0
  %1044 = vmatprep.subr.bf16.mxu0 0
  %1045 = vmatpush1.bf16.msra.mxu0 0
  %1046 = vmatprep.subr.bf16.mxu0 0
  %1047 = vmatpush1.bf16.msra.mxu0 0
  %1048 = vmatprep.subr.bf16.mxu0 0
  %1049 = vmatpush1.bf16.msra.mxu0 0
  %1050 = vmatprep.subr.bf16.mxu0 0
  %1051 = vmatpush1.bf16.msra.mxu0 0
  %1052 = vmatprep.mubr.bf16.mxu0 0
  %1053 = vmatmul.mubr.bf16.gmra.mrb[0].mxu0 %v1018
  %v1054 = vpop.f32.mrb[0].mxu0
  %v1055 = vadd.f32 0.0, %v1054
  %v1056 = vpop.f32.mrb[0].mxu0
  %v1057 = vadd.f32 0.0, %v1056
  %v1058 = vpop.f32.mrb[0].mxu0
  %v1059 = vpop.f32.mrb[0].mxu0
  %1060 = vdwg.mxu0
  %v1061 = vadd.f32 %v117, %v1055
  %v1062 = vadd.f32 %v118, %v1057
  %v1063 = vxor.u32 %v1061, 2147483648
  %v1064 = vxor.u32 %v1062, 2147483648
  %v1065 = vmul.f32 %v1063, 1.442695
  %v1066 = vpow.pop %v1065
  %v1067 = vmul.f32 %v1064, 1.442695
  %v1068 = vpow.pop %v1067
  %v1069 = vadd.f32 %v1066, 1.0
  %v1070 = vadd.f32 %v1068, 1.0
  %v1071 = vrcp.pop %v1069
  %v1072 = vmul.f32 1.0, %v1071
  %v1073 = vrcp.pop %v1070
  %v1074 = vmul.f32 1.0, %v1073
  %v1075 = vtanh.pop %v1062
  %1077 = vrot.lane.b32.xlu0 %v966, 64
  %v1078 = vpop.permute.xlu0 %1077
  %v1080 = vmul.f32 %v1072, %v1078
  %1082 = vrot.lane.b32.xlu0 %v1075, 64
  %v1083 = vpop.permute.xlu0 %1082
  %v1085 = vmul.f32 %v1072, %v1083
  %1087 = vrot.lane.b32.xlu0 %v1085, 64
  %v1088 = vpop.permute.xlu0 %1087
  %v1090 = vadd.f32 %v1080, %v1088
  %v1091 = vtanh.pop %v1090
  %1093 = vrot.lane.b32.xlu0 %v1091, 64
  %v1094 = vpop.permute.xlu0 %1093
  %v1096 = vmul.f32 %v1074, %v1094
  %v1097 = vsel %vm92, %v1096, %v961
  %1099 = vrot.lane.b32.xlu0 %v1090, 64
  %v1100 = vpop.permute.xlu0 %1099
  %v1102 = vsel %vm92, %v1100, %v966
  %v1103 = vsel %vm92, %v1096, 0.0
  %v1104 = vpack.c.bf16 %v1103, %v1103
  %1106 = vrot.lane.b32.xlu0 %v1104, 96
  %v1107 = vpop.permute.xlu0 %1106
  %v1109 = vsel %vm292, %v1107, 0
  %1111 = vmatprep.subr.bf16.mxu0 %v285
  %1112 = vmatpush1.bf16.msra.mxu0 %v284
  %1113 = vmatprep.subr.bf16.mxu0 %v287
  %1114 = vmatpush1.bf16.msra.mxu0 %v286
  %1115 = vmatprep.subr.bf16.mxu0 0
  %1116 = vmatpush1.bf16.msra.mxu0 0
  %1117 = vmatprep.subr.bf16.mxu0 0
  %1118 = vmatpush1.bf16.msra.mxu0 0
  %1119 = vmatprep.subr.bf16.mxu0 0
  %1120 = vmatpush1.bf16.msra.mxu0 0
  %1121 = vmatprep.subr.bf16.mxu0 0
  %1122 = vmatpush1.bf16.msra.mxu0 0
  %1123 = vmatprep.subr.bf16.mxu0 0
  %1124 = vmatpush1.bf16.msra.mxu0 0
  %1125 = vmatprep.subr.bf16.mxu0 0
  %1126 = vmatpush1.bf16.msra.mxu0 0
  %1127 = vmatprep.subr.bf16.mxu0 0
  %1128 = vmatpush1.bf16.msra.mxu0 0
  %1129 = vmatprep.subr.bf16.mxu0 0
  %1130 = vmatpush1.bf16.msra.mxu0 0
  %1131 = vmatprep.subr.bf16.mxu0 0
  %1132 = vmatpush1.bf16.msra.mxu0 0
  %1133 = vmatprep.subr.bf16.mxu0 0
  %1134 = vmatpush1.bf16.msra.mxu0 0
  %1135 = vmatprep.subr.bf16.mxu0 0
  %1136 = vmatpush1.bf16.msra.mxu0 0
  %1137 = vmatprep.subr.bf16.mxu0 0
  %1138 = vmatpush1.bf16.msra.mxu0 0
  %1139 = vmatprep.subr.bf16.mxu0 0
  %1140 = vmatpush1.bf16.msra.mxu0 0
  %1141 = vmatprep.subr.bf16.mxu0 0
  %1142 = vmatpush1.bf16.msra.mxu0 0
  %1143 = vmatprep.mubr.bf16.mxu0 0
  %1144 = vmatmul.mubr.bf16.gmra.mrb[0].mxu0 %v1109
  %v1145 = vpop.f32.mrb[0].mxu0
  %v1146 = vadd.f32 0.0, %v1145
  %v1147 = vpop.f32.mrb[0].mxu0
  %v1148 = vadd.f32 0.0, %v1147
  %v1149 = vpop.f32.mrb[0].mxu0
  %v1150 = vpop.f32.mrb[0].mxu0
  %1151 = vdwg.mxu0
  %v1152 = vpack.c.bf16 %v1097, %v1097
  %v1154 = vsel %vm185, %v1152, 0
  %1156 = vmatprep.subr.bf16.mxu0 %v170
  %1157 = vmatpush1.bf16.msra.mxu0 %v169
  %1158 = vmatprep.subr.bf16.mxu0 %v172
  %1159 = vmatpush1.bf16.msra.mxu0 %v171
  %1160 = vmatprep.subr.bf16.mxu0 %v174
  %1161 = vmatpush1.bf16.msra.mxu0 %v173
  %1162 = vmatprep.subr.bf16.mxu0 %v176
  %1163 = vmatpush1.bf16.msra.mxu0 %v175
  %1164 = vmatprep.subr.bf16.mxu0 0
  %1165 = vmatpush1.bf16.msra.mxu0 0
  %1166 = vmatprep.subr.bf16.mxu0 0
  %1167 = vmatpush1.bf16.msra.mxu0 0
  %1168 = vmatprep.subr.bf16.mxu0 0
  %1169 = vmatpush1.bf16.msra.mxu0 0
  %1170 = vmatprep.subr.bf16.mxu0 0
  %1171 = vmatpush1.bf16.msra.mxu0 0
  %1172 = vmatprep.subr.bf16.mxu0 0
  %1173 = vmatpush1.bf16.msra.mxu0 0
  %1174 = vmatprep.subr.bf16.mxu0 0
  %1175 = vmatpush1.bf16.msra.mxu0 0
  %1176 = vmatprep.subr.bf16.mxu0 0
  %1177 = vmatpush1.bf16.msra.mxu0 0
  %1178 = vmatprep.subr.bf16.mxu0 0
  %1179 = vmatpush1.bf16.msra.mxu0 0
  %1180 = vmatprep.subr.bf16.mxu0 0
  %1181 = vmatpush1.bf16.msra.mxu0 0
  %1182 = vmatprep.subr.bf16.mxu0 0
  %1183 = vmatpush1.bf16.msra.mxu0 0
  %1184 = vmatprep.subr.bf16.mxu0 0
  %1185 = vmatpush1.bf16.msra.mxu0 0
  %1186 = vmatprep.subr.bf16.mxu0 0
  %1187 = vmatpush1.bf16.msra.mxu0 0
  %1188 = vmatprep.mubr.bf16.mxu0 0
  %1189 = vmatmul.mubr.bf16.gmra.mrb[0].mxu0 %v1154
  %v1190 = vpop.f32.mrb[0].mxu0
  %v1191 = vadd.f32 0.0, %v1190
  %v1192 = vpop.f32.mrb[0].mxu0
  %v1193 = vadd.f32 0.0, %v1192
  %v1194 = vpop.f32.mrb[0].mxu0
  %v1195 = vpop.f32.mrb[0].mxu0
  %1196 = vdwg.mxu0
  %v1197 = vadd.f32 %v120, %v1191
  %v1198 = vadd.f32 %v121, %v1193
  %v1199 = vxor.u32 %v1197, 2147483648
  %v1200 = vxor.u32 %v1198, 2147483648
  %v1201 = vmul.f32 %v1199, 1.442695
  %v1202 = vpow.pop %v1201
  %v1203 = vmul.f32 %v1200, 1.442695
  %v1204 = vpow.pop %v1203
  %v1205 = vadd.f32 %v1202, 1.0
  %v1206 = vadd.f32 %v1204, 1.0
  %v1207 = vrcp.pop %v1205
  %v1208 = vmul.f32 1.0, %v1207
  %v1209 = vrcp.pop %v1206
  %v1210 = vmul.f32 1.0, %v1209
  %v1211 = vtanh.pop %v1198
  %1213 = vrot.lane.b32.xlu0 %v1102, 64
  %v1214 = vpop.permute.xlu0 %1213
  %v1216 = vmul.f32 %v1208, %v1214
  %1218 = vrot.lane.b32.xlu0 %v1211, 64
  %v1219 = vpop.permute.xlu0 %1218
  %v1221 = vmul.f32 %v1208, %v1219
  %1223 = vrot.lane.b32.xlu0 %v1221, 64
  %v1224 = vpop.permute.xlu0 %1223
  %v1226 = vadd.f32 %v1216, %v1224
  %v1227 = vtanh.pop %v1226
  %1229 = vrot.lane.b32.xlu0 %v1227, 64
  %v1230 = vpop.permute.xlu0 %1229
  %v1232 = vmul.f32 %v1210, %v1230
  %v1233 = vsel %vm94, %v1232, %v1097
  %1235 = vrot.lane.b32.xlu0 %v1226, 64
  %v1236 = vpop.permute.xlu0 %1235
  %v1238 = vsel %vm94, %v1236, %v1102
  %v1239 = vsel %vm94, %v1232, 0.0
  %v1240 = vpack.c.bf16 %v1239, %v1239
  %1242 = vrot.lane.b32.xlu0 %v1240, 96
  %v1243 = vpop.permute.xlu0 %1242
  %v1245 = vsel %vm292, %v1243, 0
  %1247 = vmatprep.subr.bf16.mxu0 %v285
  %1248 = vmatpush1.bf16.msra.mxu0 %v284
  %1249 = vmatprep.subr.bf16.mxu0 %v287
  %1250 = vmatpush1.bf16.msra.mxu0 %v286
  %1251 = vmatprep.subr.bf16.mxu0 0
  %1252 = vmatpush1.bf16.msra.mxu0 0
  %1253 = vmatprep.subr.bf16.mxu0 0
  %1254 = vmatpush1.bf16.msra.mxu0 0
  %1255 = vmatprep.subr.bf16.mxu0 0
  %1256 = vmatpush1.bf16.msra.mxu0 0
  %1257 = vmatprep.subr.bf16.mxu0 0
  %1258 = vmatpush1.bf16.msra.mxu0 0
  %1259 = vmatprep.subr.bf16.mxu0 0
  %1260 = vmatpush1.bf16.msra.mxu0 0
  %1261 = vmatprep.subr.bf16.mxu0 0
  %1262 = vmatpush1.bf16.msra.mxu0 0
  %1263 = vmatprep.subr.bf16.mxu0 0
  %1264 = vmatpush1.bf16.msra.mxu0 0
  %1265 = vmatprep.subr.bf16.mxu0 0
  %1266 = vmatpush1.bf16.msra.mxu0 0
  %1267 = vmatprep.subr.bf16.mxu0 0
  %1268 = vmatpush1.bf16.msra.mxu0 0
  %1269 = vmatprep.subr.bf16.mxu0 0
  %1270 = vmatpush1.bf16.msra.mxu0 0
  %1271 = vmatprep.subr.bf16.mxu0 0
  %1272 = vmatpush1.bf16.msra.mxu0 0
  %1273 = vmatprep.subr.bf16.mxu0 0
  %1274 = vmatpush1.bf16.msra.mxu0 0
  %1275 = vmatprep.subr.bf16.mxu0 0
  %1276 = vmatpush1.bf16.msra.mxu0 0
  %1277 = vmatprep.subr.bf16.mxu0 0
  %1278 = vmatpush1.bf16.msra.mxu0 0
  %1279 = vmatprep.mubr.bf16.mxu0 0
  %1280 = vmatmul.mubr.bf16.gmra.mrb[0].mxu0 %v1245
  %v1281 = vpop.f32.mrb[0].mxu0
  %v1282 = vadd.f32 0.0, %v1281
  %v1283 = vpop.f32.mrb[0].mxu0
  %v1284 = vadd.f32 0.0, %v1283
  %v1285 = vpop.f32.mrb[0].mxu0
  %v1286 = vpop.f32.mrb[0].mxu0
  %1287 = vdwg.mxu0
  %v1288 = vpack.c.bf16 %v1233, %v1233
  %v1290 = vsel %vm185, %v1288, 0
  %1292 = vmatprep.subr.bf16.mxu0 %v170
  %1293 = vmatpush1.bf16.msra.mxu0 %v169
  %1294 = vmatprep.subr.bf16.mxu0 %v172
  %1295 = vmatpush1.bf16.msra.mxu0 %v171
  %1296 = vmatprep.subr.bf16.mxu0 %v174
  %1297 = vmatpush1.bf16.msra.mxu0 %v173
  %1298 = vmatprep.subr.bf16.mxu0 %v176
  %1299 = vmatpush1.bf16.msra.mxu0 %v175
  %1300 = vmatprep.subr.bf16.mxu0 0
  %1301 = vmatpush1.bf16.msra.mxu0 0
  %1302 = vmatprep.subr.bf16.mxu0 0
  %1303 = vmatpush1.bf16.msra.mxu0 0
  %1304 = vmatprep.subr.bf16.mxu0 0
  %1305 = vmatpush1.bf16.msra.mxu0 0
  %1306 = vmatprep.subr.bf16.mxu0 0
  %1307 = vmatpush1.bf16.msra.mxu0 0
  %1308 = vmatprep.subr.bf16.mxu0 0
  %1309 = vmatpush1.bf16.msra.mxu0 0
  %1310 = vmatprep.subr.bf16.mxu0 0
  %1311 = vmatpush1.bf16.msra.mxu0 0
  %1312 = vmatprep.subr.bf16.mxu0 0
  %1313 = vmatpush1.bf16.msra.mxu0 0
  %1314 = vmatprep.subr.bf16.mxu0 0
  %1315 = vmatpush1.bf16.msra.mxu0 0
  %1316 = vmatprep.subr.bf16.mxu0 0
  %1317 = vmatpush1.bf16.msra.mxu0 0
  %1318 = vmatprep.subr.bf16.mxu0 0
  %1319 = vmatpush1.bf16.msra.mxu0 0
  %1320 = vmatprep.subr.bf16.mxu0 0
  %1321 = vmatpush1.bf16.msra.mxu0 0
  %1322 = vmatprep.subr.bf16.mxu0 0
  %1323 = vmatpush1.bf16.msra.mxu0 0
  %1324 = vmatprep.mubr.bf16.mxu0 0
  %1325 = vmatmul.mubr.bf16.gmra.mrb[0].mxu0 %v1290
  %v1326 = vpop.f32.mrb[0].mxu0
  %v1327 = vadd.f32 0.0, %v1326
  %v1328 = vpop.f32.mrb[0].mxu0
  %v1329 = vadd.f32 0.0, %v1328
  %v1330 = vpop.f32.mrb[0].mxu0
  %v1331 = vpop.f32.mrb[0].mxu0
  %1332 = vdwg.mxu0
  %v1333 = vadd.f32 %v123, %v1327
  %v1334 = vadd.f32 %v124, %v1329
  %v1335 = vxor.u32 %v1333, 2147483648
  %v1336 = vxor.u32 %v1334, 2147483648
  %v1337 = vmul.f32 %v1335, 1.442695
  %v1338 = vpow.pop %v1337
  %v1339 = vmul.f32 %v1336, 1.442695
  %v1340 = vpow.pop %v1339
  %v1341 = vadd.f32 %v1338, 1.0
  %v1342 = vadd.f32 %v1340, 1.0
  %v1343 = vrcp.pop %v1341
  %v1344 = vmul.f32 1.0, %v1343
  %v1345 = vrcp.pop %v1342
  %v1346 = vmul.f32 1.0, %v1345
  %v1347 = vtanh.pop %v1334
  %1349 = vrot.lane.b32.xlu0 %v1238, 64
  %v1350 = vpop.permute.xlu0 %1349
  %v1352 = vmul.f32 %v1344, %v1350
  %1354 = vrot.lane.b32.xlu0 %v1347, 64
  %v1355 = vpop.permute.xlu0 %1354
  %v1357 = vmul.f32 %v1344, %v1355
  %1359 = vrot.lane.b32.xlu0 %v1357, 64
  %v1360 = vpop.permute.xlu0 %1359
  %v1362 = vadd.f32 %v1352, %v1360
  %v1363 = vtanh.pop %v1362
  %1365 = vrot.lane.b32.xlu0 %v1363, 64
  %v1366 = vpop.permute.xlu0 %1365
  %v1368 = vmul.f32 %v1346, %v1366
  %v1369 = vsel %vm96, %v1368, %v1233
  %1371 = vrot.lane.b32.xlu0 %v1362, 64
  %v1372 = vpop.permute.xlu0 %1371
  %v1374 = vsel %vm96, %v1372, %v1238
  %v1375 = vsel %vm96, %v1368, 0.0
  %v1376 = vpack.c.bf16 %v1375, %v1375
  %1378 = vrot.lane.b32.xlu0 %v1376, 96
  %v1379 = vpop.permute.xlu0 %1378
  %v1381 = vsel %vm292, %v1379, 0
  %1383 = vmatprep.subr.bf16.mxu0 %v285
  %1384 = vmatpush1.bf16.msra.mxu0 %v284
  %1385 = vmatprep.subr.bf16.mxu0 %v287
  %1386 = vmatpush1.bf16.msra.mxu0 %v286
  %1387 = vmatprep.subr.bf16.mxu0 0
  %1388 = vmatpush1.bf16.msra.mxu0 0
  %1389 = vmatprep.subr.bf16.mxu0 0
  %1390 = vmatpush1.bf16.msra.mxu0 0
  %1391 = vmatprep.subr.bf16.mxu0 0
  %1392 = vmatpush1.bf16.msra.mxu0 0
  %1393 = vmatprep.subr.bf16.mxu0 0
  %1394 = vmatpush1.bf16.msra.mxu0 0
  %1395 = vmatprep.subr.bf16.mxu0 0
  %1396 = vmatpush1.bf16.msra.mxu0 0
  %1397 = vmatprep.subr.bf16.mxu0 0
  %1398 = vmatpush1.bf16.msra.mxu0 0
  %1399 = vmatprep.subr.bf16.mxu0 0
  %1400 = vmatpush1.bf16.msra.mxu0 0
  %1401 = vmatprep.subr.bf16.mxu0 0
  %1402 = vmatpush1.bf16.msra.mxu0 0
  %1403 = vmatprep.subr.bf16.mxu0 0
  %1404 = vmatpush1.bf16.msra.mxu0 0
  %1405 = vmatprep.subr.bf16.mxu0 0
  %1406 = vmatpush1.bf16.msra.mxu0 0
  %1407 = vmatprep.subr.bf16.mxu0 0
  %1408 = vmatpush1.bf16.msra.mxu0 0
  %1409 = vmatprep.subr.bf16.mxu0 0
  %1410 = vmatpush1.bf16.msra.mxu0 0
  %1411 = vmatprep.subr.bf16.mxu0 0
  %1412 = vmatpush1.bf16.msra.mxu0 0
  %1413 = vmatprep.subr.bf16.mxu0 0
  %1414 = vmatpush1.bf16.msra.mxu0 0
  %1415 = vmatprep.mubr.bf16.mxu0 0
  %1416 = vmatmul.mubr.bf16.gmra.mrb[0].mxu0 %v1381
  %v1417 = vpop.f32.mrb[0].mxu0
  %v1418 = vadd.f32 0.0, %v1417
  %v1419 = vpop.f32.mrb[0].mxu0
  %v1420 = vadd.f32 0.0, %v1419
  %v1421 = vpop.f32.mrb[0].mxu0
  %v1422 = vpop.f32.mrb[0].mxu0
  %1423 = vdwg.mxu0
  %v1424 = vpack.c.bf16 %v1369, %v1369
  %v1426 = vsel %vm185, %v1424, 0
  %1428 = vmatprep.subr.bf16.mxu0 %v170
  %1429 = vmatpush1.bf16.msra.mxu0 %v169
  %1430 = vmatprep.subr.bf16.mxu0 %v172
  %1431 = vmatpush1.bf16.msra.mxu0 %v171
  %1432 = vmatprep.subr.bf16.mxu0 %v174
  %1433 = vmatpush1.bf16.msra.mxu0 %v173
  %1434 = vmatprep.subr.bf16.mxu0 %v176
  %1435 = vmatpush1.bf16.msra.mxu0 %v175
  %1436 = vmatprep.subr.bf16.mxu0 0
  %1437 = vmatpush1.bf16.msra.mxu0 0
  %1438 = vmatprep.subr.bf16.mxu0 0
  %1439 = vmatpush1.bf16.msra.mxu0 0
  %1440 = vmatprep.subr.bf16.mxu0 0
  %1441 = vmatpush1.bf16.msra.mxu0 0
  %1442 = vmatprep.subr.bf16.mxu0 0
  %1443 = vmatpush1.bf16.msra.mxu0 0
  %1444 = vmatprep.subr.bf16.mxu0 0
  %1445 = vmatpush1.bf16.msra.mxu0 0
  %1446 = vmatprep.subr.bf16.mxu0 0
  %1447 = vmatpush1.bf16.msra.mxu0 0
  %1448 = vmatprep.subr.bf16.mxu0 0
  %1449 = vmatpush1.bf16.msra.mxu0 0
  %1450 = vmatprep.subr.bf16.mxu0 0
  %1451 = vmatpush1.bf16.msra.mxu0 0
  %1452 = vmatprep.subr.bf16.mxu0 0
  %1453 = vmatpush1.bf16.msra.mxu0 0
  %1454 = vmatprep.subr.bf16.mxu0 0
  %1455 = vmatpush1.bf16.msra.mxu0 0
  %1456 = vmatprep.subr.bf16.mxu0 0
  %1457 = vmatpush1.bf16.msra.mxu0 0
  %1458 = vmatprep.subr.bf16.mxu0 0
  %1459 = vmatpush1.bf16.msra.mxu0 0
  %1460 = vmatprep.mubr.bf16.mxu0 0
  %1461 = vmatmul.mubr.bf16.gmra.mrb[0].mxu0 %v1426
  %v1462 = vpop.f32.mrb[0].mxu0
  %v1463 = vadd.f32 0.0, %v1462
  %v1464 = vpop.f32.mrb[0].mxu0
  %v1465 = vadd.f32 0.0, %v1464
  %v1466 = vpop.f32.mrb[0].mxu0
  %v1467 = vpop.f32.mrb[0].mxu0
  %1468 = vdwg.mxu0
  %v1469 = vadd.f32 %v126, %v1463
  %v1470 = vadd.f32 %v127, %v1465
  %v1471 = vxor.u32 %v1469, 2147483648
  %v1472 = vxor.u32 %v1470, 2147483648
  %v1473 = vmul.f32 %v1471, 1.442695
  %v1474 = vpow.pop %v1473
  %v1475 = vmul.f32 %v1472, 1.442695
  %v1476 = vpow.pop %v1475
  %v1477 = vadd.f32 %v1474, 1.0
  %v1478 = vadd.f32 %v1476, 1.0
  %v1479 = vrcp.pop %v1477
  %v1480 = vmul.f32 1.0, %v1479
  %v1481 = vrcp.pop %v1478
  %v1482 = vmul.f32 1.0, %v1481
  %v1483 = vtanh.pop %v1470
  %1485 = vrot.lane.b32.xlu0 %v1374, 64
  %v1486 = vpop.permute.xlu0 %1485
  %v1488 = vmul.f32 %v1480, %v1486
  %1490 = vrot.lane.b32.xlu0 %v1483, 64
  %v1491 = vpop.permute.xlu0 %1490
  %v1493 = vmul.f32 %v1480, %v1491
  %1495 = vrot.lane.b32.xlu0 %v1493, 64
  %v1496 = vpop.permute.xlu0 %1495
  %v1498 = vadd.f32 %v1488, %v1496
  %v1499 = vtanh.pop %v1498
  %1501 = vrot.lane.b32.xlu0 %v1499, 64
  %v1502 = vpop.permute.xlu0 %1501
  %v1504 = vmul.f32 %v1482, %v1502
  %v1505 = vsel %vm98, %v1504, 0.0
  %v1506 = vpack.c.bf16 %v1505, %v1505
  %1508 = vrot.lane.b32.xlu0 %v1506, 96
  %v1509 = vpop.permute.xlu0 %1508
  %v1511 = vsel %vm292, %v1509, 0
  %1513 = vmatprep.subr.bf16.mxu0 %v285
  %1514 = vmatpush1.bf16.msra.mxu0 %v284
  %1515 = vmatprep.subr.bf16.mxu0 %v287
  %1516 = vmatpush1.bf16.msra.mxu0 %v286
  %1517 = vmatprep.subr.bf16.mxu0 0
  %1518 = vmatpush1.bf16.msra.mxu0 0
  %1519 = vmatprep.subr.bf16.mxu0 0
  %1520 = vmatpush1.bf16.msra.mxu0 0
  %1521 = vmatprep.subr.bf16.mxu0 0
  %1522 = vmatpush1.bf16.msra.mxu0 0
  %1523 = vmatprep.subr.bf16.mxu0 0
  %1524 = vmatpush1.bf16.msra.mxu0 0
  %1525 = vmatprep.subr.bf16.mxu0 0
  %1526 = vmatpush1.bf16.msra.mxu0 0
  %1527 = vmatprep.subr.bf16.mxu0 0
  %1528 = vmatpush1.bf16.msra.mxu0 0
  %1529 = vmatprep.subr.bf16.mxu0 0
  %1530 = vmatpush1.bf16.msra.mxu0 0
  %1531 = vmatprep.subr.bf16.mxu0 0
  %1532 = vmatpush1.bf16.msra.mxu0 0
  %1533 = vmatprep.subr.bf16.mxu0 0
  %1534 = vmatpush1.bf16.msra.mxu0 0
  %1535 = vmatprep.subr.bf16.mxu0 0
  %1536 = vmatpush1.bf16.msra.mxu0 0
  %1537 = vmatprep.subr.bf16.mxu0 0
  %1538 = vmatpush1.bf16.msra.mxu0 0
  %1539 = vmatprep.subr.bf16.mxu0 0
  %1540 = vmatpush1.bf16.msra.mxu0 0
  %1541 = vmatprep.subr.bf16.mxu0 0
  %1542 = vmatpush1.bf16.msra.mxu0 0
  %1543 = vmatprep.subr.bf16.mxu0 0
  %1544 = vmatpush1.bf16.msra.mxu0 0
  %1545 = vmatprep.mubr.bf16.mxu0 0
  %1546 = vmatmul.mubr.bf16.gmra.mrb[0].mxu0 %v1511
  %v1547 = vpop.f32.mrb[0].mxu0
  %v1548 = vadd.f32 0.0, %v1547
  %v1549 = vpop.f32.mrb[0].mxu0
  %v1550 = vadd.f32 0.0, %v1549
  %v1551 = vpop.f32.mrb[0].mxu0
  %v1552 = vpop.f32.mrb[0].mxu0
  %1553 = vdwg.mxu0
  %v1558 = vunpack.c.l.b16 %v136
  %v1559 = vunpack.c.h.b16 %v136
  %v1560 = vunpack.c.l.b16 %v137
  %v1561 = vunpack.c.h.b16 %v137
  %v1562 = vunpack.c.l.b16 %v138
  %v1563 = vunpack.c.h.b16 %v138
  %v1564 = vunpack.c.l.b16 %v139
  %v1565 = vunpack.c.h.b16 %v139
  %v1566 = vpack.c.b16 %v1560, %v1558
  %v1567 = vpack.c.b16 %v1561, %v1559
  %v1568 = vpack.c.b16 %v1564, %v1562
  %v1569 = vpack.c.b16 %v1565, %v1563
  %v1574 = vsel %vm292, %v268, 0
  %1576 = vmatprep.subr.bf16.mxu0 %v1567
  %1577 = vmatpush1.bf16.msra.mxu0 %v1566
  %1578 = vmatprep.subr.bf16.mxu0 %v1569
  %1579 = vmatpush1.bf16.msra.mxu0 %v1568
  %1580 = vmatprep.subr.bf16.mxu0 0
  %1581 = vmatpush1.bf16.msra.mxu0 0
  %1582 = vmatprep.subr.bf16.mxu0 0
  %1583 = vmatpush1.bf16.msra.mxu0 0
  %1584 = vmatprep.subr.bf16.mxu0 0
  %1585 = vmatpush1.bf16.msra.mxu0 0
  %1586 = vmatprep.subr.bf16.mxu0 0
  %1587 = vmatpush1.bf16.msra.mxu0 0
  %1588 = vmatprep.subr.bf16.mxu0 0
  %1589 = vmatpush1.bf16.msra.mxu0 0
  %1590 = vmatprep.subr.bf16.mxu0 0
  %1591 = vmatpush1.bf16.msra.mxu0 0
  %1592 = vmatprep.subr.bf16.mxu0 0
  %1593 = vmatpush1.bf16.msra.mxu0 0
  %1594 = vmatprep.subr.bf16.mxu0 0
  %1595 = vmatpush1.bf16.msra.mxu0 0
  %1596 = vmatprep.subr.bf16.mxu0 0
  %1597 = vmatpush1.bf16.msra.mxu0 0
  %1598 = vmatprep.subr.bf16.mxu0 0
  %1599 = vmatpush1.bf16.msra.mxu0 0
  %1600 = vmatprep.subr.bf16.mxu0 0
  %1601 = vmatpush1.bf16.msra.mxu0 0
  %1602 = vmatprep.subr.bf16.mxu0 0
  %1603 = vmatpush1.bf16.msra.mxu0 0
  %1604 = vmatprep.subr.bf16.mxu0 0
  %1605 = vmatpush1.bf16.msra.mxu0 0
  %1606 = vmatprep.subr.bf16.mxu0 0
  %1607 = vmatpush1.bf16.msra.mxu0 0
  %1608 = vmatprep.mubr.bf16.mxu0 0
  %1609 = vmatmul.mubr.bf16.gmra.mrb[0].mxu0 %v1574
  %v1610 = vpop.f32.mrb[0].mxu0
  %v1611 = vadd.f32 %v1548, %v1610
  %v1612 = vpop.f32.mrb[0].mxu0
  %v1613 = vadd.f32 %v1550, %v1612
  %v1614 = vpop.f32.mrb[0].mxu0
  %v1615 = vpop.f32.mrb[0].mxu0
  %1616 = vdwg.mxu0
  %v1618 = vlaneseq
  %v1619 = vshrl.u32 %v1618, 7
  %v1620 = vsub.s32 0, %v1619
  %v1621 = vrot.slane %v144, %v1620
  %v1622 = vlaneseq
  %v1623 = vshrl.u32 %v1622, 7
  %v1624 = vsub.s32 1, %v1623
  %v1625 = vrot.slane %v144, %v1624
  %v1628 = vadd.f32 %v1611, %v1621
  %v1629 = vadd.f32 %v1613, %v1625
  %v1631 = vsel %vm292, %v424, 0
  %1633 = vmatprep.subr.bf16.mxu0 %v1567
  %1634 = vmatpush1.bf16.msra.mxu0 %v1566
  %1635 = vmatprep.subr.bf16.mxu0 %v1569
  %1636 = vmatpush1.bf16.msra.mxu0 %v1568
  %1637 = vmatprep.subr.bf16.mxu0 0
  %1638 = vmatpush1.bf16.msra.mxu0 0
  %1639 = vmatprep.subr.bf16.mxu0 0
  %1640 = vmatpush1.bf16.msra.mxu0 0
  %1641 = vmatprep.subr.bf16.mxu0 0
  %1642 = vmatpush1.bf16.msra.mxu0 0
  %1643 = vmatprep.subr.bf16.mxu0 0
  %1644 = vmatpush1.bf16.msra.mxu0 0
  %1645 = vmatprep.subr.bf16.mxu0 0
  %1646 = vmatpush1.bf16.msra.mxu0 0
  %1647 = vmatprep.subr.bf16.mxu0 0
  %1648 = vmatpush1.bf16.msra.mxu0 0
  %1649 = vmatprep.subr.bf16.mxu0 0
  %1650 = vmatpush1.bf16.msra.mxu0 0
  %1651 = vmatprep.subr.bf16.mxu0 0
  %1652 = vmatpush1.bf16.msra.mxu0 0
  %1653 = vmatprep.subr.bf16.mxu0 0
  %1654 = vmatpush1.bf16.msra.mxu0 0
  %1655 = vmatprep.subr.bf16.mxu0 0
  %1656 = vmatpush1.bf16.msra.mxu0 0
  %1657 = vmatprep.subr.bf16.mxu0 0
  %1658 = vmatpush1.bf16.msra.mxu0 0
  %1659 = vmatprep.subr.bf16.mxu0 0
  %1660 = vmatpush1.bf16.msra.mxu0 0
  %1661 = vmatprep.subr.bf16.mxu0 0
  %1662 = vmatpush1.bf16.msra.mxu0 0
  %1663 = vmatprep.subr.bf16.mxu0 0
  %1664 = vmatpush1.bf16.msra.mxu0 0
  %1665 = vmatprep.mubr.bf16.mxu0 0
  %1666 = vmatmul.mubr.bf16.gmra.mrb[0].mxu0 %v1631
  %v1667 = vpop.f32.mrb[0].mxu0
  %v1668 = vadd.f32 %v1418, %v1667
  %v1669 = vpop.f32.mrb[0].mxu0
  %v1670 = vadd.f32 %v1420, %v1669
  %v1671 = vpop.f32.mrb[0].mxu0
  %v1672 = vpop.f32.mrb[0].mxu0
  %1673 = vdwg.mxu0
  %v1674 = vadd.f32 %v1668, %v1621
  %v1675 = vadd.f32 %v1670, %v1625
  %v1677 = vsel %vm292, %v560, 0
  %1679 = vmatprep.subr.bf16.mxu0 %v1567
  %1680 = vmatpush1.bf16.msra.mxu0 %v1566
  %1681 = vmatprep.subr.bf16.mxu0 %v1569
  %1682 = vmatpush1.bf16.msra.mxu0 %v1568
  %1683 = vmatprep.subr.bf16.mxu0 0
  %1684 = vmatpush1.bf16.msra.mxu0 0
  %1685 = vmatprep.subr.bf16.mxu0 0
  %1686 = vmatpush1.bf16.msra.mxu0 0
  %1687 = vmatprep.subr.bf16.mxu0 0
  %1688 = vmatpush1.bf16.msra.mxu0 0
  %1689 = vmatprep.subr.bf16.mxu0 0
  %1690 = vmatpush1.bf16.msra.mxu0 0
  %1691 = vmatprep.subr.bf16.mxu0 0
  %1692 = vmatpush1.bf16.msra.mxu0 0
  %1693 = vmatprep.subr.bf16.mxu0 0
  %1694 = vmatpush1.bf16.msra.mxu0 0
  %1695 = vmatprep.subr.bf16.mxu0 0
  %1696 = vmatpush1.bf16.msra.mxu0 0
  %1697 = vmatprep.subr.bf16.mxu0 0
  %1698 = vmatpush1.bf16.msra.mxu0 0
  %1699 = vmatprep.subr.bf16.mxu0 0
  %1700 = vmatpush1.bf16.msra.mxu0 0
  %1701 = vmatprep.subr.bf16.mxu0 0
  %1702 = vmatpush1.bf16.msra.mxu0 0
  %1703 = vmatprep.subr.bf16.mxu0 0
  %1704 = vmatpush1.bf16.msra.mxu0 0
  %1705 = vmatprep.subr.bf16.mxu0 0
  %1706 = vmatpush1.bf16.msra.mxu0 0
  %1707 = vmatprep.subr.bf16.mxu0 0
  %1708 = vmatpush1.bf16.msra.mxu0 0
  %1709 = vmatprep.subr.bf16.mxu0 0
  %1710 = vmatpush1.bf16.msra.mxu0 0
  %1711 = vmatprep.mubr.bf16.mxu0 0
  %1712 = vmatmul.mubr.bf16.gmra.mrb[0].mxu0 %v1677
  %v1713 = vpop.f32.mrb[0].mxu0
  %v1714 = vadd.f32 %v1282, %v1713
  %v1715 = vpop.f32.mrb[0].mxu0
  %v1716 = vadd.f32 %v1284, %v1715
  %v1717 = vpop.f32.mrb[0].mxu0
  %v1718 = vpop.f32.mrb[0].mxu0
  %1719 = vdwg.mxu0
  %v1720 = vadd.f32 %v1714, %v1621
  %v1721 = vadd.f32 %v1716, %v1625
  %v1723 = vsel %vm292, %v696, 0
  %1725 = vmatprep.subr.bf16.mxu0 %v1567
  %1726 = vmatpush1.bf16.msra.mxu0 %v1566
  %1727 = vmatprep.subr.bf16.mxu0 %v1569
  %1728 = vmatpush1.bf16.msra.mxu0 %v1568
  %1729 = vmatprep.subr.bf16.mxu0 0
  %1730 = vmatpush1.bf16.msra.mxu0 0
  %1731 = vmatprep.subr.bf16.mxu0 0
  %1732 = vmatpush1.bf16.msra.mxu0 0
  %1733 = vmatprep.subr.bf16.mxu0 0
  %1734 = vmatpush1.bf16.msra.mxu0 0
  %1735 = vmatprep.subr.bf16.mxu0 0
  %1736 = vmatpush1.bf16.msra.mxu0 0
  %1737 = vmatprep.subr.bf16.mxu0 0
  %1738 = vmatpush1.bf16.msra.mxu0 0
  %1739 = vmatprep.subr.bf16.mxu0 0
  %1740 = vmatpush1.bf16.msra.mxu0 0
  %1741 = vmatprep.subr.bf16.mxu0 0
  %1742 = vmatpush1.bf16.msra.mxu0 0
  %1743 = vmatprep.subr.bf16.mxu0 0
  %1744 = vmatpush1.bf16.msra.mxu0 0
  %1745 = vmatprep.subr.bf16.mxu0 0
  %1746 = vmatpush1.bf16.msra.mxu0 0
  %1747 = vmatprep.subr.bf16.mxu0 0
  %1748 = vmatpush1.bf16.msra.mxu0 0
  %1749 = vmatprep.subr.bf16.mxu0 0
  %1750 = vmatpush1.bf16.msra.mxu0 0
  %1751 = vmatprep.subr.bf16.mxu0 0
  %1752 = vmatpush1.bf16.msra.mxu0 0
  %1753 = vmatprep.subr.bf16.mxu0 0
  %1754 = vmatpush1.bf16.msra.mxu0 0
  %1755 = vmatprep.subr.bf16.mxu0 0
  %1756 = vmatpush1.bf16.msra.mxu0 0
  %1757 = vmatprep.mubr.bf16.mxu0 0
  %1758 = vmatmul.mubr.bf16.gmra.mrb[0].mxu0 %v1723
  %v1759 = vpop.f32.mrb[0].mxu0
  %v1760 = vadd.f32 %v1146, %v1759
  %v1761 = vpop.f32.mrb[0].mxu0
  %v1762 = vadd.f32 %v1148, %v1761
  %v1763 = vpop.f32.mrb[0].mxu0
  %v1764 = vpop.f32.mrb[0].mxu0
  %1765 = vdwg.mxu0
  %v1766 = vadd.f32 %v1760, %v1621
  %v1767 = vadd.f32 %v1762, %v1625
  %v1769 = vsel %vm292, %v832, 0
  %1771 = vmatprep.subr.bf16.mxu0 %v1567
  %1772 = vmatpush1.bf16.msra.mxu0 %v1566
  %1773 = vmatprep.subr.bf16.mxu0 %v1569
  %1774 = vmatpush1.bf16.msra.mxu0 %v1568
  %1775 = vmatprep.subr.bf16.mxu0 0
  %1776 = vmatpush1.bf16.msra.mxu0 0
  %1777 = vmatprep.subr.bf16.mxu0 0
  %1778 = vmatpush1.bf16.msra.mxu0 0
  %1779 = vmatprep.subr.bf16.mxu0 0
  %1780 = vmatpush1.bf16.msra.mxu0 0
  %1781 = vmatprep.subr.bf16.mxu0 0
  %1782 = vmatpush1.bf16.msra.mxu0 0
  %1783 = vmatprep.subr.bf16.mxu0 0
  %1784 = vmatpush1.bf16.msra.mxu0 0
  %1785 = vmatprep.subr.bf16.mxu0 0
  %1786 = vmatpush1.bf16.msra.mxu0 0
  %1787 = vmatprep.subr.bf16.mxu0 0
  %1788 = vmatpush1.bf16.msra.mxu0 0
  %1789 = vmatprep.subr.bf16.mxu0 0
  %1790 = vmatpush1.bf16.msra.mxu0 0
  %1791 = vmatprep.subr.bf16.mxu0 0
  %1792 = vmatpush1.bf16.msra.mxu0 0
  %1793 = vmatprep.subr.bf16.mxu0 0
  %1794 = vmatpush1.bf16.msra.mxu0 0
  %1795 = vmatprep.subr.bf16.mxu0 0
  %1796 = vmatpush1.bf16.msra.mxu0 0
  %1797 = vmatprep.subr.bf16.mxu0 0
  %1798 = vmatpush1.bf16.msra.mxu0 0
  %1799 = vmatprep.subr.bf16.mxu0 0
  %1800 = vmatpush1.bf16.msra.mxu0 0
  %1801 = vmatprep.subr.bf16.mxu0 0
  %1802 = vmatpush1.bf16.msra.mxu0 0
  %1803 = vmatprep.mubr.bf16.mxu0 0
  %1804 = vmatmul.mubr.bf16.gmra.mrb[0].mxu0 %v1769
  %v1805 = vpop.f32.mrb[0].mxu0
  %v1806 = vadd.f32 %v1010, %v1805
  %v1807 = vpop.f32.mrb[0].mxu0
  %v1808 = vadd.f32 %v1012, %v1807
  %v1809 = vpop.f32.mrb[0].mxu0
  %v1810 = vpop.f32.mrb[0].mxu0
  %1811 = vdwg.mxu0
  %v1812 = vadd.f32 %v1806, %v1621
  %v1813 = vadd.f32 %v1808, %v1625
  %v1815 = vsel %vm292, %v968, 0
  %1817 = vmatprep.subr.bf16.mxu0 %v1567
  %1818 = vmatpush1.bf16.msra.mxu0 %v1566
  %1819 = vmatprep.subr.bf16.mxu0 %v1569
  %1820 = vmatpush1.bf16.msra.mxu0 %v1568
  %1821 = vmatprep.subr.bf16.mxu0 0
  %1822 = vmatpush1.bf16.msra.mxu0 0
  %1823 = vmatprep.subr.bf16.mxu0 0
  %1824 = vmatpush1.bf16.msra.mxu0 0
  %1825 = vmatprep.subr.bf16.mxu0 0
  %1826 = vmatpush1.bf16.msra.mxu0 0
  %1827 = vmatprep.subr.bf16.mxu0 0
  %1828 = vmatpush1.bf16.msra.mxu0 0
  %1829 = vmatprep.subr.bf16.mxu0 0
  %1830 = vmatpush1.bf16.msra.mxu0 0
  %1831 = vmatprep.subr.bf16.mxu0 0
  %1832 = vmatpush1.bf16.msra.mxu0 0
  %1833 = vmatprep.subr.bf16.mxu0 0
  %1834 = vmatpush1.bf16.msra.mxu0 0
  %1835 = vmatprep.subr.bf16.mxu0 0
  %1836 = vmatpush1.bf16.msra.mxu0 0
  %1837 = vmatprep.subr.bf16.mxu0 0
  %1838 = vmatpush1.bf16.msra.mxu0 0
  %1839 = vmatprep.subr.bf16.mxu0 0
  %1840 = vmatpush1.bf16.msra.mxu0 0
  %1841 = vmatprep.subr.bf16.mxu0 0
  %1842 = vmatpush1.bf16.msra.mxu0 0
  %1843 = vmatprep.subr.bf16.mxu0 0
  %1844 = vmatpush1.bf16.msra.mxu0 0
  %1845 = vmatprep.subr.bf16.mxu0 0
  %1846 = vmatpush1.bf16.msra.mxu0 0
  %1847 = vmatprep.subr.bf16.mxu0 0
  %1848 = vmatpush1.bf16.msra.mxu0 0
  %1849 = vmatprep.mubr.bf16.mxu0 0
  %1850 = vmatmul.mubr.bf16.gmra.mrb[0].mxu0 %v1815
  %v1851 = vpop.f32.mrb[0].mxu0
  %v1852 = vadd.f32 %v874, %v1851
  %v1853 = vpop.f32.mrb[0].mxu0
  %v1854 = vadd.f32 %v876, %v1853
  %v1855 = vpop.f32.mrb[0].mxu0
  %v1856 = vpop.f32.mrb[0].mxu0
  %1857 = vdwg.mxu0
  %v1858 = vadd.f32 %v1852, %v1621
  %v1859 = vadd.f32 %v1854, %v1625
  %v1861 = vsel %vm292, %v1104, 0
  %1863 = vmatprep.subr.bf16.mxu0 %v1567
  %1864 = vmatpush1.bf16.msra.mxu0 %v1566
  %1865 = vmatprep.subr.bf16.mxu0 %v1569
  %1866 = vmatpush1.bf16.msra.mxu0 %v1568
  %1867 = vmatprep.subr.bf16.mxu0 0
  %1868 = vmatpush1.bf16.msra.mxu0 0
  %1869 = vmatprep.subr.bf16.mxu0 0
  %1870 = vmatpush1.bf16.msra.mxu0 0
  %1871 = vmatprep.subr.bf16.mxu0 0
  %1872 = vmatpush1.bf16.msra.mxu0 0
  %1873 = vmatprep.subr.bf16.mxu0 0
  %1874 = vmatpush1.bf16.msra.mxu0 0
  %1875 = vmatprep.subr.bf16.mxu0 0
  %1876 = vmatpush1.bf16.msra.mxu0 0
  %1877 = vmatprep.subr.bf16.mxu0 0
  %1878 = vmatpush1.bf16.msra.mxu0 0
  %1879 = vmatprep.subr.bf16.mxu0 0
  %1880 = vmatpush1.bf16.msra.mxu0 0
  %1881 = vmatprep.subr.bf16.mxu0 0
  %1882 = vmatpush1.bf16.msra.mxu0 0
  %1883 = vmatprep.subr.bf16.mxu0 0
  %1884 = vmatpush1.bf16.msra.mxu0 0
  %1885 = vmatprep.subr.bf16.mxu0 0
  %1886 = vmatpush1.bf16.msra.mxu0 0
  %1887 = vmatprep.subr.bf16.mxu0 0
  %1888 = vmatpush1.bf16.msra.mxu0 0
  %1889 = vmatprep.subr.bf16.mxu0 0
  %1890 = vmatpush1.bf16.msra.mxu0 0
  %1891 = vmatprep.subr.bf16.mxu0 0
  %1892 = vmatpush1.bf16.msra.mxu0 0
  %1893 = vmatprep.subr.bf16.mxu0 0
  %1894 = vmatpush1.bf16.msra.mxu0 0
  %1895 = vmatprep.mubr.bf16.mxu0 0
  %1896 = vmatmul.mubr.bf16.gmra.mrb[0].mxu0 %v1861
  %v1897 = vpop.f32.mrb[0].mxu0
  %v1898 = vadd.f32 %v738, %v1897
  %v1899 = vpop.f32.mrb[0].mxu0
  %v1900 = vadd.f32 %v740, %v1899
  %v1901 = vpop.f32.mrb[0].mxu0
  %v1902 = vpop.f32.mrb[0].mxu0
  %1903 = vdwg.mxu0
  %v1904 = vadd.f32 %v1898, %v1621
  %v1905 = vadd.f32 %v1900, %v1625
  %v1907 = vsel %vm292, %v1240, 0
  %1909 = vmatprep.subr.bf16.mxu0 %v1567
  %1910 = vmatpush1.bf16.msra.mxu0 %v1566
  %1911 = vmatprep.subr.bf16.mxu0 %v1569
  %1912 = vmatpush1.bf16.msra.mxu0 %v1568
  %1913 = vmatprep.subr.bf16.mxu0 0
  %1914 = vmatpush1.bf16.msra.mxu0 0
  %1915 = vmatprep.subr.bf16.mxu0 0
  %1916 = vmatpush1.bf16.msra.mxu0 0
  %1917 = vmatprep.subr.bf16.mxu0 0
  %1918 = vmatpush1.bf16.msra.mxu0 0
  %1919 = vmatprep.subr.bf16.mxu0 0
  %1920 = vmatpush1.bf16.msra.mxu0 0
  %1921 = vmatprep.subr.bf16.mxu0 0
  %1922 = vmatpush1.bf16.msra.mxu0 0
  %1923 = vmatprep.subr.bf16.mxu0 0
  %1924 = vmatpush1.bf16.msra.mxu0 0
  %1925 = vmatprep.subr.bf16.mxu0 0
  %1926 = vmatpush1.bf16.msra.mxu0 0
  %1927 = vmatprep.subr.bf16.mxu0 0
  %1928 = vmatpush1.bf16.msra.mxu0 0
  %1929 = vmatprep.subr.bf16.mxu0 0
  %1930 = vmatpush1.bf16.msra.mxu0 0
  %1931 = vmatprep.subr.bf16.mxu0 0
  %1932 = vmatpush1.bf16.msra.mxu0 0
  %1933 = vmatprep.subr.bf16.mxu0 0
  %1934 = vmatpush1.bf16.msra.mxu0 0
  %1935 = vmatprep.subr.bf16.mxu0 0
  %1936 = vmatpush1.bf16.msra.mxu0 0
  %1937 = vmatprep.subr.bf16.mxu0 0
  %1938 = vmatpush1.bf16.msra.mxu0 0
  %1939 = vmatprep.subr.bf16.mxu0 0
  %1940 = vmatpush1.bf16.msra.mxu0 0
  %1941 = vmatprep.mubr.bf16.mxu0 0
  %1942 = vmatmul.mubr.bf16.gmra.mrb[0].mxu0 %v1907
  %v1943 = vpop.f32.mrb[0].mxu0
  %v1944 = vadd.f32 %v602, %v1943
  %v1945 = vpop.f32.mrb[0].mxu0
  %v1946 = vadd.f32 %v604, %v1945
  %v1947 = vpop.f32.mrb[0].mxu0
  %v1948 = vpop.f32.mrb[0].mxu0
  %1949 = vdwg.mxu0
  %v1950 = vadd.f32 %v1944, %v1621
  %v1951 = vadd.f32 %v1946, %v1625
  %v1953 = vsel %vm292, %v1376, 0
  %1955 = vmatprep.subr.bf16.mxu0 %v1567
  %1956 = vmatpush1.bf16.msra.mxu0 %v1566
  %1957 = vmatprep.subr.bf16.mxu0 %v1569
  %1958 = vmatpush1.bf16.msra.mxu0 %v1568
  %1959 = vmatprep.subr.bf16.mxu0 0
  %1960 = vmatpush1.bf16.msra.mxu0 0
  %1961 = vmatprep.subr.bf16.mxu0 0
  %1962 = vmatpush1.bf16.msra.mxu0 0
  %1963 = vmatprep.subr.bf16.mxu0 0
  %1964 = vmatpush1.bf16.msra.mxu0 0
  %1965 = vmatprep.subr.bf16.mxu0 0
  %1966 = vmatpush1.bf16.msra.mxu0 0
  %1967 = vmatprep.subr.bf16.mxu0 0
  %1968 = vmatpush1.bf16.msra.mxu0 0
  %1969 = vmatprep.subr.bf16.mxu0 0
  %1970 = vmatpush1.bf16.msra.mxu0 0
  %1971 = vmatprep.subr.bf16.mxu0 0
  %1972 = vmatpush1.bf16.msra.mxu0 0
  %1973 = vmatprep.subr.bf16.mxu0 0
  %1974 = vmatpush1.bf16.msra.mxu0 0
  %1975 = vmatprep.subr.bf16.mxu0 0
  %1976 = vmatpush1.bf16.msra.mxu0 0
  %1977 = vmatprep.subr.bf16.mxu0 0
  %1978 = vmatpush1.bf16.msra.mxu0 0
  %1979 = vmatprep.subr.bf16.mxu0 0
  %1980 = vmatpush1.bf16.msra.mxu0 0
  %1981 = vmatprep.subr.bf16.mxu0 0
  %1982 = vmatpush1.bf16.msra.mxu0 0
  %1983 = vmatprep.subr.bf16.mxu0 0
  %1984 = vmatpush1.bf16.msra.mxu0 0
  %1985 = vmatprep.subr.bf16.mxu0 0
  %1986 = vmatpush1.bf16.msra.mxu0 0
  %1987 = vmatprep.mubr.bf16.mxu0 0
  %1988 = vmatmul.mubr.bf16.gmra.mrb[0].mxu0 %v1953
  %v1989 = vpop.f32.mrb[0].mxu0
  %v1990 = vadd.f32 %v466, %v1989
  %v1991 = vpop.f32.mrb[0].mxu0
  %v1992 = vadd.f32 %v468, %v1991
  %v1993 = vpop.f32.mrb[0].mxu0
  %v1994 = vpop.f32.mrb[0].mxu0
  %1995 = vdwg.mxu0
  %v1996 = vadd.f32 %v1990, %v1621
  %v1997 = vadd.f32 %v1992, %v1625
  %v1999 = vsel %vm292, %v1506, 0
  %2001 = vmatprep.subr.bf16.mxu0 %v1567
  %2002 = vmatpush1.bf16.msra.mxu0 %v1566
  %2003 = vmatprep.subr.bf16.mxu0 %v1569
  %2004 = vmatpush1.bf16.msra.mxu0 %v1568
  %2005 = vmatprep.subr.bf16.mxu0 0
  %2006 = vmatpush1.bf16.msra.mxu0 0
  %2007 = vmatprep.subr.bf16.mxu0 0
  %2008 = vmatpush1.bf16.msra.mxu0 0
  %2009 = vmatprep.subr.bf16.mxu0 0
  %2010 = vmatpush1.bf16.msra.mxu0 0
  %2011 = vmatprep.subr.bf16.mxu0 0
  %2012 = vmatpush1.bf16.msra.mxu0 0
  %2013 = vmatprep.subr.bf16.mxu0 0
  %2014 = vmatpush1.bf16.msra.mxu0 0
  %2015 = vmatprep.subr.bf16.mxu0 0
  %2016 = vmatpush1.bf16.msra.mxu0 0
  %2017 = vmatprep.subr.bf16.mxu0 0
  %2018 = vmatpush1.bf16.msra.mxu0 0
  %2019 = vmatprep.subr.bf16.mxu0 0
  %2020 = vmatpush1.bf16.msra.mxu0 0
  %2021 = vmatprep.subr.bf16.mxu0 0
  %2022 = vmatpush1.bf16.msra.mxu0 0
  %2023 = vmatprep.subr.bf16.mxu0 0
  %2024 = vmatpush1.bf16.msra.mxu0 0
  %2025 = vmatprep.subr.bf16.mxu0 0
  %2026 = vmatpush1.bf16.msra.mxu0 0
  %2027 = vmatprep.subr.bf16.mxu0 0
  %2028 = vmatpush1.bf16.msra.mxu0 0
  %2029 = vmatprep.subr.bf16.mxu0 0
  %2030 = vmatpush1.bf16.msra.mxu0 0
  %2031 = vmatprep.subr.bf16.mxu0 0
  %2032 = vmatpush1.bf16.msra.mxu0 0
  %2033 = vmatprep.mubr.bf16.mxu0 0
  %2034 = vmatmul.mubr.bf16.gmra.mrb[0].mxu0 %v1999
  %v2035 = vpop.f32.mrb[0].mxu0
  %v2036 = vadd.f32 %v331, %v2035
  %v2037 = vpop.f32.mrb[0].mxu0
  %v2038 = vadd.f32 %v333, %v2037
  %v2039 = vpop.f32.mrb[0].mxu0
  %v2040 = vpop.f32.mrb[0].mxu0
  %2041 = vdwg.mxu0
  %v2042 = vadd.f32 %v2036, %v1621
  %v2043 = vadd.f32 %v2038, %v1625
  %v2044 = vsel %vm74, %v2042, %v1628
  %v2045 = vsel %vm75, %v2043, %v1629
  %v2046 = vsel %vm74, %v1996, %v1674
  %v2047 = vsel %vm75, %v1997, %v1675
  %v2048 = vsel %vm74, %v1950, %v1720
  %v2049 = vsel %vm75, %v1951, %v1721
  %v2050 = vsel %vm74, %v1904, %v1766
  %v2051 = vsel %vm75, %v1905, %v1767
  %v2052 = vsel %vm74, %v1858, %v1812
  %v2053 = vsel %vm75, %v1859, %v1813
  %v2054 = vsel %vm74, %v1812, %v1858
  %v2055 = vsel %vm75, %v1813, %v1859
  %v2056 = vsel %vm74, %v1766, %v1904
  %v2057 = vsel %vm75, %v1767, %v1905
  %v2058 = vsel %vm74, %v1720, %v1950
  %v2059 = vsel %vm75, %v1721, %v1951
  %v2060 = vsel %vm74, %v1674, %v1996
  %v2061 = vsel %vm75, %v1675, %v1997
  %v2062 = vsel %vm74, %v1628, %v2042
  %v2063 = vsel %vm75, %v1629, %v2043
  %v2064 = vld [vmem:[%s6] sm:$0xff]
  %v2065 = vld [vmem:[%s6 + $0x8] sm:$0xff]
  %v2066 = vld [vmem:[%s6 + $0x10] sm:$0xff]
  %v2067 = vld [vmem:[%s6 + $0x18] sm:$0xff]
  %v2068 = vld [vmem:[%s6 + $0x20] sm:$0xff]
  %v2069 = vld [vmem:[%s6 + $0x28] sm:$0xff]
  %v2070 = vld [vmem:[%s6 + $0x30] sm:$0xff]
  %v2071 = vld [vmem:[%s6 + $0x38] sm:$0xff]
  %v2080 = vunpack.c.l.b16 %v2064
  %v2081 = vunpack.c.h.b16 %v2064
  %v2082 = vunpack.c.l.b16 %v2065
  %v2083 = vunpack.c.h.b16 %v2065
  %v2084 = vunpack.c.l.b16 %v2066
  %v2085 = vunpack.c.h.b16 %v2066
  %v2086 = vunpack.c.l.b16 %v2067
  %v2087 = vunpack.c.h.b16 %v2067
  %v2088 = vunpack.c.l.b16 %v2068
  %v2089 = vunpack.c.h.b16 %v2068
  %v2090 = vunpack.c.l.b16 %v2069
  %v2091 = vunpack.c.h.b16 %v2069
  %v2092 = vunpack.c.l.b16 %v2070
  %v2093 = vunpack.c.h.b16 %v2070
  %v2094 = vunpack.c.l.b16 %v2071
  %v2095 = vunpack.c.h.b16 %v2071
  %v2096 = vpack.c.b16 %v2082, %v2080
  %v2097 = vpack.c.b16 %v2083, %v2081
  %v2098 = vpack.c.b16 %v2086, %v2084
  %v2099 = vpack.c.b16 %v2087, %v2085
  %v2100 = vpack.c.b16 %v2090, %v2088
  %v2101 = vpack.c.b16 %v2091, %v2089
  %v2102 = vpack.c.b16 %v2094, %v2092
  %v2103 = vpack.c.b16 %v2095, %v2093
  %2112 = vmatprep.subr.bf16.mxu0 %v2097
  %2113 = vmatpush1.bf16.msra.mxu0 %v2096
  %2114 = vmatprep.subr.bf16.mxu0 %v2099
  %2115 = vmatpush1.bf16.msra.mxu0 %v2098
  %2116 = vmatprep.subr.bf16.mxu0 %v2101
  %2117 = vmatpush1.bf16.msra.mxu0 %v2100
  %2118 = vmatprep.subr.bf16.mxu0 %v2103
  %2119 = vmatpush1.bf16.msra.mxu0 %v2102
  %2120 = vmatprep.subr.bf16.mxu0 0
  %2121 = vmatpush1.bf16.msra.mxu0 0
  %2122 = vmatprep.subr.bf16.mxu0 0
  %2123 = vmatpush1.bf16.msra.mxu0 0
  %2124 = vmatprep.subr.bf16.mxu0 0
  %2125 = vmatpush1.bf16.msra.mxu0 0
  %2126 = vmatprep.subr.bf16.mxu0 0
  %2127 = vmatpush1.bf16.msra.mxu0 0
  %2128 = vmatprep.subr.bf16.mxu0 0
  %2129 = vmatpush1.bf16.msra.mxu0 0
  %2130 = vmatprep.subr.bf16.mxu0 0
  %2131 = vmatpush1.bf16.msra.mxu0 0
  %2132 = vmatprep.subr.bf16.mxu0 0
  %2133 = vmatpush1.bf16.msra.mxu0 0
  %2134 = vmatprep.subr.bf16.mxu0 0
  %2135 = vmatpush1.bf16.msra.mxu0 0
  %2136 = vmatprep.subr.bf16.mxu0 0
  %2137 = vmatpush1.bf16.msra.mxu0 0
  %2138 = vmatprep.subr.bf16.mxu0 0
  %2139 = vmatpush1.bf16.msra.mxu0 0
  %2140 = vmatprep.subr.bf16.mxu0 0
  %2141 = vmatpush1.bf16.msra.mxu0 0
  %2142 = vmatprep.subr.bf16.mxu0 0
  %2143 = vmatpush1.bf16.msra.mxu0 0
  %2144 = vmatprep.mubr.bf16.mxu0 0
  %2145 = vmatmul.mubr.bf16.gmra.mrb[0].mxu0 %v187
  %v2146 = vpop.f32.mrb[0].mxu0
  %v2147 = vadd.f32 0.0, %v2146
  %v2148 = vpop.f32.mrb[0].mxu0
  %v2149 = vadd.f32 0.0, %v2148
  %v2150 = vpop.f32.mrb[0].mxu0
  %v2151 = vpop.f32.mrb[0].mxu0
  %2152 = vdwg.mxu0
  %v2153 = vadd.f32 %v2044, %v2147
  %v2154 = vadd.f32 %v2045, %v2149
  %v2155 = vxor.u32 %v2153, 2147483648
  %v2156 = vxor.u32 %v2154, 2147483648
  %v2157 = vmul.f32 %v2155, 1.442695
  %v2158 = vpow.pop %v2157
  %v2159 = vmul.f32 %v2156, 1.442695
  %v2160 = vpow.pop %v2159
  %v2161 = vadd.f32 %v2158, 1.0
  %v2162 = vadd.f32 %v2160, 1.0
  %v2163 = vrcp.pop %v2161
  %v2164 = vmul.f32 1.0, %v2163
  %v2165 = vrcp.pop %v2162
  %v2166 = vmul.f32 1.0, %v2165
  %v2167 = vtanh.pop %v2154
  %v2168 = vmul.f32 %v2164, 0.0
  %2170 = vrot.lane.b32.xlu0 %v2167, 64
  %v2171 = vpop.permute.xlu0 %2170
  %v2173 = vmul.f32 %v2164, %v2171
  %2175 = vrot.lane.b32.xlu0 %v2173, 64
  %v2176 = vpop.permute.xlu0 %2175
  %v2178 = vadd.f32 %v2168, %v2176
  %v2179 = vtanh.pop %v2178
  %2181 = vrot.lane.b32.xlu0 %v2179, 64
  %v2182 = vpop.permute.xlu0 %2181
  %v2184 = vmul.f32 %v2166, %v2182
  %v2185 = vsel %vm80, %v2184, 0.0
  %2187 = vrot.lane.b32.xlu0 %v2178, 64
  %v2188 = vpop.permute.xlu0 %2187
  %v2190 = vsel %vm80, %v2188, 0.0
  %v2191 = vpack.c.bf16 %v2185, %v2185
  %v2193 = vsel %vm185, %v2191, 0
  %2195 = vmatprep.subr.bf16.mxu0 %v2097
  %2196 = vmatpush1.bf16.msra.mxu0 %v2096
  %2197 = vmatprep.subr.bf16.mxu0 %v2099
  %2198 = vmatpush1.bf16.msra.mxu0 %v2098
  %2199 = vmatprep.subr.bf16.mxu0 %v2101
  %2200 = vmatpush1.bf16.msra.mxu0 %v2100
  %2201 = vmatprep.subr.bf16.mxu0 %v2103
  %2202 = vmatpush1.bf16.msra.mxu0 %v2102
  %2203 = vmatprep.subr.bf16.mxu0 0
  %2204 = vmatpush1.bf16.msra.mxu0 0
  %2205 = vmatprep.subr.bf16.mxu0 0
  %2206 = vmatpush1.bf16.msra.mxu0 0
  %2207 = vmatprep.subr.bf16.mxu0 0
  %2208 = vmatpush1.bf16.msra.mxu0 0
  %2209 = vmatprep.subr.bf16.mxu0 0
  %2210 = vmatpush1.bf16.msra.mxu0 0
  %2211 = vmatprep.subr.bf16.mxu0 0
  %2212 = vmatpush1.bf16.msra.mxu0 0
  %2213 = vmatprep.subr.bf16.mxu0 0
  %2214 = vmatpush1.bf16.msra.mxu0 0
  %2215 = vmatprep.subr.bf16.mxu0 0
  %2216 = vmatpush1.bf16.msra.mxu0 0
  %2217 = vmatprep.subr.bf16.mxu0 0
  %2218 = vmatpush1.bf16.msra.mxu0 0
  %2219 = vmatprep.subr.bf16.mxu0 0
  %2220 = vmatpush1.bf16.msra.mxu0 0
  %2221 = vmatprep.subr.bf16.mxu0 0
  %2222 = vmatpush1.bf16.msra.mxu0 0
  %2223 = vmatprep.subr.bf16.mxu0 0
  %2224 = vmatpush1.bf16.msra.mxu0 0
  %2225 = vmatprep.subr.bf16.mxu0 0
  %2226 = vmatpush1.bf16.msra.mxu0 0
  %2227 = vmatprep.mubr.bf16.mxu0 0
  %2228 = vmatmul.mubr.bf16.gmra.mrb[0].mxu0 %v2193
  %v2229 = vpop.f32.mrb[0].mxu0
  %v2230 = vadd.f32 0.0, %v2229
  %v2231 = vpop.f32.mrb[0].mxu0
  %v2232 = vadd.f32 0.0, %v2231
  %v2233 = vpop.f32.mrb[0].mxu0
  %v2234 = vpop.f32.mrb[0].mxu0
  %2235 = vdwg.mxu0
  %v2236 = vadd.f32 %v2046, %v2230
  %v2237 = vadd.f32 %v2047, %v2232
  %v2238 = vxor.u32 %v2236, 2147483648
  %v2239 = vxor.u32 %v2237, 2147483648
  %v2240 = vmul.f32 %v2238, 1.442695
  %v2241 = vpow.pop %v2240
  %v2242 = vmul.f32 %v2239, 1.442695
  %v2243 = vpow.pop %v2242
  %v2244 = vadd.f32 %v2241, 1.0
  %v2245 = vadd.f32 %v2243, 1.0
  %v2246 = vrcp.pop %v2244
  %v2247 = vmul.f32 1.0, %v2246
  %v2248 = vrcp.pop %v2245
  %v2249 = vmul.f32 1.0, %v2248
  %v2250 = vtanh.pop %v2237
  %2252 = vrot.lane.b32.xlu0 %v2190, 64
  %v2253 = vpop.permute.xlu0 %2252
  %v2255 = vmul.f32 %v2247, %v2253
  %2257 = vrot.lane.b32.xlu0 %v2250, 64
  %v2258 = vpop.permute.xlu0 %2257
  %v2260 = vmul.f32 %v2247, %v2258
  %2262 = vrot.lane.b32.xlu0 %v2260, 64
  %v2263 = vpop.permute.xlu0 %2262
  %v2265 = vadd.f32 %v2255, %v2263
  %v2266 = vtanh.pop %v2265
  %2268 = vrot.lane.b32.xlu0 %v2266, 64
  %v2269 = vpop.permute.xlu0 %2268
  %v2271 = vmul.f32 %v2249, %v2269
  %v2272 = vsel %vm82, %v2271, %v2185
  %2274 = vrot.lane.b32.xlu0 %v2265, 64
  %v2275 = vpop.permute.xlu0 %2274
  %v2277 = vsel %vm82, %v2275, %v2190
  %v2278 = vpack.c.bf16 %v2272, %v2272
  %v2280 = vsel %vm185, %v2278, 0
  %2282 = vmatprep.subr.bf16.mxu0 %v2097
  %2283 = vmatpush1.bf16.msra.mxu0 %v2096
  %2284 = vmatprep.subr.bf16.mxu0 %v2099
  %2285 = vmatpush1.bf16.msra.mxu0 %v2098
  %2286 = vmatprep.subr.bf16.mxu0 %v2101
  %2287 = vmatpush1.bf16.msra.mxu0 %v2100
  %2288 = vmatprep.subr.bf16.mxu0 %v2103
  %2289 = vmatpush1.bf16.msra.mxu0 %v2102
  %2290 = vmatprep.subr.bf16.mxu0 0
  %2291 = vmatpush1.bf16.msra.mxu0 0
  %2292 = vmatprep.subr.bf16.mxu0 0
  %2293 = vmatpush1.bf16.msra.mxu0 0
  %2294 = vmatprep.subr.bf16.mxu0 0
  %2295 = vmatpush1.bf16.msra.mxu0 0
  %2296 = vmatprep.subr.bf16.mxu0 0
  %2297 = vmatpush1.bf16.msra.mxu0 0
  %2298 = vmatprep.subr.bf16.mxu0 0
  %2299 = vmatpush1.bf16.msra.mxu0 0
  %2300 = vmatprep.subr.bf16.mxu0 0
  %2301 = vmatpush1.bf16.msra.mxu0 0
  %2302 = vmatprep.subr.bf16.mxu0 0
  %2303 = vmatpush1.bf16.msra.mxu0 0
  %2304 = vmatprep.subr.bf16.mxu0 0
  %2305 = vmatpush1.bf16.msra.mxu0 0
  %2306 = vmatprep.subr.bf16.mxu0 0
  %2307 = vmatpush1.bf16.msra.mxu0 0
  %2308 = vmatprep.subr.bf16.mxu0 0
  %2309 = vmatpush1.bf16.msra.mxu0 0
  %2310 = vmatprep.subr.bf16.mxu0 0
  %2311 = vmatpush1.bf16.msra.mxu0 0
  %2312 = vmatprep.subr.bf16.mxu0 0
  %2313 = vmatpush1.bf16.msra.mxu0 0
  %2314 = vmatprep.mubr.bf16.mxu0 0
  %2315 = vmatmul.mubr.bf16.gmra.mrb[0].mxu0 %v2280
  %v2316 = vpop.f32.mrb[0].mxu0
  %v2317 = vadd.f32 0.0, %v2316
  %v2318 = vpop.f32.mrb[0].mxu0
  %v2319 = vadd.f32 0.0, %v2318
  %v2320 = vpop.f32.mrb[0].mxu0
  %v2321 = vpop.f32.mrb[0].mxu0
  %2322 = vdwg.mxu0
  %v2323 = vadd.f32 %v2048, %v2317
  %v2324 = vadd.f32 %v2049, %v2319
  %v2325 = vxor.u32 %v2323, 2147483648
  %v2326 = vxor.u32 %v2324, 2147483648
  %v2327 = vmul.f32 %v2325, 1.442695
  %v2328 = vpow.pop %v2327
  %v2329 = vmul.f32 %v2326, 1.442695
  %v2330 = vpow.pop %v2329
  %v2331 = vadd.f32 %v2328, 1.0
  %v2332 = vadd.f32 %v2330, 1.0
  %v2333 = vrcp.pop %v2331
  %v2334 = vmul.f32 1.0, %v2333
  %v2335 = vrcp.pop %v2332
  %v2336 = vmul.f32 1.0, %v2335
  %v2337 = vtanh.pop %v2324
  %2339 = vrot.lane.b32.xlu0 %v2277, 64
  %v2340 = vpop.permute.xlu0 %2339
  %v2342 = vmul.f32 %v2334, %v2340
  %2344 = vrot.lane.b32.xlu0 %v2337, 64
  %v2345 = vpop.permute.xlu0 %2344
  %v2347 = vmul.f32 %v2334, %v2345
  %2349 = vrot.lane.b32.xlu0 %v2347, 64
  %v2350 = vpop.permute.xlu0 %2349
  %v2352 = vadd.f32 %v2342, %v2350
  %v2353 = vtanh.pop %v2352
  %2355 = vrot.lane.b32.xlu0 %v2353, 64
  %v2356 = vpop.permute.xlu0 %2355
  %v2358 = vmul.f32 %v2336, %v2356
  %v2359 = vsel %vm84, %v2358, %v2272
  %2361 = vrot.lane.b32.xlu0 %v2352, 64
  %v2362 = vpop.permute.xlu0 %2361
  %v2364 = vsel %vm84, %v2362, %v2277
  %v2365 = vpack.c.bf16 %v2359, %v2359
  %v2367 = vsel %vm185, %v2365, 0
  %2369 = vmatprep.subr.bf16.mxu0 %v2097
  %2370 = vmatpush1.bf16.msra.mxu0 %v2096
  %2371 = vmatprep.subr.bf16.mxu0 %v2099
  %2372 = vmatpush1.bf16.msra.mxu0 %v2098
  %2373 = vmatprep.subr.bf16.mxu0 %v2101
  %2374 = vmatpush1.bf16.msra.mxu0 %v2100
  %2375 = vmatprep.subr.bf16.mxu0 %v2103
  %2376 = vmatpush1.bf16.msra.mxu0 %v2102
  %2377 = vmatprep.subr.bf16.mxu0 0
  %2378 = vmatpush1.bf16.msra.mxu0 0
  %2379 = vmatprep.subr.bf16.mxu0 0
  %2380 = vmatpush1.bf16.msra.mxu0 0
  %2381 = vmatprep.subr.bf16.mxu0 0
  %2382 = vmatpush1.bf16.msra.mxu0 0
  %2383 = vmatprep.subr.bf16.mxu0 0
  %2384 = vmatpush1.bf16.msra.mxu0 0
  %2385 = vmatprep.subr.bf16.mxu0 0
  %2386 = vmatpush1.bf16.msra.mxu0 0
  %2387 = vmatprep.subr.bf16.mxu0 0
  %2388 = vmatpush1.bf16.msra.mxu0 0
  %2389 = vmatprep.subr.bf16.mxu0 0
  %2390 = vmatpush1.bf16.msra.mxu0 0
  %2391 = vmatprep.subr.bf16.mxu0 0
  %2392 = vmatpush1.bf16.msra.mxu0 0
  %2393 = vmatprep.subr.bf16.mxu0 0
  %2394 = vmatpush1.bf16.msra.mxu0 0
  %2395 = vmatprep.subr.bf16.mxu0 0
  %2396 = vmatpush1.bf16.msra.mxu0 0
  %2397 = vmatprep.subr.bf16.mxu0 0
  %2398 = vmatpush1.bf16.msra.mxu0 0
  %2399 = vmatprep.subr.bf16.mxu0 0
  %2400 = vmatpush1.bf16.msra.mxu0 0
  %2401 = vmatprep.mubr.bf16.mxu0 0
  %2402 = vmatmul.mubr.bf16.gmra.mrb[0].mxu0 %v2367
  %v2403 = vpop.f32.mrb[0].mxu0
  %v2404 = vadd.f32 0.0, %v2403
  %v2405 = vpop.f32.mrb[0].mxu0
  %v2406 = vadd.f32 0.0, %v2405
  %v2407 = vpop.f32.mrb[0].mxu0
  %v2408 = vpop.f32.mrb[0].mxu0
  %2409 = vdwg.mxu0
  %v2410 = vadd.f32 %v2050, %v2404
  %v2411 = vadd.f32 %v2051, %v2406
  %v2412 = vxor.u32 %v2410, 2147483648
  %v2413 = vxor.u32 %v2411, 2147483648
  %v2414 = vmul.f32 %v2412, 1.442695
  %v2415 = vpow.pop %v2414
  %v2416 = vmul.f32 %v2413, 1.442695
  %v2417 = vpow.pop %v2416
  %v2418 = vadd.f32 %v2415, 1.0
  %v2419 = vadd.f32 %v2417, 1.0
  %v2420 = vrcp.pop %v2418
  %v2421 = vmul.f32 1.0, %v2420
  %v2422 = vrcp.pop %v2419
  %v2423 = vmul.f32 1.0, %v2422
  %v2424 = vtanh.pop %v2411
  %2426 = vrot.lane.b32.xlu0 %v2364, 64
  %v2427 = vpop.permute.xlu0 %2426
  %v2429 = vmul.f32 %v2421, %v2427
  %2431 = vrot.lane.b32.xlu0 %v2424, 64
  %v2432 = vpop.permute.xlu0 %2431
  %v2434 = vmul.f32 %v2421, %v2432
  %2436 = vrot.lane.b32.xlu0 %v2434, 64
  %v2437 = vpop.permute.xlu0 %2436
  %v2439 = vadd.f32 %v2429, %v2437
  %v2440 = vtanh.pop %v2439
  %2442 = vrot.lane.b32.xlu0 %v2440, 64
  %v2443 = vpop.permute.xlu0 %2442
  %v2445 = vmul.f32 %v2423, %v2443
  %v2446 = vsel %vm86, %v2445, %v2359
  %2448 = vrot.lane.b32.xlu0 %v2439, 64
  %v2449 = vpop.permute.xlu0 %2448
  %v2451 = vsel %vm86, %v2449, %v2364
  %v2452 = vpack.c.bf16 %v2446, %v2446
  %v2454 = vsel %vm185, %v2452, 0
  %2456 = vmatprep.subr.bf16.mxu0 %v2097
  %2457 = vmatpush1.bf16.msra.mxu0 %v2096
  %2458 = vmatprep.subr.bf16.mxu0 %v2099
  %2459 = vmatpush1.bf16.msra.mxu0 %v2098
  %2460 = vmatprep.subr.bf16.mxu0 %v2101
  %2461 = vmatpush1.bf16.msra.mxu0 %v2100
  %2462 = vmatprep.subr.bf16.mxu0 %v2103
  %2463 = vmatpush1.bf16.msra.mxu0 %v2102
  %2464 = vmatprep.subr.bf16.mxu0 0
  %2465 = vmatpush1.bf16.msra.mxu0 0
  %2466 = vmatprep.subr.bf16.mxu0 0
  %2467 = vmatpush1.bf16.msra.mxu0 0
  %2468 = vmatprep.subr.bf16.mxu0 0
  %2469 = vmatpush1.bf16.msra.mxu0 0
  %2470 = vmatprep.subr.bf16.mxu0 0
  %2471 = vmatpush1.bf16.msra.mxu0 0
  %2472 = vmatprep.subr.bf16.mxu0 0
  %2473 = vmatpush1.bf16.msra.mxu0 0
  %2474 = vmatprep.subr.bf16.mxu0 0
  %2475 = vmatpush1.bf16.msra.mxu0 0
  %2476 = vmatprep.subr.bf16.mxu0 0
  %2477 = vmatpush1.bf16.msra.mxu0 0
  %2478 = vmatprep.subr.bf16.mxu0 0
  %2479 = vmatpush1.bf16.msra.mxu0 0
  %2480 = vmatprep.subr.bf16.mxu0 0
  %2481 = vmatpush1.bf16.msra.mxu0 0
  %2482 = vmatprep.subr.bf16.mxu0 0
  %2483 = vmatpush1.bf16.msra.mxu0 0
  %2484 = vmatprep.subr.bf16.mxu0 0
  %2485 = vmatpush1.bf16.msra.mxu0 0
  %2486 = vmatprep.subr.bf16.mxu0 0
  %2487 = vmatpush1.bf16.msra.mxu0 0
  %2488 = vmatprep.mubr.bf16.mxu0 0
  %2489 = vmatmul.mubr.bf16.gmra.mrb[0].mxu0 %v2454
  %v2490 = vpop.f32.mrb[0].mxu0
  %v2491 = vadd.f32 0.0, %v2490
  %v2492 = vpop.f32.mrb[0].mxu0
  %v2493 = vadd.f32 0.0, %v2492
  %v2494 = vpop.f32.mrb[0].mxu0
  %v2495 = vpop.f32.mrb[0].mxu0
  %2496 = vdwg.mxu0
  %v2497 = vadd.f32 %v2052, %v2491
  %v2498 = vadd.f32 %v2053, %v2493
  %v2499 = vxor.u32 %v2497, 2147483648
  %v2500 = vxor.u32 %v2498, 2147483648
  %v2501 = vmul.f32 %v2499, 1.442695
  %v2502 = vpow.pop %v2501
  %v2503 = vmul.f32 %v2500, 1.442695
  %v2504 = vpow.pop %v2503
  %v2505 = vadd.f32 %v2502, 1.0
  %v2506 = vadd.f32 %v2504, 1.0
  %v2507 = vrcp.pop %v2505
  %v2508 = vmul.f32 1.0, %v2507
  %v2509 = vrcp.pop %v2506
  %v2510 = vmul.f32 1.0, %v2509
  %v2511 = vtanh.pop %v2498
  %2513 = vrot.lane.b32.xlu0 %v2451, 64
  %v2514 = vpop.permute.xlu0 %2513
  %v2516 = vmul.f32 %v2508, %v2514
  %2518 = vrot.lane.b32.xlu0 %v2511, 64
  %v2519 = vpop.permute.xlu0 %2518
  %v2521 = vmul.f32 %v2508, %v2519
  %2523 = vrot.lane.b32.xlu0 %v2521, 64
  %v2524 = vpop.permute.xlu0 %2523
  %v2526 = vadd.f32 %v2516, %v2524
  %v2527 = vtanh.pop %v2526
  %2529 = vrot.lane.b32.xlu0 %v2527, 64
  %v2530 = vpop.permute.xlu0 %2529
  %v2532 = vmul.f32 %v2510, %v2530
  %v2533 = vsel %vm88, %v2532, %v2446
  %2535 = vrot.lane.b32.xlu0 %v2526, 64
  %v2536 = vpop.permute.xlu0 %2535
  %v2538 = vsel %vm88, %v2536, %v2451
  %v2539 = vpack.c.bf16 %v2533, %v2533
  %v2541 = vsel %vm185, %v2539, 0
  %2543 = vmatprep.subr.bf16.mxu0 %v2097
  %2544 = vmatpush1.bf16.msra.mxu0 %v2096
  %2545 = vmatprep.subr.bf16.mxu0 %v2099
  %2546 = vmatpush1.bf16.msra.mxu0 %v2098
  %2547 = vmatprep.subr.bf16.mxu0 %v2101
  %2548 = vmatpush1.bf16.msra.mxu0 %v2100
  %2549 = vmatprep.subr.bf16.mxu0 %v2103
  %2550 = vmatpush1.bf16.msra.mxu0 %v2102
  %2551 = vmatprep.subr.bf16.mxu0 0
  %2552 = vmatpush1.bf16.msra.mxu0 0
  %2553 = vmatprep.subr.bf16.mxu0 0
  %2554 = vmatpush1.bf16.msra.mxu0 0
  %2555 = vmatprep.subr.bf16.mxu0 0
  %2556 = vmatpush1.bf16.msra.mxu0 0
  %2557 = vmatprep.subr.bf16.mxu0 0
  %2558 = vmatpush1.bf16.msra.mxu0 0
  %2559 = vmatprep.subr.bf16.mxu0 0
  %2560 = vmatpush1.bf16.msra.mxu0 0
  %2561 = vmatprep.subr.bf16.mxu0 0
  %2562 = vmatpush1.bf16.msra.mxu0 0
  %2563 = vmatprep.subr.bf16.mxu0 0
  %2564 = vmatpush1.bf16.msra.mxu0 0
  %2565 = vmatprep.subr.bf16.mxu0 0
  %2566 = vmatpush1.bf16.msra.mxu0 0
  %2567 = vmatprep.subr.bf16.mxu0 0
  %2568 = vmatpush1.bf16.msra.mxu0 0
  %2569 = vmatprep.subr.bf16.mxu0 0
  %2570 = vmatpush1.bf16.msra.mxu0 0
  %2571 = vmatprep.subr.bf16.mxu0 0
  %2572 = vmatpush1.bf16.msra.mxu0 0
  %2573 = vmatprep.subr.bf16.mxu0 0
  %2574 = vmatpush1.bf16.msra.mxu0 0
  %2575 = vmatprep.mubr.bf16.mxu0 0
  %2576 = vmatmul.mubr.bf16.gmra.mrb[0].mxu0 %v2541
  %v2577 = vpop.f32.mrb[0].mxu0
  %v2578 = vadd.f32 0.0, %v2577
  %v2579 = vpop.f32.mrb[0].mxu0
  %v2580 = vadd.f32 0.0, %v2579
  %v2581 = vpop.f32.mrb[0].mxu0
  %v2582 = vpop.f32.mrb[0].mxu0
  %2583 = vdwg.mxu0
  %v2584 = vadd.f32 %v2054, %v2578
  %v2585 = vadd.f32 %v2055, %v2580
  %v2586 = vxor.u32 %v2584, 2147483648
  %v2587 = vxor.u32 %v2585, 2147483648
  %v2588 = vmul.f32 %v2586, 1.442695
  %v2589 = vpow.pop %v2588
  %v2590 = vmul.f32 %v2587, 1.442695
  %v2591 = vpow.pop %v2590
  %v2592 = vadd.f32 %v2589, 1.0
  %v2593 = vadd.f32 %v2591, 1.0
  %v2594 = vrcp.pop %v2592
  %v2595 = vmul.f32 1.0, %v2594
  %v2596 = vrcp.pop %v2593
  %v2597 = vmul.f32 1.0, %v2596
  %v2598 = vtanh.pop %v2585
  %2600 = vrot.lane.b32.xlu0 %v2538, 64
  %v2601 = vpop.permute.xlu0 %2600
  %v2603 = vmul.f32 %v2595, %v2601
  %2605 = vrot.lane.b32.xlu0 %v2598, 64
  %v2606 = vpop.permute.xlu0 %2605
  %v2608 = vmul.f32 %v2595, %v2606
  %2610 = vrot.lane.b32.xlu0 %v2608, 64
  %v2611 = vpop.permute.xlu0 %2610
  %v2613 = vadd.f32 %v2603, %v2611
  %v2614 = vtanh.pop %v2613
  %2616 = vrot.lane.b32.xlu0 %v2614, 64
  %v2617 = vpop.permute.xlu0 %2616
  %v2619 = vmul.f32 %v2597, %v2617
  %v2620 = vsel %vm90, %v2619, %v2533
  %2622 = vrot.lane.b32.xlu0 %v2613, 64
  %v2623 = vpop.permute.xlu0 %2622
  %v2625 = vsel %vm90, %v2623, %v2538
  %v2626 = vpack.c.bf16 %v2620, %v2620
  %v2628 = vsel %vm185, %v2626, 0
  %2630 = vmatprep.subr.bf16.mxu0 %v2097
  %2631 = vmatpush1.bf16.msra.mxu0 %v2096
  %2632 = vmatprep.subr.bf16.mxu0 %v2099
  %2633 = vmatpush1.bf16.msra.mxu0 %v2098
  %2634 = vmatprep.subr.bf16.mxu0 %v2101
  %2635 = vmatpush1.bf16.msra.mxu0 %v2100
  %2636 = vmatprep.subr.bf16.mxu0 %v2103
  %2637 = vmatpush1.bf16.msra.mxu0 %v2102
  %2638 = vmatprep.subr.bf16.mxu0 0
  %2639 = vmatpush1.bf16.msra.mxu0 0
  %2640 = vmatprep.subr.bf16.mxu0 0
  %2641 = vmatpush1.bf16.msra.mxu0 0
  %2642 = vmatprep.subr.bf16.mxu0 0
  %2643 = vmatpush1.bf16.msra.mxu0 0
  %2644 = vmatprep.subr.bf16.mxu0 0
  %2645 = vmatpush1.bf16.msra.mxu0 0
  %2646 = vmatprep.subr.bf16.mxu0 0
  %2647 = vmatpush1.bf16.msra.mxu0 0
  %2648 = vmatprep.subr.bf16.mxu0 0
  %2649 = vmatpush1.bf16.msra.mxu0 0
  %2650 = vmatprep.subr.bf16.mxu0 0
  %2651 = vmatpush1.bf16.msra.mxu0 0
  %2652 = vmatprep.subr.bf16.mxu0 0
  %2653 = vmatpush1.bf16.msra.mxu0 0
  %2654 = vmatprep.subr.bf16.mxu0 0
  %2655 = vmatpush1.bf16.msra.mxu0 0
  %2656 = vmatprep.subr.bf16.mxu0 0
  %2657 = vmatpush1.bf16.msra.mxu0 0
  %2658 = vmatprep.subr.bf16.mxu0 0
  %2659 = vmatpush1.bf16.msra.mxu0 0
  %2660 = vmatprep.subr.bf16.mxu0 0
  %2661 = vmatpush1.bf16.msra.mxu0 0
  %2662 = vmatprep.mubr.bf16.mxu0 0
  %2663 = vmatmul.mubr.bf16.gmra.mrb[0].mxu0 %v2628
  %v2664 = vpop.f32.mrb[0].mxu0
  %v2665 = vadd.f32 0.0, %v2664
  %v2666 = vpop.f32.mrb[0].mxu0
  %v2667 = vadd.f32 0.0, %v2666
  %v2668 = vpop.f32.mrb[0].mxu0
  %v2669 = vpop.f32.mrb[0].mxu0
  %2670 = vdwg.mxu0
  %v2671 = vadd.f32 %v2056, %v2665
  %v2672 = vadd.f32 %v2057, %v2667
  %v2673 = vxor.u32 %v2671, 2147483648
  %v2674 = vxor.u32 %v2672, 2147483648
  %v2675 = vmul.f32 %v2673, 1.442695
  %v2676 = vpow.pop %v2675
  %v2677 = vmul.f32 %v2674, 1.442695
  %v2678 = vpow.pop %v2677
  %v2679 = vadd.f32 %v2676, 1.0
  %v2680 = vadd.f32 %v2678, 1.0
  %v2681 = vrcp.pop %v2679
  %v2682 = vmul.f32 1.0, %v2681
  %v2683 = vrcp.pop %v2680
  %v2684 = vmul.f32 1.0, %v2683
  %v2685 = vtanh.pop %v2672
  %2687 = vrot.lane.b32.xlu0 %v2625, 64
  %v2688 = vpop.permute.xlu0 %2687
  %v2690 = vmul.f32 %v2682, %v2688
  %2692 = vrot.lane.b32.xlu0 %v2685, 64
  %v2693 = vpop.permute.xlu0 %2692
  %v2695 = vmul.f32 %v2682, %v2693
  %2697 = vrot.lane.b32.xlu0 %v2695, 64
  %v2698 = vpop.permute.xlu0 %2697
  %v2700 = vadd.f32 %v2690, %v2698
  %v2701 = vtanh.pop %v2700
  %2703 = vrot.lane.b32.xlu0 %v2701, 64
  %v2704 = vpop.permute.xlu0 %2703
  %v2706 = vmul.f32 %v2684, %v2704
  %v2707 = vsel %vm92, %v2706, %v2620
  %2709 = vrot.lane.b32.xlu0 %v2700, 64
  %v2710 = vpop.permute.xlu0 %2709
  %v2712 = vsel %vm92, %v2710, %v2625
  %v2713 = vpack.c.bf16 %v2707, %v2707
  %v2715 = vsel %vm185, %v2713, 0
  %2717 = vmatprep.subr.bf16.mxu0 %v2097
  %2718 = vmatpush1.bf16.msra.mxu0 %v2096
  %2719 = vmatprep.subr.bf16.mxu0 %v2099
  %2720 = vmatpush1.bf16.msra.mxu0 %v2098
  %2721 = vmatprep.subr.bf16.mxu0 %v2101
  %2722 = vmatpush1.bf16.msra.mxu0 %v2100
  %2723 = vmatprep.subr.bf16.mxu0 %v2103
  %2724 = vmatpush1.bf16.msra.mxu0 %v2102
  %2725 = vmatprep.subr.bf16.mxu0 0
  %2726 = vmatpush1.bf16.msra.mxu0 0
  %2727 = vmatprep.subr.bf16.mxu0 0
  %2728 = vmatpush1.bf16.msra.mxu0 0
  %2729 = vmatprep.subr.bf16.mxu0 0
  %2730 = vmatpush1.bf16.msra.mxu0 0
  %2731 = vmatprep.subr.bf16.mxu0 0
  %2732 = vmatpush1.bf16.msra.mxu0 0
  %2733 = vmatprep.subr.bf16.mxu0 0
  %2734 = vmatpush1.bf16.msra.mxu0 0
  %2735 = vmatprep.subr.bf16.mxu0 0
  %2736 = vmatpush1.bf16.msra.mxu0 0
  %2737 = vmatprep.subr.bf16.mxu0 0
  %2738 = vmatpush1.bf16.msra.mxu0 0
  %2739 = vmatprep.subr.bf16.mxu0 0
  %2740 = vmatpush1.bf16.msra.mxu0 0
  %2741 = vmatprep.subr.bf16.mxu0 0
  %2742 = vmatpush1.bf16.msra.mxu0 0
  %2743 = vmatprep.subr.bf16.mxu0 0
  %2744 = vmatpush1.bf16.msra.mxu0 0
  %2745 = vmatprep.subr.bf16.mxu0 0
  %2746 = vmatpush1.bf16.msra.mxu0 0
  %2747 = vmatprep.subr.bf16.mxu0 0
  %2748 = vmatpush1.bf16.msra.mxu0 0
  %2749 = vmatprep.mubr.bf16.mxu0 0
  %2750 = vmatmul.mubr.bf16.gmra.mrb[0].mxu0 %v2715
  %v2751 = vpop.f32.mrb[0].mxu0
  %v2752 = vadd.f32 0.0, %v2751
  %v2753 = vpop.f32.mrb[0].mxu0
  %v2754 = vadd.f32 0.0, %v2753
  %v2755 = vpop.f32.mrb[0].mxu0
  %v2756 = vpop.f32.mrb[0].mxu0
  %2757 = vdwg.mxu0
  %v2758 = vadd.f32 %v2058, %v2752
  %v2759 = vadd.f32 %v2059, %v2754
  %v2760 = vxor.u32 %v2758, 2147483648
  %v2761 = vxor.u32 %v2759, 2147483648
  %v2762 = vmul.f32 %v2760, 1.442695
  %v2763 = vpow.pop %v2762
  %v2764 = vmul.f32 %v2761, 1.442695
  %v2765 = vpow.pop %v2764
  %v2766 = vadd.f32 %v2763, 1.0
  %v2767 = vadd.f32 %v2765, 1.0
  %v2768 = vrcp.pop %v2766
  %v2769 = vmul.f32 1.0, %v2768
  %v2770 = vrcp.pop %v2767
  %v2771 = vmul.f32 1.0, %v2770
  %v2772 = vtanh.pop %v2759
  %2774 = vrot.lane.b32.xlu0 %v2712, 64
  %v2775 = vpop.permute.xlu0 %2774
  %v2777 = vmul.f32 %v2769, %v2775
  %2779 = vrot.lane.b32.xlu0 %v2772, 64
  %v2780 = vpop.permute.xlu0 %2779
  %v2782 = vmul.f32 %v2769, %v2780
  %2784 = vrot.lane.b32.xlu0 %v2782, 64
  %v2785 = vpop.permute.xlu0 %2784
  %v2787 = vadd.f32 %v2777, %v2785
  %v2788 = vtanh.pop %v2787
  %2790 = vrot.lane.b32.xlu0 %v2788, 64
  %v2791 = vpop.permute.xlu0 %2790
  %v2793 = vmul.f32 %v2771, %v2791
  %v2794 = vsel %vm94, %v2793, %v2707
  %2796 = vrot.lane.b32.xlu0 %v2787, 64
  %v2797 = vpop.permute.xlu0 %2796
  %v2799 = vsel %vm94, %v2797, %v2712
  %v2800 = vpack.c.bf16 %v2794, %v2794
  %v2802 = vsel %vm185, %v2800, 0
  %2804 = vmatprep.subr.bf16.mxu0 %v2097
  %2805 = vmatpush1.bf16.msra.mxu0 %v2096
  %2806 = vmatprep.subr.bf16.mxu0 %v2099
  %2807 = vmatpush1.bf16.msra.mxu0 %v2098
  %2808 = vmatprep.subr.bf16.mxu0 %v2101
  %2809 = vmatpush1.bf16.msra.mxu0 %v2100
  %2810 = vmatprep.subr.bf16.mxu0 %v2103
  %2811 = vmatpush1.bf16.msra.mxu0 %v2102
  %2812 = vmatprep.subr.bf16.mxu0 0
  %2813 = vmatpush1.bf16.msra.mxu0 0
  %2814 = vmatprep.subr.bf16.mxu0 0
  %2815 = vmatpush1.bf16.msra.mxu0 0
  %2816 = vmatprep.subr.bf16.mxu0 0
  %2817 = vmatpush1.bf16.msra.mxu0 0
  %2818 = vmatprep.subr.bf16.mxu0 0
  %2819 = vmatpush1.bf16.msra.mxu0 0
  %2820 = vmatprep.subr.bf16.mxu0 0
  %2821 = vmatpush1.bf16.msra.mxu0 0
  %2822 = vmatprep.subr.bf16.mxu0 0
  %2823 = vmatpush1.bf16.msra.mxu0 0
  %2824 = vmatprep.subr.bf16.mxu0 0
  %2825 = vmatpush1.bf16.msra.mxu0 0
  %2826 = vmatprep.subr.bf16.mxu0 0
  %2827 = vmatpush1.bf16.msra.mxu0 0
  %2828 = vmatprep.subr.bf16.mxu0 0
  %2829 = vmatpush1.bf16.msra.mxu0 0
  %2830 = vmatprep.subr.bf16.mxu0 0
  %2831 = vmatpush1.bf16.msra.mxu0 0
  %2832 = vmatprep.subr.bf16.mxu0 0
  %2833 = vmatpush1.bf16.msra.mxu0 0
  %2834 = vmatprep.subr.bf16.mxu0 0
  %2835 = vmatpush1.bf16.msra.mxu0 0
  %2836 = vmatprep.mubr.bf16.mxu0 0
  %2837 = vmatmul.mubr.bf16.gmra.mrb[0].mxu0 %v2802
  %v2838 = vpop.f32.mrb[0].mxu0
  %v2839 = vadd.f32 0.0, %v2838
  %v2840 = vpop.f32.mrb[0].mxu0
  %v2841 = vadd.f32 0.0, %v2840
  %v2842 = vpop.f32.mrb[0].mxu0
  %v2843 = vpop.f32.mrb[0].mxu0
  %2844 = vdwg.mxu0
  %v2845 = vadd.f32 %v2060, %v2839
  %v2846 = vadd.f32 %v2061, %v2841
  %v2847 = vxor.u32 %v2845, 2147483648
  %v2848 = vxor.u32 %v2846, 2147483648
  %v2849 = vmul.f32 %v2847, 1.442695
  %v2850 = vpow.pop %v2849
  %v2851 = vmul.f32 %v2848, 1.442695
  %v2852 = vpow.pop %v2851
  %v2853 = vadd.f32 %v2850, 1.0
  %v2854 = vadd.f32 %v2852, 1.0
  %v2855 = vrcp.pop %v2853
  %v2856 = vmul.f32 1.0, %v2855
  %v2857 = vrcp.pop %v2854
  %v2858 = vmul.f32 1.0, %v2857
  %v2859 = vtanh.pop %v2846
  %2861 = vrot.lane.b32.xlu0 %v2799, 64
  %v2862 = vpop.permute.xlu0 %2861
  %v2864 = vmul.f32 %v2856, %v2862
  %2866 = vrot.lane.b32.xlu0 %v2859, 64
  %v2867 = vpop.permute.xlu0 %2866
  %v2869 = vmul.f32 %v2856, %v2867
  %2871 = vrot.lane.b32.xlu0 %v2869, 64
  %v2872 = vpop.permute.xlu0 %2871
  %v2874 = vadd.f32 %v2864, %v2872
  %v2875 = vtanh.pop %v2874
  %2877 = vrot.lane.b32.xlu0 %v2875, 64
  %v2878 = vpop.permute.xlu0 %2877
  %v2880 = vmul.f32 %v2858, %v2878
  %v2881 = vsel %vm96, %v2880, %v2794
  %2883 = vrot.lane.b32.xlu0 %v2874, 64
  %v2884 = vpop.permute.xlu0 %2883
  %v2886 = vsel %vm96, %v2884, %v2799
  %v2887 = vpack.c.bf16 %v2881, %v2881
  %v2889 = vsel %vm185, %v2887, 0
  %2891 = vmatprep.subr.bf16.mxu0 %v2097
  %2892 = vmatpush1.bf16.msra.mxu0 %v2096
  %2893 = vmatprep.subr.bf16.mxu0 %v2099
  %2894 = vmatpush1.bf16.msra.mxu0 %v2098
  %2895 = vmatprep.subr.bf16.mxu0 %v2101
  %2896 = vmatpush1.bf16.msra.mxu0 %v2100
  %2897 = vmatprep.subr.bf16.mxu0 %v2103
  %2898 = vmatpush1.bf16.msra.mxu0 %v2102
  %2899 = vmatprep.subr.bf16.mxu0 0
  %2900 = vmatpush1.bf16.msra.mxu0 0
  %2901 = vmatprep.subr.bf16.mxu0 0
  %2902 = vmatpush1.bf16.msra.mxu0 0
  %2903 = vmatprep.subr.bf16.mxu0 0
  %2904 = vmatpush1.bf16.msra.mxu0 0
  %2905 = vmatprep.subr.bf16.mxu0 0
  %2906 = vmatpush1.bf16.msra.mxu0 0
  %2907 = vmatprep.subr.bf16.mxu0 0
  %2908 = vmatpush1.bf16.msra.mxu0 0
  %2909 = vmatprep.subr.bf16.mxu0 0
  %2910 = vmatpush1.bf16.msra.mxu0 0
  %2911 = vmatprep.subr.bf16.mxu0 0
  %2912 = vmatpush1.bf16.msra.mxu0 0
  %2913 = vmatprep.subr.bf16.mxu0 0
  %2914 = vmatpush1.bf16.msra.mxu0 0
  %2915 = vmatprep.subr.bf16.mxu0 0
  %2916 = vmatpush1.bf16.msra.mxu0 0
  %2917 = vmatprep.subr.bf16.mxu0 0
  %2918 = vmatpush1.bf16.msra.mxu0 0
  %2919 = vmatprep.subr.bf16.mxu0 0
  %2920 = vmatpush1.bf16.msra.mxu0 0
  %2921 = vmatprep.subr.bf16.mxu0 0
  %2922 = vmatpush1.bf16.msra.mxu0 0
  %2923 = vmatprep.mubr.bf16.mxu0 0
  %2924 = vmatmul.mubr.bf16.gmra.mrb[0].mxu0 %v2889
  %v2925 = vpop.f32.mrb[0].mxu0
  %v2926 = vadd.f32 0.0, %v2925
  %v2927 = vpop.f32.mrb[0].mxu0
  %v2928 = vadd.f32 0.0, %v2927
  %v2929 = vpop.f32.mrb[0].mxu0
  %v2930 = vpop.f32.mrb[0].mxu0
  %2931 = vdwg.mxu0
  %v2932 = vadd.f32 %v2062, %v2926
  %v2933 = vadd.f32 %v2063, %v2928
  %v2934 = vxor.u32 %v2932, 2147483648
  %v2935 = vxor.u32 %v2933, 2147483648
  %v2936 = vmul.f32 %v2934, 1.442695
  %v2937 = vpow.pop %v2936
  %v2938 = vmul.f32 %v2935, 1.442695
  %v2939 = vpow.pop %v2938
  %v2940 = vadd.f32 %v2937, 1.0
  %v2941 = vadd.f32 %v2939, 1.0
  %v2942 = vrcp.pop %v2940
  %v2943 = vmul.f32 1.0, %v2942
  %v2944 = vrcp.pop %v2941
  %v2945 = vmul.f32 1.0, %v2944
  %v2946 = vtanh.pop %v2933
  %2948 = vrot.lane.b32.xlu0 %v2886, 64
  %v2949 = vpop.permute.xlu0 %2948
  %v2951 = vmul.f32 %v2943, %v2949
  %2953 = vrot.lane.b32.xlu0 %v2946, 64
  %v2954 = vpop.permute.xlu0 %2953
  %v2956 = vmul.f32 %v2943, %v2954
  %2958 = vrot.lane.b32.xlu0 %v2956, 64
  %v2959 = vpop.permute.xlu0 %2958
  %v2961 = vadd.f32 %v2951, %v2959
  %v2962 = vtanh.pop %v2961
  %2964 = vrot.lane.b32.xlu0 %v2962, 64
  %v2965 = vpop.permute.xlu0 %2964
  %v2967 = vmul.f32 %v2945, %v2965
  %v2968 = vsel %vm98, %v2967, %v2881
  %v2969 = vpack.c.bf16 %v2968, %v2968
  %v2970 = vld [vmem:[%s7] sm:$0xf]
  %v2971 = vld [vmem:[%s7 + $0x4] sm:$0xf]
  %v2972 = vld [vmem:[%s7 + $0x8] sm:$0xf]
  %v2973 = vld [vmem:[%s7 + $0xc] sm:$0xf]
  %v2974 = vld [vmem:[%s7 + $0x10] sm:$0xf]
  %v2975 = vld [vmem:[%s7 + $0x14] sm:$0xf]
  %v2976 = vld [vmem:[%s7 + $0x18] sm:$0xf]
  %v2977 = vld [vmem:[%s7 + $0x1c] sm:$0xf]
  %v2978 = vld [vmem:[%s8] sm:$0x1]
  %v2980 = vlaneseq
  %v2981 = vshrl.u32 %v2980, 7
  %v2982 = vsub.s32 0, %v2981
  %v2983 = vrot.slane %v2978, %v2982
  %v2993 = vunpack.c.l.b16 %v2970
  %v2994 = vunpack.c.l.b16 %v2971
  %v2995 = vunpack.c.l.b16 %v2972
  %v2996 = vunpack.c.l.b16 %v2973
  %v2997 = vunpack.c.l.b16 %v2974
  %v2998 = vunpack.c.l.b16 %v2975
  %v2999 = vunpack.c.l.b16 %v2976
  %v3000 = vunpack.c.l.b16 %v2977
  %v3001 = vpack.c.b16 %v2994, %v2993
  %v3002 = vpack.c.b16 %v2996, %v2995
  %v3003 = vpack.c.b16 %v2998, %v2997
  %v3004 = vpack.c.b16 %v3000, %v2999
  %v3010 = vsel %vm185, %v2969, 0
  %3012 = vmatprep.subr.bf16.mxu0 0
  %3013 = vmatpush1.bf16.msra.mxu0 %v3001
  %3014 = vmatprep.subr.bf16.mxu0 0
  %3015 = vmatpush1.bf16.msra.mxu0 %v3002
  %3016 = vmatprep.subr.bf16.mxu0 0
  %3017 = vmatpush1.bf16.msra.mxu0 %v3003
  %3018 = vmatprep.subr.bf16.mxu0 0
  %3019 = vmatpush1.bf16.msra.mxu0 %v3004
  %3020 = vmatprep.subr.bf16.mxu0 0
  %3021 = vmatpush1.bf16.msra.mxu0 0
  %3022 = vmatprep.subr.bf16.mxu0 0
  %3023 = vmatpush1.bf16.msra.mxu0 0
  %3024 = vmatprep.subr.bf16.mxu0 0
  %3025 = vmatpush1.bf16.msra.mxu0 0
  %3026 = vmatprep.subr.bf16.mxu0 0
  %3027 = vmatpush1.bf16.msra.mxu0 0
  %3028 = vmatprep.subr.bf16.mxu0 0
  %3029 = vmatpush1.bf16.msra.mxu0 0
  %3030 = vmatprep.subr.bf16.mxu0 0
  %3031 = vmatpush1.bf16.msra.mxu0 0
  %3032 = vmatprep.subr.bf16.mxu0 0
  %3033 = vmatpush1.bf16.msra.mxu0 0
  %3034 = vmatprep.subr.bf16.mxu0 0
  %3035 = vmatpush1.bf16.msra.mxu0 0
  %3036 = vmatprep.subr.bf16.mxu0 0
  %3037 = vmatpush1.bf16.msra.mxu0 0
  %3038 = vmatprep.subr.bf16.mxu0 0
  %3039 = vmatpush1.bf16.msra.mxu0 0
  %3040 = vmatprep.subr.bf16.mxu0 0
  %3041 = vmatpush1.bf16.msra.mxu0 0
  %3042 = vmatprep.subr.bf16.mxu0 0
  %3043 = vmatpush1.bf16.msra.mxu0 0
  %3044 = vmatprep.mubr.bf16.mxu0 0
  %3045 = vmatmul.mubr.bf16.gmra.mrb[0].mxu0 %v3010
  %v3046 = vpop.f32.mrb[0].mxu0
  %v3047 = vadd.f32 %v2983, %v3046
  %v3048 = vpop.f32.mrb[0].mxu0
  %v3049 = vpop.f32.mrb[0].mxu0
  %v3050 = vpop.f32.mrb[0].mxu0
  %3051 = vdwg.mxu0
  %v3052 = vmax.f32 %v3047, 0.0
  %v3053 = vpack.c.bf16 %v3052, %v3052
  %v3054 = vld [vmem:[%s9] sm:$0xf]
  %v3055 = vld [vmem:[%s9 + $0x4] sm:$0xf]
  %v3056 = vld [vmem:[%s9 + $0x8] sm:$0xf]
  %v3057 = vld [vmem:[%s9 + $0xc] sm:$0xf]
  %v3058 = vld [vmem:[%s9 + $0x10] sm:$0xf]
  %v3059 = vld [vmem:[%s9 + $0x14] sm:$0xf]
  %v3060 = vld [vmem:[%s9 + $0x18] sm:$0xf]
  %v3061 = vld [vmem:[%s9 + $0x1c] sm:$0xf]
  %v3062 = vld [vmem:[%s10] sm:$0x1]
  %v3064 = vlaneseq
  %v3065 = vshrl.u32 %v3064, 7
  %v3066 = vsub.s32 0, %v3065
  %v3067 = vrot.slane %v3062, %v3066
  %v3077 = vunpack.c.l.b16 %v3054
  %v3078 = vunpack.c.l.b16 %v3055
  %v3079 = vunpack.c.l.b16 %v3056
  %v3080 = vunpack.c.l.b16 %v3057
  %v3081 = vunpack.c.l.b16 %v3058
  %v3082 = vunpack.c.l.b16 %v3059
  %v3083 = vunpack.c.l.b16 %v3060
  %v3084 = vunpack.c.l.b16 %v3061
  %v3085 = vpack.c.b16 %v3078, %v3077
  %v3086 = vpack.c.b16 %v3080, %v3079
  %v3087 = vpack.c.b16 %v3082, %v3081
  %v3088 = vpack.c.b16 %v3084, %v3083
  %v3094 = vsel %vm185, %v3053, 0
  %3096 = vmatprep.subr.bf16.mxu0 0
  %3097 = vmatpush1.bf16.msra.mxu0 %v3085
  %3098 = vmatprep.subr.bf16.mxu0 0
  %3099 = vmatpush1.bf16.msra.mxu0 %v3086
  %3100 = vmatprep.subr.bf16.mxu0 0
  %3101 = vmatpush1.bf16.msra.mxu0 %v3087
  %3102 = vmatprep.subr.bf16.mxu0 0
  %3103 = vmatpush1.bf16.msra.mxu0 %v3088
  %3104 = vmatprep.subr.bf16.mxu0 0
  %3105 = vmatpush1.bf16.msra.mxu0 0
  %3106 = vmatprep.subr.bf16.mxu0 0
  %3107 = vmatpush1.bf16.msra.mxu0 0
  %3108 = vmatprep.subr.bf16.mxu0 0
  %3109 = vmatpush1.bf16.msra.mxu0 0
  %3110 = vmatprep.subr.bf16.mxu0 0
  %3111 = vmatpush1.bf16.msra.mxu0 0
  %3112 = vmatprep.subr.bf16.mxu0 0
  %3113 = vmatpush1.bf16.msra.mxu0 0
  %3114 = vmatprep.subr.bf16.mxu0 0
  %3115 = vmatpush1.bf16.msra.mxu0 0
  %3116 = vmatprep.subr.bf16.mxu0 0
  %3117 = vmatpush1.bf16.msra.mxu0 0
  %3118 = vmatprep.subr.bf16.mxu0 0
  %3119 = vmatpush1.bf16.msra.mxu0 0
  %3120 = vmatprep.subr.bf16.mxu0 0
  %3121 = vmatpush1.bf16.msra.mxu0 0
  %3122 = vmatprep.subr.bf16.mxu0 0
  %3123 = vmatpush1.bf16.msra.mxu0 0
  %3124 = vmatprep.subr.bf16.mxu0 0
  %3125 = vmatpush1.bf16.msra.mxu0 0
  %3126 = vmatprep.subr.bf16.mxu0 0
  %3127 = vmatpush1.bf16.msra.mxu0 0
  %3128 = vmatprep.mubr.bf16.mxu0 0
  %3129 = vmatmul.mubr.bf16.gmra.mrb[0].mxu0 %v3094
  %v3130 = vpop.f32.mrb[0].mxu0
  %v3131 = vadd.f32 %v3067, %v3130
  %v3132 = vpop.f32.mrb[0].mxu0
  %v3133 = vpop.f32.mrb[0].mxu0
  %v3134 = vpop.f32.mrb[0].mxu0
  %3135 = vdwg.mxu0
  %v3136 = vmax.f32 %v3131, 0.0
  %v3137 = vpack.c.bf16 %v3136, %v3136
  %v3138 = vld [vmem:[%s11] sm:$0xf]
  %v3139 = vld [vmem:[%s11 + $0x4] sm:$0xf]
  %v3140 = vld [vmem:[%s11 + $0x8] sm:$0xf]
  %v3141 = vld [vmem:[%s11 + $0xc] sm:$0xf]
  %v3142 = vld [vmem:[%s12] sm:$0x1]
  %v3144 = vlaneseq
  %v3145 = vshrl.u32 %v3144, 7
  %v3146 = vsub.s32 0, %v3145
  %v3147 = vrot.slane %v3142, %v3146
  %v3153 = vunpack.c.l.b16 %v3138
  %v3154 = vunpack.c.l.b16 %v3139
  %v3155 = vunpack.c.l.b16 %v3140
  %v3156 = vunpack.c.l.b16 %v3141
  %v3157 = vpack.c.b16 %v3154, %v3153
  %v3158 = vpack.c.b16 %v3156, %v3155
  %v3162 = vsel %vm292, %v3137, 0
  %3164 = vmatprep.subr.bf16.mxu0 0
  %3165 = vmatpush1.bf16.msra.mxu0 %v3157
  %3166 = vmatprep.subr.bf16.mxu0 0
  %3167 = vmatpush1.bf16.msra.mxu0 %v3158
  %3168 = vmatprep.subr.bf16.mxu0 0
  %3169 = vmatpush1.bf16.msra.mxu0 0
  %3170 = vmatprep.subr.bf16.mxu0 0
  %3171 = vmatpush1.bf16.msra.mxu0 0
  %3172 = vmatprep.subr.bf16.mxu0 0
  %3173 = vmatpush1.bf16.msra.mxu0 0
  %3174 = vmatprep.subr.bf16.mxu0 0
  %3175 = vmatpush1.bf16.msra.mxu0 0
  %3176 = vmatprep.subr.bf16.mxu0 0
  %3177 = vmatpush1.bf16.msra.mxu0 0
  %3178 = vmatprep.subr.bf16.mxu0 0
  %3179 = vmatpush1.bf16.msra.mxu0 0
  %3180 = vmatprep.subr.bf16.mxu0 0
  %3181 = vmatpush1.bf16.msra.mxu0 0
  %3182 = vmatprep.subr.bf16.mxu0 0
  %3183 = vmatpush1.bf16.msra.mxu0 0
  %3184 = vmatprep.subr.bf16.mxu0 0
  %3185 = vmatpush1.bf16.msra.mxu0 0
  %3186 = vmatprep.subr.bf16.mxu0 0
  %3187 = vmatpush1.bf16.msra.mxu0 0
  %3188 = vmatprep.subr.bf16.mxu0 0
  %3189 = vmatpush1.bf16.msra.mxu0 0
  %3190 = vmatprep.subr.bf16.mxu0 0
  %3191 = vmatpush1.bf16.msra.mxu0 0
  %3192 = vmatprep.subr.bf16.mxu0 0
  %3193 = vmatpush1.bf16.msra.mxu0 0
  %3194 = vmatprep.subr.bf16.mxu0 0
  %3195 = vmatpush1.bf16.msra.mxu0 0
  %3196 = vmatprep.mubr.bf16.mxu0 0
  %3197 = vmatmul.mubr.bf16.gmra.mrb[0].mxu0 %v3162
  %v3198 = vpop.f32.mrb[0].mxu0
  %v3199 = vadd.f32 %v3147, %v3198
  %v3200 = vpop.f32.mrb[0].mxu0
  %v3201 = vpop.f32.mrb[0].mxu0
  %v3202 = vpop.f32.mrb[0].mxu0
  %3203 = vdwg.mxu0
  %v3204 = vxor.u32 %v3199, 2147483648
  %v3205 = vmul.f32 %v3204, 1.442695
  %v3206 = vpow.pop %v3205
  %v3207 = vadd.f32 %v3206, 1.0
  %v3208 = vrcp.pop %v3207
  %v3209 = vmul.f32 1.0, %v3208
  %vm3210 = vcmask 23552
  %3211 = vst.msk [vmem:[%s13] sm:$0xff] %vm3210, %v3209
  // Predicated region
  $region54: #{lstm_model_forward.1} parent=0 // pred_check
    _
  $region55: #{lstm_model_forward.1} parent=0 // pred_check_branch
    %3213 = sbr.rel (0) target = $region57
  $region56: #{lstm_model_forward.1} parent=0 // pred_region
    _
  $region57: #{lstm_model_forward.1} parent=0 // pred_fallthru
    _
  // Predicated region
  $region58: #{lstm_model_forward.1} parent=0 // pred_check
    _
  $region59: #{lstm_model_forward.1} parent=0 // pred_check_branch
    %3215 = sbr.rel (0) target = $region61
  $region60: #{lstm_model_forward.1} parent=0 // pred_region
    _
  $region61: #{lstm_model_forward.1} parent=0 // pred_fallthru
    _

</llo_original>
